<compile_context>
chip_gen: v7x
topology: tpu7x:2x2x1
jax: 0.10.0
libtpu: 0.0.40
codegen_flags: <defaults>
</compile_context>

<pallas_src>
import functools
import math

import jax
import jax.numpy as jnp
from jax.experimental import pallas as pl
from jax.experimental.pallas import tpu as pltpu


def _round_up(x, m):
    return ((x + m - 1) // m) * m


def _cdiv(a, b):
    return -(-a // b)


# ---------------------------------------------------------------------------
# Kernel
# ---------------------------------------------------------------------------
def _time_encoder_kernel(tt_ref, w_ref, b_ref, o_ref, *, embed, group):
    """One grid step.

    tt_ref : (tile_rows, group)          packed time values (group elems / row)
    w_ref  : (group, group*embed)        block-diagonal fused weights
    b_ref  : (1, group*embed)            fused biases, tiled `group` times
    o_ref  : (tile_rows, group*embed)    lane-dense packed output
    """
    t = tt_ref[...]                                   # (R, g)
    b = b_ref[...]                                    # (1, W)

    if group > 1:
        # Expansion + linear on the MXU (idle otherwise). Each output column
        # has exactly one non-zero contribution, so HIGHEST precision keeps
        # this bit-close to the f32 VPU result.
        lin = jnp.dot(t, w_ref[...],
                      preferred_element_type=jnp.float32,
                      precision=jax.lax.Precision.HIGHEST) + b   # (R, W)
    else:
        # Degenerate packing: plain VPU broadcast FMA.
        lin = t * w_ref[...] + b                      # (R,1)*(1,E) -> (R,E)

    width = o_ref.shape[1]
    col = jax.lax.broadcasted_iota(jnp.int32, (1, width), 1)
    is_linear = (col % embed) == 0                    # feature 0 of each element
    o_ref[...] = jnp.where(is_linear, lin, jnp.sin(lin)).astype(o_ref.dtype)


# ---------------------------------------------------------------------------
# pallas_call wrapper (big-N path)
# ---------------------------------------------------------------------------
def _time_encoder_pallas(tt_flat, w_row, b_row, *, out_dtype=jnp.float32,
                         target_tile_bytes=4 << 20, vmem_budget=24 << 20):
    n = tt_flat.shape[0]
    embed = w_row.shape[1]

    # --- packing factor ------------------------------------------------------
    # g0 = minimal packing making W = g*E a multiple of 128 lanes (dense stores).
    # Prefer group = 32 (good MXU K, 4x not 32x input lane padding); prefer a
    # group that divides n so the epilogue [:n] slice is a no-op.
    g0 = 128 // math.gcd(embed, 128)
    cap = max(g0, 32)
    group = cap
    if n % group != 0:
        cand = cap // 2
        while cand >= g0:                      # powers of two >= g0 are multiples of g0
            if n % cand == 0:
                group = cand
                break
            cand //= 2
        # else: keep group = cap; pad < group elements and slice at the end.
    width = group * embed                      # multiple of 128 lanes
    rows = _cdiv(n, group)
    n_pad = rows * group

    # --- tile sizing -----------------------------------------------------------
    # Target ~4 MiB of output per grid step; keep double-buffered in/out +
    # weights under the VMEM budget; keep >= 2 grid steps for v7x megacore;
    # tile_rows a multiple of 8.  Input block (tile_rows, group) lane-pads to
    # 128 lanes in VMEM, which is accounted for below.
    wsel_bytes = group * width * 4
    fixed_bytes = 2 * (wsel_bytes + width * 4)
    per_row_bytes = 2 * (width + max(group, 128)) * 4
    tr_budget = (vmem_budget - fixed_bytes) // per_row_bytes
    tr_target = target_tile_bytes // (width * 4)
    split = rows if rows <= 8 else _cdiv(rows, 2)      # >=2 steps when worthwhile
    tile_rows = min(tr_budget, tr_target, _round_up(split, 8))
    tile_rows = max(8, (tile_rows // 8) * 8)

    # --- inputs ----------------------------------------------------------------
    if n_pad != n:
        tt_flat = jnp.pad(tt_flat, (0, n_pad - n))     # < group elements
    tt_p = tt_flat.reshape(rows, group)

    # Block-diagonal fused weights / tiled biases (cheap; could be cached at init).
    w_sel = jnp.kron(jnp.eye(group, dtype=jnp.float32), w_row)   # (group, W)
    b_t = jnp.tile(b_row, (1, group))                            # (1, W)

    kernel = functools.partial(_time_encoder_kernel, embed=embed, group=group)

    out_packed = pl.pallas_call(
        kernel,
        out_shape=jax.ShapeDtypeStruct((rows, width), out_dtype),
        grid_spec=pltpu.PrefetchScalarGridSpec(
            num_scalar_prefetch=0,
            grid=(pl.cdiv(rows, tile_rows),),          # boundary block clamped
            in_specs=[
                pl.BlockSpec((tile_rows, group), lambda i: (i, 0)),
                pl.BlockSpec((group, width), lambda i: (0, 0)),
                pl.BlockSpec((1, width), lambda i: (0, 0)),
            ],
            out_specs=pl.BlockSpec((tile_rows, width), lambda i: (i, 0)),
        ),
        compiler_params=pltpu.CompilerParams(
            dimension_semantics=("parallel",),
            vmem_limit_bytes=32 * 1024 * 1024),
    )(tt_p, w_sel, b_t)

    # (rows, g*E) row-major is bit-identical to (rows*g, E): free reshape.
    out = out_packed.reshape(rows * group, embed)
    if n_pad != n:
        out = out[:n]      # only when no packing divides n (rare); tiny pad sliced
    return out


# ---------------------------------------------------------------------------
# Public forward
# ---------------------------------------------------------------------------
def fuse_time_encoder_params(params):
    """Fuse [linear | periodic] weights/biases into single length-E rows."""
    w_row = jnp.concatenate(
        [params["linear_w"].reshape(1, 1), params["periodic_w"].reshape(1, -1)],
        axis=1).astype(jnp.float32)
    b_row = jnp.concatenate(
        [params["linear_b"].reshape(1, 1), params["periodic_b"].reshape(1, -1)],
        axis=1).astype(jnp.float32)
    return w_row, b_row


def _fused_dense(tt_flat, w_row, b_row):
    """Pure-JAX fused path for tiny inputs (XLA fuses it into one pass)."""
    lin = tt_flat[:, None] * w_row + b_row
    return jnp.concatenate([lin[:, :1], jnp.sin(lin[:, 1:])], axis=1)


@functools.partial(
    jax.jit, static_argnames=("min_pallas_elems", "force_pallas", "out_dtype"))
def time_encoder_forward(tt, params, *, min_pallas_elems=65536,
                         force_pallas=False, out_dtype=jnp.float32):
    """Mirror of Time_Encoder.forward.

    tt: (b, l, k) or (b, l) -> (b, l, k, E) or (b, l, 1, E).
    out_dtype: optional bf16 output halves write traffic (helps v5e); default f32.
    """
    if tt.ndim == 3:
        lead = tt.shape
    elif tt.ndim == 2:
        lead = (*tt.shape, 1)
    else:
        raise ValueError("tt must be rank 2 or 3")

    w_row, b_row = fuse_time_encoder_params(params)
    embed = w_row.shape[1]

    tt_flat = tt.reshape(-1).astype(jnp.float32)
    n = tt_flat.shape[0]

    if force_pallas or n >= min_pallas_elems:
        out = _time_encoder_pallas(tt_flat, w_row, b_row, out_dtype=out_dtype)
    else:
        out = _fused_dense(tt_flat, w_row, b_row).astype(out_dtype)
    return out.reshape(*lead, embed)


# ---------------------------------------------------------------------------
# Reference + init (match the PyTorch module)
# ---------------------------------------------------------------------------
def _reference_forward(tt, params):
    if tt.ndim == 3:
        tt4 = tt[..., None]
    else:
        tt4 = tt[..., None, None]
    out2 = jnp.sin(tt4 @ params["periodic_w"].T + params["periodic_b"])
    out1 = tt4 @ params["linear_w"].T + params["linear_b"]
    return jnp.concatenate([out1, out2], axis=-1)


def init_params(key, embed_time):
    # nn.Linear(in=1) default init: U(-1, 1) for weight and bias.
    k1, k2, k3, k4 = jax.random.split(key, 4)
    return {
        "periodic_w": jax.random.uniform(k1, (embed_time - 1, 1),
                                         minval=-1.0, maxval=1.0,
                                         dtype=jnp.float32),
        "periodic_b": jax.random.uniform(k2, (embed_time - 1,),
                                         minval=-1.0, maxval=1.0,
                                         dtype=jnp.float32),
        "linear_w": jax.random.uniform(k3, (1, 1), minval=-1.0, maxval=1.0,
                                       dtype=jnp.float32),
        "linear_b": jax.random.uniform(k4, (1,), minval=-1.0, maxval=1.0,
                                       dtype=jnp.float32),
    }


if __name__ == "__main__":
    embed_time = 32
    b, l, k = 2, 8, 4

    key = jax.random.PRNGKey(0)
    pkey, xkey = jax.random.split(key)
    params = init_params(pkey, embed_time)

    # 3-D input path (n = 64, group = 32, no epilogue slice).
    tt3 = jax.random.uniform(xkey, (b, l, k), dtype=jnp.float32) * 10.0
    out3 = jax.block_until_ready(
        time_encoder_forward(tt3, params, force_pallas=True))
    ref3 = _reference_forward(tt3, params)
    assert out3.shape == (b, l, k, embed_time), out3.shape
    assert jnp.allclose(out3, ref3, atol=1e-5, rtol=1e-5)

    # 2-D input path (n = 16, group falls back to 16).
    tt2 = tt3[:, :, 0]
    out2 = jax.block_until_ready(
        time_encoder_forward(tt2, params, force_pallas=True))
    ref2 = _reference_forward(tt2, params)
    assert out2.shape == (b, l, 1, embed_time), out2.shape
    assert jnp.allclose(out2, ref2, atol=1e-5, rtol=1e-5)

    # Larger N divisible by 4 only: multi-step grid + clamped boundary block,
    # no epilogue slice copy.
    bb, ll, kk = 4, 129, 37
    ttL = jax.random.uniform(jax.random.PRNGKey(1), (bb, ll, kk),
                             dtype=jnp.float32) * 10.0
    outL = jax.block_until_ready(
        time_encoder_forward(ttL, params, force_pallas=True))
    refL = _reference_forward(ttL, params)
    assert outL.shape == (bb, ll, kk, embed_time), outL.shape
    assert jnp.allclose(outL, refL, atol=1e-5, rtol=1e-5)

    # N with no usable divisor (n = 105): < group pad + tiny epilogue slice.
    ttO = jax.random.uniform(jax.random.PRNGKey(3), (3, 7, 5),
                             dtype=jnp.float32) * 10.0
    outO = jax.block_until_ready(
        time_encoder_forward(ttO, params, force_pallas=True))
    refO = _reference_forward(ttO, params)
    assert outO.shape == (3, 7, 5, embed_time), outO.shape
    assert jnp.allclose(outO, refO, atol=1e-5, rtol=1e-5)

    # Awkward embed_time = 100: group = 32, W = 3200 (lane-dense, no fallback).
    params100 = init_params(jax.random.PRNGKey(2), 100)
    out100 = jax.block_until_ready(
        time_encoder_forward(tt3, params100, force_pallas=True))
    ref100 = _reference_forward(tt3, params100)
    assert out100.shape == (b, l, k, 100), out100.shape
    assert jnp.allclose(out100, ref100, atol=1e-5, rtol=1e-5)

    print("KERNEL_OK")
</pallas_src>

<mosaic_0001>
module attributes {stable_mosaic.version = 11 : i64} {
  func.func @_time_encoder_kernel(%arg0: i32, %arg1: memref<8x32xf32, #tpu.memory_space<vmem>>, %arg2: memref<32x1024xf32, #tpu.memory_space<vmem>>, %arg3: memref<1x1024xf32, #tpu.memory_space<vmem>>, %arg4: memref<8x1024xf32, #tpu.memory_space<vmem>>) attributes {dimension_semantics = [#tpu.dimension_semantics<parallel>], iteration_bounds = array<i64: 1>, scalar_prefetch = 0 : i64, scratch_operands = 0 : i64, tpu.core_type = #tpu.core_type<tc>, window_params = [{transform_indices = @transform_0, window_bounds = array<i64: 8, 32>}, {pipeline_mode = #tpu.pipeline_mode<synchronous>, transform_indices = @transform_1, window_bounds = array<i64: 32, 1024>}, {pipeline_mode = #tpu.pipeline_mode<synchronous>, transform_indices = @transform_2, window_bounds = array<i64: 1, 1024>}, {transform_indices = @transform_3, window_bounds = array<i64: 8, 1024>}]} {
    %c0 = arith.constant 0 : index
    %c0_0 = arith.constant 0 : index
    %0 = vector.load %arg1[%c0, %c0_0] : memref<8x32xf32, #tpu.memory_space<vmem>>, vector<8x32xf32>
    %c0_1 = arith.constant 0 : index
    %c0_2 = arith.constant 0 : index
    %1 = vector.load %arg3[%c0_1, %c0_2] : memref<1x1024xf32, #tpu.memory_space<vmem>>, vector<1x1024xf32>
    %c0_3 = arith.constant 0 : index
    %c0_4 = arith.constant 0 : index
    %2 = vector.load %arg2[%c0_3, %c0_4] : memref<32x1024xf32, #tpu.memory_space<vmem>>, vector<32x1024xf32>
    %cst = arith.constant dense<0.000000e+00> : vector<8x1024xf32>
    %3 = tpu.matmul %0, %2, %cst {dimension_numbers = #tpu.dot_dimension_numbers<[1], [0], [0], [1], [0, 0, 1, 1], [], []>, precision = #tpu.contract_precision<fp32>} : vector<8x32xf32>, vector<32x1024xf32>, vector<8x1024xf32> -> vector<8x1024xf32>
    %4 = vector.broadcast %1 : vector<1x1024xf32> to vector<8x1024xf32>
    %5 = arith.addf %3, %4 : vector<8x1024xf32>
    %6 = tpu.iota {dimensions = array<i32: 1>} : vector<1x1024xi32>
    %c32_i32 = arith.constant 32 : i32
    %c0_i32 = arith.constant 0 : i32
    %7 = arith.cmpi eq, %c32_i32, %c0_i32 : i32
    %c1_i32 = arith.constant 1 : i32
    %8 = arith.select %7, %c1_i32, %c32_i32 : i32
    %9 = vector.broadcast %8 : i32 to vector<1x1024xi32>
    %10 = arith.remsi %6, %9 : vector<1x1024xi32>
    %c0_i32_5 = arith.constant 0 : i32
    %11 = vector.broadcast %c0_i32_5 : i32 to vector<1x1024xi32>
    %12 = arith.cmpi ne, %10, %11 : vector<1x1024xi32>
    %c0_i32_6 = arith.constant 0 : i32
    %13 = vector.broadcast %c0_i32_6 : i32 to vector<1x1024xi32>
    %14 = arith.cmpi slt, %10, %13 : vector<1x1024xi32>
    %c0_i32_7 = arith.constant 0 : i32
    %15 = arith.cmpi slt, %8, %c0_i32_7 : i32
    %16 = vector.broadcast %15 : i1 to vector<1x1024xi1>
    %17 = vector.broadcast %16 : vector<1x1024xi1> to vector<1x1024xi1>
    %18 = arith.xori %14, %17 : vector<1x1024xi1>
    %19 = arith.andi %18, %12 : vector<1x1024xi1>
    %20 = vector.broadcast %8 : i32 to vector<1x1024xi32>
    %21 = arith.addi %10, %20 : vector<1x1024xi32>
    %22 = arith.select %19, %21, %10 : vector<1x1024xi1>, vector<1x1024xi32>
    %c0_i32_8 = arith.constant 0 : i32
    %23 = vector.broadcast %c0_i32_8 : i32 to vector<1x1024xi32>
    %24 = arith.cmpi eq, %22, %23 : vector<1x1024xi32>
    %25 = math.sin %5 : vector<8x1024xf32>
    %26 = vector.shape_cast %24 : vector<1x1024xi1> to vector<1x1024xi1>
    %27 = vector.broadcast %26 : vector<1x1024xi1> to vector<8x1024xi1>
    %28 = arith.select %27, %5, %25 : vector<8x1024xi1>, vector<8x1024xf32>
    %c0_9 = arith.constant 0 : index
    %c0_10 = arith.constant 0 : index
    %29 = vector.load %arg4[%c0_9, %c0_10] : memref<8x1024xf32, #tpu.memory_space<vmem>>, vector<8x1024xf32>
    tpu.vector_store %arg4[%c0_9, %c0_10], %28 {strides = array<i32>} : memref<8x1024xf32, #tpu.memory_space<vmem>>, vector<8x1024xf32>,
    return
  }
  func.func @transform_0(%arg0: i32) -> (i32, i32) {
    %c0_i32 = arith.constant 0 : i32
    %c0_i32_0 = arith.constant 0 : i32
    return %arg0, %c0_i32 : i32, i32
  }
  func.func @transform_1(%arg0: i32) -> (i32, i32) {
    %c0_i32 = arith.constant 0 : i32
    %c0_i32_0 = arith.constant 0 : i32
    %c0_i32_1 = arith.constant 0 : i32
    return %c0_i32, %c0_i32_0 : i32, i32
  }
  func.func @transform_2(%arg0: i32) -> (i32, i32) {
    %c0_i32 = arith.constant 0 : i32
    %c0_i32_0 = arith.constant 0 : i32
    %c0_i32_1 = arith.constant 0 : i32
    return %c0_i32, %c0_i32_0 : i32, i32
  }
  func.func @transform_3(%arg0: i32) -> (i32, i32) {
    %c0_i32 = arith.constant 0 : i32
    %c0_i32_0 = arith.constant 0 : i32
    return %arg0, %c0_i32 : i32, i32
  }
}

</mosaic_0001>

<llo_original>
// kernel: time_encoder_forward.1
$region0: #{time_encoder_forward.1}
  #allocation0 [shape = 'u32[]', space=smem, size = 0x4, offset = 0x4, fixed_abs, tag = 'smem constant byte address 0x4 - core index']
  #allocation1 [shape = 'u32[144,128]{1,0:T(1,128)}', space=vmem, size = 0x12000, scoped, tag = 'internal scratch']
  %s0 = inlined_call_operand.vmem [shape: f32[2,32], index: 0, kind: input, shape index: {}]
  %s1 = inlined_call_operand.vmem [shape: f32[32,1024], index: 1, kind: input, shape index: {}]
  %s2 = inlined_call_operand.vmem [shape: f32[1,1024], index: 2, kind: input, shape index: {}]
  %s3 = inlined_call_operand.vmem [shape: f32[2,1024], index: 3, kind: output, shape index: {}]
  %s4 = sld [smem:[#allocation0]]
  $region41: #{time_encoder_forward.1} parent=0
    _
  %s6 = ssub.s32 1, %s4
  %s7 = scalar_select 0, %s6, %s4
  $region1: #{time_encoder_forward.1} parent=0
    #allocation2 [shape = 'u8[32768]{0}', space=vmem, size = 0x8000, scoped, tag = 'output window, operand 0, single buffered']
    // Predicated region
    $region2: #{time_encoder_forward.1} parent=1 // pred_check
      _
    $region3: #{time_encoder_forward.1} parent=1 // pred_check_branch
      %9 = sbr.rel (0) target = $region5
    $region4: #{time_encoder_forward.1} parent=1 // pred_region
      _
    $region5: #{time_encoder_forward.1} parent=1 // pred_fallthru
      _
    // Predicated region
    $region6: #{time_encoder_forward.1} parent=1 // pred_check
      _
    $region7: #{time_encoder_forward.1} parent=1 // pred_check_branch
      %11 = sbr.rel (0) target = $region9
    $region8: #{time_encoder_forward.1} parent=1 // pred_region
      _
    $region9: #{time_encoder_forward.1} parent=1 // pred_fallthru
      _
    // Predicated region
    $region10: #{time_encoder_forward.1} parent=1 // pred_check
      _
    $region11: #{time_encoder_forward.1} parent=1 // pred_check_branch
      %13 = sbr.rel (0) target = $region13
    $region12: #{time_encoder_forward.1} parent=1 // pred_region
      _
    $region13: #{time_encoder_forward.1} parent=1 // pred_fallthru
      _
    %v14 = vld [vmem:[%s0] sm:$0xff]
    %v15 = vld [vmem:[%s2] sm:$0xff]
    %v16 = vld [vmem:[%s1] sm:$0xff]
    %v17 = vld [vmem:[%s1 + $0x8] sm:$0xff]
    %v18 = vld [vmem:[%s1 + $0x10] sm:$0xff]
    %v19 = vld [vmem:[%s1 + $0x18] sm:$0xff]
    %v20 = vld [vmem:[%s1 + $0x20] sm:$0xff]
    %v21 = vld [vmem:[%s1 + $0x28] sm:$0xff]
    %v22 = vld [vmem:[%s1 + $0x30] sm:$0xff]
    %v23 = vld [vmem:[%s1 + $0x38] sm:$0xff]
    %v24 = vld [vmem:[%s1 + $0x40] sm:$0xff]
    %v25 = vld [vmem:[%s1 + $0x48] sm:$0xff]
    %v26 = vld [vmem:[%s1 + $0x50] sm:$0xff]
    %v27 = vld [vmem:[%s1 + $0x58] sm:$0xff]
    %v28 = vld [vmem:[%s1 + $0x60] sm:$0xff]
    %v29 = vld [vmem:[%s1 + $0x68] sm:$0xff]
    %v30 = vld [vmem:[%s1 + $0x70] sm:$0xff]
    %v31 = vld [vmem:[%s1 + $0x78] sm:$0xff]
    %v32 = vld [vmem:[%s1 + $0x80] sm:$0xff]
    %v33 = vld [vmem:[%s1 + $0x88] sm:$0xff]
    %v34 = vld [vmem:[%s1 + $0x90] sm:$0xff]
    %v35 = vld [vmem:[%s1 + $0x98] sm:$0xff]
    %v36 = vld [vmem:[%s1 + $0xa0] sm:$0xff]
    %v37 = vld [vmem:[%s1 + $0xa8] sm:$0xff]
    %v38 = vld [vmem:[%s1 + $0xb0] sm:$0xff]
    %v39 = vld [vmem:[%s1 + $0xb8] sm:$0xff]
    %v40 = vld [vmem:[%s1 + $0xc0] sm:$0xff]
    %v41 = vld [vmem:[%s1 + $0xc8] sm:$0xff]
    %v42 = vld [vmem:[%s1 + $0xd0] sm:$0xff]
    %v43 = vld [vmem:[%s1 + $0xd8] sm:$0xff]
    %v44 = vld [vmem:[%s1 + $0xe0] sm:$0xff]
    %v45 = vld [vmem:[%s1 + $0xe8] sm:$0xff]
    %v46 = vld [vmem:[%s1 + $0xf0] sm:$0xff]
    %v47 = vld [vmem:[%s1 + $0xf8] sm:$0xff]
    %v49 = vlaneseq
    %v50 = vshrl.u32 %v49, 7
    %v51 = vsub.s32 0, %v50
    %v52 = vrot.slane %v15, %v51
    %v53 = vlaneseq
    %v54 = vshrl.u32 %v53, 7
    %v55 = vsub.s32 1, %v54
    %v56 = vrot.slane %v15, %v55
    %v57 = vlaneseq
    %v58 = vshrl.u32 %v57, 7
    %v59 = vsub.s32 2, %v58
    %v60 = vrot.slane %v15, %v59
    %v61 = vlaneseq
    %v62 = vshrl.u32 %v61, 7
    %v63 = vsub.s32 3, %v62
    %v64 = vrot.slane %v15, %v63
    %v65 = vlaneseq
    %v66 = vshrl.u32 %v65, 7
    %v67 = vsub.s32 4, %v66
    %v68 = vrot.slane %v15, %v67
    %v69 = vlaneseq
    %v70 = vshrl.u32 %v69, 7
    %v71 = vsub.s32 5, %v70
    %v72 = vrot.slane %v15, %v71
    %v73 = vlaneseq
    %v74 = vshrl.u32 %v73, 7
    %v75 = vsub.s32 6, %v74
    %v76 = vrot.slane %v15, %v75
    %v77 = vlaneseq
    %v78 = vshrl.u32 %v77, 7
    %v79 = vsub.s32 7, %v78
    %v80 = vrot.slane %v15, %v79
    %vm89 = vcmask 261120
    %v91 = vsel %vm89, %v14, 0
    %v93 = vand.u32 %v17, 4294901760
    %94 = vmatprep.subr.mxu0 %v93
    %v95 = vand.u32 %v16, 4294901760
    %96 = vmatpush1.msra.mxu0 %v95
    %v97 = vand.u32 %v25, 4294901760
    %98 = vmatprep.subr.mxu0 %v97
    %v99 = vand.u32 %v24, 4294901760
    %100 = vmatpush1.msra.mxu0 %v99
    %v101 = vand.u32 %v33, 4294901760
    %102 = vmatprep.subr.mxu0 %v101
    %v103 = vand.u32 %v32, 4294901760
    %104 = vmatpush1.msra.mxu0 %v103
    %v105 = vand.u32 %v41, 4294901760
    %106 = vmatprep.subr.mxu0 %v105
    %v107 = vand.u32 %v40, 4294901760
    %108 = vmatpush1.msra.mxu0 %v107
    %109 = vmatprep.subr.mxu0 0.0
    %110 = vmatpush1.msra.mxu0 0.0
    %111 = vmatprep.subr.mxu0 0.0
    %112 = vmatpush1.msra.mxu0 0.0
    %113 = vmatprep.subr.mxu0 0.0
    %114 = vmatpush1.msra.mxu0 0.0
    %115 = vmatprep.subr.mxu0 0.0
    %116 = vmatpush1.msra.mxu0 0.0
    %117 = vmatprep.subr.mxu0 0.0
    %118 = vmatpush1.msra.mxu0 0.0
    %119 = vmatprep.subr.mxu0 0.0
    %120 = vmatpush1.msra.mxu0 0.0
    %121 = vmatprep.subr.mxu0 0.0
    %122 = vmatpush1.msra.mxu0 0.0
    %123 = vmatprep.subr.mxu0 0.0
    %124 = vmatpush1.msra.mxu0 0.0
    %125 = vmatprep.subr.mxu0 0.0
    %126 = vmatpush1.msra.mxu0 0.0
    %127 = vmatprep.subr.mxu0 0.0
    %128 = vmatpush1.msra.mxu0 0.0
    %129 = vmatprep.subr.mxu0 0.0
    %130 = vmatpush1.msra.mxu0 0.0
    %131 = vmatprep.subr.mxu0 0.0
    %132 = vmatpush1.msra.mxu0 0.0
    %133 = vmatprep.subr.mxu0 0.0
    %134 = vmatpush1.msra.mxu0 0.0
    %135 = vmatprep.subr.mxu0 0.0
    %136 = vmatpush1.msra.mxu0 0.0
    %137 = vmatprep.subr.mxu0 0.0
    %138 = vmatpush1.msra.mxu0 0.0
    %139 = vmatprep.subr.mxu0 0.0
    %140 = vmatpush1.msra.mxu0 0.0
    %141 = vmatprep.subr.mxu0 0.0
    %142 = vmatpush1.msra.mxu0 0.0
    %143 = vmatprep.subr.mxu0 0.0
    %144 = vmatpush1.msra.mxu0 0.0
    %145 = vmatprep.subr.mxu0 0.0
    %146 = vmatpush1.msra.mxu0 0.0
    %147 = vmatprep.subr.mxu0 0.0
    %148 = vmatpush1.msra.mxu0 0.0
    %149 = vmatprep.subr.mxu0 0.0
    %150 = vmatpush1.msra.mxu0 0.0
    %151 = vmatprep.subr.mxu0 0.0
    %152 = vmatpush1.msra.mxu0 0.0
    %153 = vmatprep.subr.mxu0 0.0
    %154 = vmatpush1.msra.mxu0 0.0
    %155 = vmatprep.subr.mxu0 0.0
    %156 = vmatpush1.msra.mxu0 0.0
    %157 = vmatprep.subr.mxu0 0.0
    %158 = vmatpush1.msra.mxu0 0.0
    %159 = vmatprep.subr.mxu0 0.0
    %160 = vmatpush1.msra.mxu0 0.0
    %161 = vmatprep.subr.mxu0 0.0
    %162 = vmatpush1.msra.mxu0 0.0
    %163 = vmatprep.subr.mxu0 0.0
    %164 = vmatpush1.msra.mxu0 0.0
    %165 = vmatprep.mubr.f32.mxu0 0.0
    %v166 = vand.u32 %v91, 4294901760
    %v167 = vsub.f32 %v91, %v166
    %v168 = vand.u32 %v167, 4294901760
    %v169 = vsub.f32 %v167, %v168
    %v170 = vand.u32 %v169, 4294901760
    %171 = vmatmul.mubr.f32.gmra.mrb[0].mxu0 %v170
    %v172 = vpop.f32.mrb[0].mxu0
    %v173 = vadd.f32 %v52, %v172
    %v174 = vpop.f32.mrb[0].mxu0
    %v175 = vadd.f32 %v56, %v174
    %176 = vdwg.mxu0
    %v177 = vand.u32 %v17, 4294901760
    %v178 = vsub.f32 %v17, %v177
    %v179 = vand.u32 %v178, 4294901760
    %v180 = vsub.f32 %v178, %v179
    %v181 = vand.u32 %v180, 4294901760
    %182 = vmatprep.subr.mxu0 %v181
    %v183 = vand.u32 %v16, 4294901760
    %v184 = vsub.f32 %v16, %v183
    %v185 = vand.u32 %v184, 4294901760
    %v186 = vsub.f32 %v184, %v185
    %v187 = vand.u32 %v186, 4294901760
    %188 = vmatpush1.msra.mxu0 %v187
    %v189 = vand.u32 %v25, 4294901760
    %v190 = vsub.f32 %v25, %v189
    %v191 = vand.u32 %v190, 4294901760
    %v192 = vsub.f32 %v190, %v191
    %v193 = vand.u32 %v192, 4294901760
    %194 = vmatprep.subr.mxu0 %v193
    %v195 = vand.u32 %v24, 4294901760
    %v196 = vsub.f32 %v24, %v195
    %v197 = vand.u32 %v196, 4294901760
    %v198 = vsub.f32 %v196, %v197
    %v199 = vand.u32 %v198, 4294901760
    %200 = vmatpush1.msra.mxu0 %v199
    %v201 = vand.u32 %v33, 4294901760
    %v202 = vsub.f32 %v33, %v201
    %v203 = vand.u32 %v202, 4294901760
    %v204 = vsub.f32 %v202, %v203
    %v205 = vand.u32 %v204, 4294901760
    %206 = vmatprep.subr.mxu0 %v205
    %v207 = vand.u32 %v32, 4294901760
    %v208 = vsub.f32 %v32, %v207
    %v209 = vand.u32 %v208, 4294901760
    %v210 = vsub.f32 %v208, %v209
    %v211 = vand.u32 %v210, 4294901760
    %212 = vmatpush1.msra.mxu0 %v211
    %v213 = vand.u32 %v41, 4294901760
    %v214 = vsub.f32 %v41, %v213
    %v215 = vand.u32 %v214, 4294901760
    %v216 = vsub.f32 %v214, %v215
    %v217 = vand.u32 %v216, 4294901760
    %218 = vmatprep.subr.mxu0 %v217
    %v219 = vand.u32 %v40, 4294901760
    %v220 = vsub.f32 %v40, %v219
    %v221 = vand.u32 %v220, 4294901760
    %v222 = vsub.f32 %v220, %v221
    %v223 = vand.u32 %v222, 4294901760
    %224 = vmatpush1.msra.mxu0 %v223
    %225 = vmatprep.subr.mxu0 0.0
    %226 = vmatpush1.msra.mxu0 0.0
    %227 = vmatprep.subr.mxu0 0.0
    %228 = vmatpush1.msra.mxu0 0.0
    %229 = vmatprep.subr.mxu0 0.0
    %230 = vmatpush1.msra.mxu0 0.0
    %231 = vmatprep.subr.mxu0 0.0
    %232 = vmatpush1.msra.mxu0 0.0
    %233 = vmatprep.subr.mxu0 0.0
    %234 = vmatpush1.msra.mxu0 0.0
    %235 = vmatprep.subr.mxu0 0.0
    %236 = vmatpush1.msra.mxu0 0.0
    %237 = vmatprep.subr.mxu0 0.0
    %238 = vmatpush1.msra.mxu0 0.0
    %239 = vmatprep.subr.mxu0 0.0
    %240 = vmatpush1.msra.mxu0 0.0
    %241 = vmatprep.subr.mxu0 0.0
    %242 = vmatpush1.msra.mxu0 0.0
    %243 = vmatprep.subr.mxu0 0.0
    %244 = vmatpush1.msra.mxu0 0.0
    %245 = vmatprep.subr.mxu0 0.0
    %246 = vmatpush1.msra.mxu0 0.0
    %247 = vmatprep.subr.mxu0 0.0
    %248 = vmatpush1.msra.mxu0 0.0
    %249 = vmatprep.subr.mxu0 0.0
    %250 = vmatpush1.msra.mxu0 0.0
    %251 = vmatprep.subr.mxu0 0.0
    %252 = vmatpush1.msra.mxu0 0.0
    %253 = vmatprep.subr.mxu0 0.0
    %254 = vmatpush1.msra.mxu0 0.0
    %255 = vmatprep.subr.mxu0 0.0
    %256 = vmatpush1.msra.mxu0 0.0
    %257 = vmatprep.subr.mxu0 0.0
    %258 = vmatpush1.msra.mxu0 0.0
    %259 = vmatprep.subr.mxu0 0.0
    %260 = vmatpush1.msra.mxu0 0.0
    %261 = vmatprep.subr.mxu0 0.0
    %262 = vmatpush1.msra.mxu0 0.0
    %263 = vmatprep.subr.mxu0 0.0
    %264 = vmatpush1.msra.mxu0 0.0
    %265 = vmatprep.subr.mxu0 0.0
    %266 = vmatpush1.msra.mxu0 0.0
    %267 = vmatprep.subr.mxu0 0.0
    %268 = vmatpush1.msra.mxu0 0.0
    %269 = vmatprep.subr.mxu0 0.0
    %270 = vmatpush1.msra.mxu0 0.0
    %271 = vmatprep.subr.mxu0 0.0
    %272 = vmatpush1.msra.mxu0 0.0
    %273 = vmatprep.subr.mxu0 0.0
    %274 = vmatpush1.msra.mxu0 0.0
    %275 = vmatprep.subr.mxu0 0.0
    %276 = vmatpush1.msra.mxu0 0.0
    %277 = vmatprep.subr.mxu0 0.0
    %278 = vmatpush1.msra.mxu0 0.0
    %279 = vmatprep.subr.mxu0 0.0
    %280 = vmatpush1.msra.mxu0 0.0
    %281 = vmatprep.mubr.f32.mxu0 0.0
    %v282 = vand.u32 %v91, 4294901760
    %283 = vmatmul.mubr.f32.gmra.mrb[0].mxu0 %v282
    %v284 = vpop.f32.mrb[0].mxu0
    %v285 = vadd.f32 %v173, %v284
    %v286 = vpop.f32.mrb[0].mxu0
    %v287 = vadd.f32 %v175, %v286
    %288 = vdwg.mxu0
    %v289 = vand.u32 %v17, 4294901760
    %v290 = vsub.f32 %v17, %v289
    %291 = vmatprep.subr.mxu0 %v290
    %v292 = vand.u32 %v16, 4294901760
    %v293 = vsub.f32 %v16, %v292
    %294 = vmatpush1.msra.mxu0 %v293
    %v295 = vand.u32 %v25, 4294901760
    %v296 = vsub.f32 %v25, %v295
    %297 = vmatprep.subr.mxu0 %v296
    %v298 = vand.u32 %v24, 4294901760
    %v299 = vsub.f32 %v24, %v298
    %300 = vmatpush1.msra.mxu0 %v299
    %v301 = vand.u32 %v33, 4294901760
    %v302 = vsub.f32 %v33, %v301
    %303 = vmatprep.subr.mxu0 %v302
    %v304 = vand.u32 %v32, 4294901760
    %v305 = vsub.f32 %v32, %v304
    %306 = vmatpush1.msra.mxu0 %v305
    %v307 = vand.u32 %v41, 4294901760
    %v308 = vsub.f32 %v41, %v307
    %309 = vmatprep.subr.mxu0 %v308
    %v310 = vand.u32 %v40, 4294901760
    %v311 = vsub.f32 %v40, %v310
    %312 = vmatpush1.msra.mxu0 %v311
    %313 = vmatprep.subr.mxu0 0.0
    %314 = vmatpush1.msra.mxu0 0.0
    %315 = vmatprep.subr.mxu0 0.0
    %316 = vmatpush1.msra.mxu0 0.0
    %317 = vmatprep.subr.mxu0 0.0
    %318 = vmatpush1.msra.mxu0 0.0
    %319 = vmatprep.subr.mxu0 0.0
    %320 = vmatpush1.msra.mxu0 0.0
    %321 = vmatprep.subr.mxu0 0.0
    %322 = vmatpush1.msra.mxu0 0.0
    %323 = vmatprep.subr.mxu0 0.0
    %324 = vmatpush1.msra.mxu0 0.0
    %325 = vmatprep.subr.mxu0 0.0
    %326 = vmatpush1.msra.mxu0 0.0
    %327 = vmatprep.subr.mxu0 0.0
    %328 = vmatpush1.msra.mxu0 0.0
    %329 = vmatprep.subr.mxu0 0.0
    %330 = vmatpush1.msra.mxu0 0.0
    %331 = vmatprep.subr.mxu0 0.0
    %332 = vmatpush1.msra.mxu0 0.0
    %333 = vmatprep.subr.mxu0 0.0
    %334 = vmatpush1.msra.mxu0 0.0
    %335 = vmatprep.subr.mxu0 0.0
    %336 = vmatpush1.msra.mxu0 0.0
    %337 = vmatprep.subr.mxu0 0.0
    %338 = vmatpush1.msra.mxu0 0.0
    %339 = vmatprep.subr.mxu0 0.0
    %340 = vmatpush1.msra.mxu0 0.0
    %341 = vmatprep.subr.mxu0 0.0
    %342 = vmatpush1.msra.mxu0 0.0
    %343 = vmatprep.subr.mxu0 0.0
    %344 = vmatpush1.msra.mxu0 0.0
    %345 = vmatprep.subr.mxu0 0.0
    %346 = vmatpush1.msra.mxu0 0.0
    %347 = vmatprep.subr.mxu0 0.0
    %348 = vmatpush1.msra.mxu0 0.0
    %349 = vmatprep.subr.mxu0 0.0
    %350 = vmatpush1.msra.mxu0 0.0
    %351 = vmatprep.subr.mxu0 0.0
    %352 = vmatpush1.msra.mxu0 0.0
    %353 = vmatprep.subr.mxu0 0.0
    %354 = vmatpush1.msra.mxu0 0.0
    %355 = vmatprep.subr.mxu0 0.0
    %356 = vmatpush1.msra.mxu0 0.0
    %357 = vmatprep.subr.mxu0 0.0
    %358 = vmatpush1.msra.mxu0 0.0
    %359 = vmatprep.subr.mxu0 0.0
    %360 = vmatpush1.msra.mxu0 0.0
    %361 = vmatprep.subr.mxu0 0.0
    %362 = vmatpush1.msra.mxu0 0.0
    %363 = vmatprep.subr.mxu0 0.0
    %364 = vmatpush1.msra.mxu0 0.0
    %365 = vmatprep.subr.mxu0 0.0
    %366 = vmatpush1.msra.mxu0 0.0
    %367 = vmatprep.subr.mxu0 0.0
    %368 = vmatpush1.msra.mxu0 0.0
    %369 = vmatprep.mubr.f32.mxu0 0.0
    %v370 = vand.u32 %v91, 4294901760
    %v371 = vsub.f32 %v91, %v370
    %372 = vmatmul.mubr.f32.gmra.mrb[0].mxu0 %v371
    %v373 = vpop.f32.mrb[0].mxu0
    %v374 = vadd.f32 %v285, %v373
    %v375 = vpop.f32.mrb[0].mxu0
    %v376 = vadd.f32 %v287, %v375
    %377 = vdwg.mxu0
    %v378 = vand.u32 %v17, 4294901760
    %379 = vmatprep.subr.mxu0 %v378
    %v380 = vand.u32 %v16, 4294901760
    %381 = vmatpush1.msra.mxu0 %v380
    %v382 = vand.u32 %v25, 4294901760
    %383 = vmatprep.subr.mxu0 %v382
    %v384 = vand.u32 %v24, 4294901760
    %385 = vmatpush1.msra.mxu0 %v384
    %v386 = vand.u32 %v33, 4294901760
    %387 = vmatprep.subr.mxu0 %v386
    %v388 = vand.u32 %v32, 4294901760
    %389 = vmatpush1.msra.mxu0 %v388
    %v390 = vand.u32 %v41, 4294901760
    %391 = vmatprep.subr.mxu0 %v390
    %v392 = vand.u32 %v40, 4294901760
    %393 = vmatpush1.msra.mxu0 %v392
    %394 = vmatprep.subr.mxu0 0.0
    %395 = vmatpush1.msra.mxu0 0.0
    %396 = vmatprep.subr.mxu0 0.0
    %397 = vmatpush1.msra.mxu0 0.0
    %398 = vmatprep.subr.mxu0 0.0
    %399 = vmatpush1.msra.mxu0 0.0
    %400 = vmatprep.subr.mxu0 0.0
    %401 = vmatpush1.msra.mxu0 0.0
    %402 = vmatprep.subr.mxu0 0.0
    %403 = vmatpush1.msra.mxu0 0.0
    %404 = vmatprep.subr.mxu0 0.0
    %405 = vmatpush1.msra.mxu0 0.0
    %406 = vmatprep.subr.mxu0 0.0
    %407 = vmatpush1.msra.mxu0 0.0
    %408 = vmatprep.subr.mxu0 0.0
    %409 = vmatpush1.msra.mxu0 0.0
    %410 = vmatprep.subr.mxu0 0.0
    %411 = vmatpush1.msra.mxu0 0.0
    %412 = vmatprep.subr.mxu0 0.0
    %413 = vmatpush1.msra.mxu0 0.0
    %414 = vmatprep.subr.mxu0 0.0
    %415 = vmatpush1.msra.mxu0 0.0
    %416 = vmatprep.subr.mxu0 0.0
    %417 = vmatpush1.msra.mxu0 0.0
    %418 = vmatprep.subr.mxu0 0.0
    %419 = vmatpush1.msra.mxu0 0.0
    %420 = vmatprep.subr.mxu0 0.0
    %421 = vmatpush1.msra.mxu0 0.0
    %422 = vmatprep.subr.mxu0 0.0
    %423 = vmatpush1.msra.mxu0 0.0
    %424 = vmatprep.subr.mxu0 0.0
    %425 = vmatpush1.msra.mxu0 0.0
    %426 = vmatprep.subr.mxu0 0.0
    %427 = vmatpush1.msra.mxu0 0.0
    %428 = vmatprep.subr.mxu0 0.0
    %429 = vmatpush1.msra.mxu0 0.0
    %430 = vmatprep.subr.mxu0 0.0
    %431 = vmatpush1.msra.mxu0 0.0
    %432 = vmatprep.subr.mxu0 0.0
    %433 = vmatpush1.msra.mxu0 0.0
    %434 = vmatprep.subr.mxu0 0.0
    %435 = vmatpush1.msra.mxu0 0.0
    %436 = vmatprep.subr.mxu0 0.0
    %437 = vmatpush1.msra.mxu0 0.0
    %438 = vmatprep.subr.mxu0 0.0
    %439 = vmatpush1.msra.mxu0 0.0
    %440 = vmatprep.subr.mxu0 0.0
    %441 = vmatpush1.msra.mxu0 0.0
    %442 = vmatprep.subr.mxu0 0.0
    %443 = vmatpush1.msra.mxu0 0.0
    %444 = vmatprep.subr.mxu0 0.0
    %445 = vmatpush1.msra.mxu0 0.0
    %446 = vmatprep.subr.mxu0 0.0
    %447 = vmatpush1.msra.mxu0 0.0
    %448 = vmatprep.subr.mxu0 0.0
    %449 = vmatpush1.msra.mxu0 0.0
    %450 = vmatprep.mubr.f32.mxu0 0.0
    %v451 = vand.u32 %v91, 4294901760
    %v452 = vsub.f32 %v91, %v451
    %v453 = vand.u32 %v452, 4294901760
    %454 = vmatmul.mubr.f32.gmra.mrb[0].mxu0 %v453
    %v455 = vpop.f32.mrb[0].mxu0
    %v456 = vadd.f32 %v374, %v455
    %v457 = vpop.f32.mrb[0].mxu0
    %v458 = vadd.f32 %v376, %v457
    %459 = vdwg.mxu0
    %v460 = vand.u32 %v17, 4294901760
    %v461 = vsub.f32 %v17, %v460
    %v462 = vand.u32 %v461, 4294901760
    %463 = vmatprep.subr.mxu0 %v462
    %v464 = vand.u32 %v16, 4294901760
    %v465 = vsub.f32 %v16, %v464
    %v466 = vand.u32 %v465, 4294901760
    %467 = vmatpush1.msra.mxu0 %v466
    %v468 = vand.u32 %v25, 4294901760
    %v469 = vsub.f32 %v25, %v468
    %v470 = vand.u32 %v469, 4294901760
    %471 = vmatprep.subr.mxu0 %v470
    %v472 = vand.u32 %v24, 4294901760
    %v473 = vsub.f32 %v24, %v472
    %v474 = vand.u32 %v473, 4294901760
    %475 = vmatpush1.msra.mxu0 %v474
    %v476 = vand.u32 %v33, 4294901760
    %v477 = vsub.f32 %v33, %v476
    %v478 = vand.u32 %v477, 4294901760
    %479 = vmatprep.subr.mxu0 %v478
    %v480 = vand.u32 %v32, 4294901760
    %v481 = vsub.f32 %v32, %v480
    %v482 = vand.u32 %v481, 4294901760
    %483 = vmatpush1.msra.mxu0 %v482
    %v484 = vand.u32 %v41, 4294901760
    %v485 = vsub.f32 %v41, %v484
    %v486 = vand.u32 %v485, 4294901760
    %487 = vmatprep.subr.mxu0 %v486
    %v488 = vand.u32 %v40, 4294901760
    %v489 = vsub.f32 %v40, %v488
    %v490 = vand.u32 %v489, 4294901760
    %491 = vmatpush1.msra.mxu0 %v490
    %492 = vmatprep.subr.mxu0 0.0
    %493 = vmatpush1.msra.mxu0 0.0
    %494 = vmatprep.subr.mxu0 0.0
    %495 = vmatpush1.msra.mxu0 0.0
    %496 = vmatprep.subr.mxu0 0.0
    %497 = vmatpush1.msra.mxu0 0.0
    %498 = vmatprep.subr.mxu0 0.0
    %499 = vmatpush1.msra.mxu0 0.0
    %500 = vmatprep.subr.mxu0 0.0
    %501 = vmatpush1.msra.mxu0 0.0
    %502 = vmatprep.subr.mxu0 0.0
    %503 = vmatpush1.msra.mxu0 0.0
    %504 = vmatprep.subr.mxu0 0.0
    %505 = vmatpush1.msra.mxu0 0.0
    %506 = vmatprep.subr.mxu0 0.0
    %507 = vmatpush1.msra.mxu0 0.0
    %508 = vmatprep.subr.mxu0 0.0
    %509 = vmatpush1.msra.mxu0 0.0
    %510 = vmatprep.subr.mxu0 0.0
    %511 = vmatpush1.msra.mxu0 0.0
    %512 = vmatprep.subr.mxu0 0.0
    %513 = vmatpush1.msra.mxu0 0.0
    %514 = vmatprep.subr.mxu0 0.0
    %515 = vmatpush1.msra.mxu0 0.0
    %516 = vmatprep.subr.mxu0 0.0
    %517 = vmatpush1.msra.mxu0 0.0
    %518 = vmatprep.subr.mxu0 0.0
    %519 = vmatpush1.msra.mxu0 0.0
    %520 = vmatprep.subr.mxu0 0.0
    %521 = vmatpush1.msra.mxu0 0.0
    %522 = vmatprep.subr.mxu0 0.0
    %523 = vmatpush1.msra.mxu0 0.0
    %524 = vmatprep.subr.mxu0 0.0
    %525 = vmatpush1.msra.mxu0 0.0
    %526 = vmatprep.subr.mxu0 0.0
    %527 = vmatpush1.msra.mxu0 0.0
    %528 = vmatprep.subr.mxu0 0.0
    %529 = vmatpush1.msra.mxu0 0.0
    %530 = vmatprep.subr.mxu0 0.0
    %531 = vmatpush1.msra.mxu0 0.0
    %532 = vmatprep.subr.mxu0 0.0
    %533 = vmatpush1.msra.mxu0 0.0
    %534 = vmatprep.subr.mxu0 0.0
    %535 = vmatpush1.msra.mxu0 0.0
    %536 = vmatprep.subr.mxu0 0.0
    %537 = vmatpush1.msra.mxu0 0.0
    %538 = vmatprep.subr.mxu0 0.0
    %539 = vmatpush1.msra.mxu0 0.0
    %540 = vmatprep.subr.mxu0 0.0
    %541 = vmatpush1.msra.mxu0 0.0
    %542 = vmatprep.subr.mxu0 0.0
    %543 = vmatpush1.msra.mxu0 0.0
    %544 = vmatprep.subr.mxu0 0.0
    %545 = vmatpush1.msra.mxu0 0.0
    %546 = vmatprep.subr.mxu0 0.0
    %547 = vmatpush1.msra.mxu0 0.0
    %548 = vmatprep.mubr.f32.mxu0 0.0
    %v549 = vand.u32 %v91, 4294901760
    %550 = vmatmul.mubr.f32.gmra.mrb[0].mxu0 %v549
    %v551 = vpop.f32.mrb[0].mxu0
    %v552 = vadd.f32 %v456, %v551
    %v553 = vpop.f32.mrb[0].mxu0
    %v554 = vadd.f32 %v458, %v553
    %555 = vdwg.mxu0
    %v556 = vand.u32 %v17, 4294901760
    %557 = vmatprep.subr.mxu0 %v556
    %v558 = vand.u32 %v16, 4294901760
    %559 = vmatpush1.msra.mxu0 %v558
    %v560 = vand.u32 %v25, 4294901760
    %561 = vmatprep.subr.mxu0 %v560
    %v562 = vand.u32 %v24, 4294901760
    %563 = vmatpush1.msra.mxu0 %v562
    %v564 = vand.u32 %v33, 4294901760
    %565 = vmatprep.subr.mxu0 %v564
    %v566 = vand.u32 %v32, 4294901760
    %567 = vmatpush1.msra.mxu0 %v566
    %v568 = vand.u32 %v41, 4294901760
    %569 = vmatprep.subr.mxu0 %v568
    %v570 = vand.u32 %v40, 4294901760
    %571 = vmatpush1.msra.mxu0 %v570
    %572 = vmatprep.subr.mxu0 0.0
    %573 = vmatpush1.msra.mxu0 0.0
    %574 = vmatprep.subr.mxu0 0.0
    %575 = vmatpush1.msra.mxu0 0.0
    %576 = vmatprep.subr.mxu0 0.0
    %577 = vmatpush1.msra.mxu0 0.0
    %578 = vmatprep.subr.mxu0 0.0
    %579 = vmatpush1.msra.mxu0 0.0
    %580 = vmatprep.subr.mxu0 0.0
    %581 = vmatpush1.msra.mxu0 0.0
    %582 = vmatprep.subr.mxu0 0.0
    %583 = vmatpush1.msra.mxu0 0.0
    %584 = vmatprep.subr.mxu0 0.0
    %585 = vmatpush1.msra.mxu0 0.0
    %586 = vmatprep.subr.mxu0 0.0
    %587 = vmatpush1.msra.mxu0 0.0
    %588 = vmatprep.subr.mxu0 0.0
    %589 = vmatpush1.msra.mxu0 0.0
    %590 = vmatprep.subr.mxu0 0.0
    %591 = vmatpush1.msra.mxu0 0.0
    %592 = vmatprep.subr.mxu0 0.0
    %593 = vmatpush1.msra.mxu0 0.0
    %594 = vmatprep.subr.mxu0 0.0
    %595 = vmatpush1.msra.mxu0 0.0
    %596 = vmatprep.subr.mxu0 0.0
    %597 = vmatpush1.msra.mxu0 0.0
    %598 = vmatprep.subr.mxu0 0.0
    %599 = vmatpush1.msra.mxu0 0.0
    %600 = vmatprep.subr.mxu0 0.0
    %601 = vmatpush1.msra.mxu0 0.0
    %602 = vmatprep.subr.mxu0 0.0
    %603 = vmatpush1.msra.mxu0 0.0
    %604 = vmatprep.subr.mxu0 0.0
    %605 = vmatpush1.msra.mxu0 0.0
    %606 = vmatprep.subr.mxu0 0.0
    %607 = vmatpush1.msra.mxu0 0.0
    %608 = vmatprep.subr.mxu0 0.0
    %609 = vmatpush1.msra.mxu0 0.0
    %610 = vmatprep.subr.mxu0 0.0
    %611 = vmatpush1.msra.mxu0 0.0
    %612 = vmatprep.subr.mxu0 0.0
    %613 = vmatpush1.msra.mxu0 0.0
    %614 = vmatprep.subr.mxu0 0.0
    %615 = vmatpush1.msra.mxu0 0.0
    %616 = vmatprep.subr.mxu0 0.0
    %617 = vmatpush1.msra.mxu0 0.0
    %618 = vmatprep.subr.mxu0 0.0
    %619 = vmatpush1.msra.mxu0 0.0
    %620 = vmatprep.subr.mxu0 0.0
    %621 = vmatpush1.msra.mxu0 0.0
    %622 = vmatprep.subr.mxu0 0.0
    %623 = vmatpush1.msra.mxu0 0.0
    %624 = vmatprep.subr.mxu0 0.0
    %625 = vmatpush1.msra.mxu0 0.0
    %626 = vmatprep.subr.mxu0 0.0
    %627 = vmatpush1.msra.mxu0 0.0
    %628 = vmatprep.mubr.f32.mxu0 0.0
    %v629 = vand.u32 %v91, 4294901760
    %630 = vmatmul.mubr.f32.gmra.mrb[0].mxu0 %v629
    %v631 = vpop.f32.mrb[0].mxu0
    %v632 = vadd.f32 %v552, %v631
    %v633 = vpop.f32.mrb[0].mxu0
    %v634 = vadd.f32 %v554, %v633
    %635 = vdwg.mxu0
    %v636 = vand.u32 %v19, 4294901760
    %637 = vmatprep.subr.mxu0 %v636
    %v638 = vand.u32 %v18, 4294901760
    %639 = vmatpush1.msra.mxu0 %v638
    %v640 = vand.u32 %v27, 4294901760
    %641 = vmatprep.subr.mxu0 %v640
    %v642 = vand.u32 %v26, 4294901760
    %643 = vmatpush1.msra.mxu0 %v642
    %v644 = vand.u32 %v35, 4294901760
    %645 = vmatprep.subr.mxu0 %v644
    %v646 = vand.u32 %v34, 4294901760
    %647 = vmatpush1.msra.mxu0 %v646
    %v648 = vand.u32 %v43, 4294901760
    %649 = vmatprep.subr.mxu0 %v648
    %v650 = vand.u32 %v42, 4294901760
    %651 = vmatpush1.msra.mxu0 %v650
    %652 = vmatprep.subr.mxu0 0.0
    %653 = vmatpush1.msra.mxu0 0.0
    %654 = vmatprep.subr.mxu0 0.0
    %655 = vmatpush1.msra.mxu0 0.0
    %656 = vmatprep.subr.mxu0 0.0
    %657 = vmatpush1.msra.mxu0 0.0
    %658 = vmatprep.subr.mxu0 0.0
    %659 = vmatpush1.msra.mxu0 0.0
    %660 = vmatprep.subr.mxu0 0.0
    %661 = vmatpush1.msra.mxu0 0.0
    %662 = vmatprep.subr.mxu0 0.0
    %663 = vmatpush1.msra.mxu0 0.0
    %664 = vmatprep.subr.mxu0 0.0
    %665 = vmatpush1.msra.mxu0 0.0
    %666 = vmatprep.subr.mxu0 0.0
    %667 = vmatpush1.msra.mxu0 0.0
    %668 = vmatprep.subr.mxu0 0.0
    %669 = vmatpush1.msra.mxu0 0.0
    %670 = vmatprep.subr.mxu0 0.0
    %671 = vmatpush1.msra.mxu0 0.0
    %672 = vmatprep.subr.mxu0 0.0
    %673 = vmatpush1.msra.mxu0 0.0
    %674 = vmatprep.subr.mxu0 0.0
    %675 = vmatpush1.msra.mxu0 0.0
    %676 = vmatprep.subr.mxu0 0.0
    %677 = vmatpush1.msra.mxu0 0.0
    %678 = vmatprep.subr.mxu0 0.0
    %679 = vmatpush1.msra.mxu0 0.0
    %680 = vmatprep.subr.mxu0 0.0
    %681 = vmatpush1.msra.mxu0 0.0
    %682 = vmatprep.subr.mxu0 0.0
    %683 = vmatpush1.msra.mxu0 0.0
    %684 = vmatprep.subr.mxu0 0.0
    %685 = vmatpush1.msra.mxu0 0.0
    %686 = vmatprep.subr.mxu0 0.0
    %687 = vmatpush1.msra.mxu0 0.0
    %688 = vmatprep.subr.mxu0 0.0
    %689 = vmatpush1.msra.mxu0 0.0
    %690 = vmatprep.subr.mxu0 0.0
    %691 = vmatpush1.msra.mxu0 0.0
    %692 = vmatprep.subr.mxu0 0.0
    %693 = vmatpush1.msra.mxu0 0.0
    %694 = vmatprep.subr.mxu0 0.0
    %695 = vmatpush1.msra.mxu0 0.0
    %696 = vmatprep.subr.mxu0 0.0
    %697 = vmatpush1.msra.mxu0 0.0
    %698 = vmatprep.subr.mxu0 0.0
    %699 = vmatpush1.msra.mxu0 0.0
    %700 = vmatprep.subr.mxu0 0.0
    %701 = vmatpush1.msra.mxu0 0.0
    %702 = vmatprep.subr.mxu0 0.0
    %703 = vmatpush1.msra.mxu0 0.0
    %704 = vmatprep.subr.mxu0 0.0
    %705 = vmatpush1.msra.mxu0 0.0
    %706 = vmatprep.subr.mxu0 0.0
    %707 = vmatpush1.msra.mxu0 0.0
    %708 = vmatprep.mubr.f32.mxu0 0.0
    %v709 = vand.u32 %v91, 4294901760
    %v710 = vsub.f32 %v91, %v709
    %v711 = vand.u32 %v710, 4294901760
    %v712 = vsub.f32 %v710, %v711
    %v713 = vand.u32 %v712, 4294901760
    %714 = vmatmul.mubr.f32.gmra.mrb[0].mxu0 %v713
    %v715 = vpop.f32.mrb[0].mxu0
    %v716 = vadd.f32 %v60, %v715
    %v717 = vpop.f32.mrb[0].mxu0
    %v718 = vadd.f32 %v64, %v717
    %719 = vdwg.mxu0
    %v720 = vand.u32 %v19, 4294901760
    %v721 = vsub.f32 %v19, %v720
    %v722 = vand.u32 %v721, 4294901760
    %v723 = vsub.f32 %v721, %v722
    %v724 = vand.u32 %v723, 4294901760
    %725 = vmatprep.subr.mxu0 %v724
    %v726 = vand.u32 %v18, 4294901760
    %v727 = vsub.f32 %v18, %v726
    %v728 = vand.u32 %v727, 4294901760
    %v729 = vsub.f32 %v727, %v728
    %v730 = vand.u32 %v729, 4294901760
    %731 = vmatpush1.msra.mxu0 %v730
    %v732 = vand.u32 %v27, 4294901760
    %v733 = vsub.f32 %v27, %v732
    %v734 = vand.u32 %v733, 4294901760
    %v735 = vsub.f32 %v733, %v734
    %v736 = vand.u32 %v735, 4294901760
    %737 = vmatprep.subr.mxu0 %v736
    %v738 = vand.u32 %v26, 4294901760
    %v739 = vsub.f32 %v26, %v738
    %v740 = vand.u32 %v739, 4294901760
    %v741 = vsub.f32 %v739, %v740
    %v742 = vand.u32 %v741, 4294901760
    %743 = vmatpush1.msra.mxu0 %v742
    %v744 = vand.u32 %v35, 4294901760
    %v745 = vsub.f32 %v35, %v744
    %v746 = vand.u32 %v745, 4294901760
    %v747 = vsub.f32 %v745, %v746
    %v748 = vand.u32 %v747, 4294901760
    %749 = vmatprep.subr.mxu0 %v748
    %v750 = vand.u32 %v34, 4294901760
    %v751 = vsub.f32 %v34, %v750
    %v752 = vand.u32 %v751, 4294901760
    %v753 = vsub.f32 %v751, %v752
    %v754 = vand.u32 %v753, 4294901760
    %755 = vmatpush1.msra.mxu0 %v754
    %v756 = vand.u32 %v43, 4294901760
    %v757 = vsub.f32 %v43, %v756
    %v758 = vand.u32 %v757, 4294901760
    %v759 = vsub.f32 %v757, %v758
    %v760 = vand.u32 %v759, 4294901760
    %761 = vmatprep.subr.mxu0 %v760
    %v762 = vand.u32 %v42, 4294901760
    %v763 = vsub.f32 %v42, %v762
    %v764 = vand.u32 %v763, 4294901760
    %v765 = vsub.f32 %v763, %v764
    %v766 = vand.u32 %v765, 4294901760
    %767 = vmatpush1.msra.mxu0 %v766
    %768 = vmatprep.subr.mxu0 0.0
    %769 = vmatpush1.msra.mxu0 0.0
    %770 = vmatprep.subr.mxu0 0.0
    %771 = vmatpush1.msra.mxu0 0.0
    %772 = vmatprep.subr.mxu0 0.0
    %773 = vmatpush1.msra.mxu0 0.0
    %774 = vmatprep.subr.mxu0 0.0
    %775 = vmatpush1.msra.mxu0 0.0
    %776 = vmatprep.subr.mxu0 0.0
    %777 = vmatpush1.msra.mxu0 0.0
    %778 = vmatprep.subr.mxu0 0.0
    %779 = vmatpush1.msra.mxu0 0.0
    %780 = vmatprep.subr.mxu0 0.0
    %781 = vmatpush1.msra.mxu0 0.0
    %782 = vmatprep.subr.mxu0 0.0
    %783 = vmatpush1.msra.mxu0 0.0
    %784 = vmatprep.subr.mxu0 0.0
    %785 = vmatpush1.msra.mxu0 0.0
    %786 = vmatprep.subr.mxu0 0.0
    %787 = vmatpush1.msra.mxu0 0.0
    %788 = vmatprep.subr.mxu0 0.0
    %789 = vmatpush1.msra.mxu0 0.0
    %790 = vmatprep.subr.mxu0 0.0
    %791 = vmatpush1.msra.mxu0 0.0
    %792 = vmatprep.subr.mxu0 0.0
    %793 = vmatpush1.msra.mxu0 0.0
    %794 = vmatprep.subr.mxu0 0.0
    %795 = vmatpush1.msra.mxu0 0.0
    %796 = vmatprep.subr.mxu0 0.0
    %797 = vmatpush1.msra.mxu0 0.0
    %798 = vmatprep.subr.mxu0 0.0
    %799 = vmatpush1.msra.mxu0 0.0
    %800 = vmatprep.subr.mxu0 0.0
    %801 = vmatpush1.msra.mxu0 0.0
    %802 = vmatprep.subr.mxu0 0.0
    %803 = vmatpush1.msra.mxu0 0.0
    %804 = vmatprep.subr.mxu0 0.0
    %805 = vmatpush1.msra.mxu0 0.0
    %806 = vmatprep.subr.mxu0 0.0
    %807 = vmatpush1.msra.mxu0 0.0
    %808 = vmatprep.subr.mxu0 0.0
    %809 = vmatpush1.msra.mxu0 0.0
    %810 = vmatprep.subr.mxu0 0.0
    %811 = vmatpush1.msra.mxu0 0.0
    %812 = vmatprep.subr.mxu0 0.0
    %813 = vmatpush1.msra.mxu0 0.0
    %814 = vmatprep.subr.mxu0 0.0
    %815 = vmatpush1.msra.mxu0 0.0
    %816 = vmatprep.subr.mxu0 0.0
    %817 = vmatpush1.msra.mxu0 0.0
    %818 = vmatprep.subr.mxu0 0.0
    %819 = vmatpush1.msra.mxu0 0.0
    %820 = vmatprep.subr.mxu0 0.0
    %821 = vmatpush1.msra.mxu0 0.0
    %822 = vmatprep.subr.mxu0 0.0
    %823 = vmatpush1.msra.mxu0 0.0
    %824 = vmatprep.mubr.f32.mxu0 0.0
    %v825 = vand.u32 %v91, 4294901760
    %826 = vmatmul.mubr.f32.gmra.mrb[0].mxu0 %v825
    %v827 = vpop.f32.mrb[0].mxu0
    %v828 = vadd.f32 %v716, %v827
    %v829 = vpop.f32.mrb[0].mxu0
    %v830 = vadd.f32 %v718, %v829
    %831 = vdwg.mxu0
    %v832 = vand.u32 %v19, 4294901760
    %v833 = vsub.f32 %v19, %v832
    %834 = vmatprep.subr.mxu0 %v833
    %v835 = vand.u32 %v18, 4294901760
    %v836 = vsub.f32 %v18, %v835
    %837 = vmatpush1.msra.mxu0 %v836
    %v838 = vand.u32 %v27, 4294901760
    %v839 = vsub.f32 %v27, %v838
    %840 = vmatprep.subr.mxu0 %v839
    %v841 = vand.u32 %v26, 4294901760
    %v842 = vsub.f32 %v26, %v841
    %843 = vmatpush1.msra.mxu0 %v842
    %v844 = vand.u32 %v35, 4294901760
    %v845 = vsub.f32 %v35, %v844
    %846 = vmatprep.subr.mxu0 %v845
    %v847 = vand.u32 %v34, 4294901760
    %v848 = vsub.f32 %v34, %v847
    %849 = vmatpush1.msra.mxu0 %v848
    %v850 = vand.u32 %v43, 4294901760
    %v851 = vsub.f32 %v43, %v850
    %852 = vmatprep.subr.mxu0 %v851
    %v853 = vand.u32 %v42, 4294901760
    %v854 = vsub.f32 %v42, %v853
    %855 = vmatpush1.msra.mxu0 %v854
    %856 = vmatprep.subr.mxu0 0.0
    %857 = vmatpush1.msra.mxu0 0.0
    %858 = vmatprep.subr.mxu0 0.0
    %859 = vmatpush1.msra.mxu0 0.0
    %860 = vmatprep.subr.mxu0 0.0
    %861 = vmatpush1.msra.mxu0 0.0
    %862 = vmatprep.subr.mxu0 0.0
    %863 = vmatpush1.msra.mxu0 0.0
    %864 = vmatprep.subr.mxu0 0.0
    %865 = vmatpush1.msra.mxu0 0.0
    %866 = vmatprep.subr.mxu0 0.0
    %867 = vmatpush1.msra.mxu0 0.0
    %868 = vmatprep.subr.mxu0 0.0
    %869 = vmatpush1.msra.mxu0 0.0
    %870 = vmatprep.subr.mxu0 0.0
    %871 = vmatpush1.msra.mxu0 0.0
    %872 = vmatprep.subr.mxu0 0.0
    %873 = vmatpush1.msra.mxu0 0.0
    %874 = vmatprep.subr.mxu0 0.0
    %875 = vmatpush1.msra.mxu0 0.0
    %876 = vmatprep.subr.mxu0 0.0
    %877 = vmatpush1.msra.mxu0 0.0
    %878 = vmatprep.subr.mxu0 0.0
    %879 = vmatpush1.msra.mxu0 0.0
    %880 = vmatprep.subr.mxu0 0.0
    %881 = vmatpush1.msra.mxu0 0.0
    %882 = vmatprep.subr.mxu0 0.0
    %883 = vmatpush1.msra.mxu0 0.0
    %884 = vmatprep.subr.mxu0 0.0
    %885 = vmatpush1.msra.mxu0 0.0
    %886 = vmatprep.subr.mxu0 0.0
    %887 = vmatpush1.msra.mxu0 0.0
    %888 = vmatprep.subr.mxu0 0.0
    %889 = vmatpush1.msra.mxu0 0.0
    %890 = vmatprep.subr.mxu0 0.0
    %891 = vmatpush1.msra.mxu0 0.0
    %892 = vmatprep.subr.mxu0 0.0
    %893 = vmatpush1.msra.mxu0 0.0
    %894 = vmatprep.subr.mxu0 0.0
    %895 = vmatpush1.msra.mxu0 0.0
    %896 = vmatprep.subr.mxu0 0.0
    %897 = vmatpush1.msra.mxu0 0.0
    %898 = vmatprep.subr.mxu0 0.0
    %899 = vmatpush1.msra.mxu0 0.0
    %900 = vmatprep.subr.mxu0 0.0
    %901 = vmatpush1.msra.mxu0 0.0
    %902 = vmatprep.subr.mxu0 0.0
    %903 = vmatpush1.msra.mxu0 0.0
    %904 = vmatprep.subr.mxu0 0.0
    %905 = vmatpush1.msra.mxu0 0.0
    %906 = vmatprep.subr.mxu0 0.0
    %907 = vmatpush1.msra.mxu0 0.0
    %908 = vmatprep.subr.mxu0 0.0
    %909 = vmatpush1.msra.mxu0 0.0
    %910 = vmatprep.subr.mxu0 0.0
    %911 = vmatpush1.msra.mxu0 0.0
    %912 = vmatprep.mubr.f32.mxu0 0.0
    %v913 = vand.u32 %v91, 4294901760
    %v914 = vsub.f32 %v91, %v913
    %915 = vmatmul.mubr.f32.gmra.mrb[0].mxu0 %v914
    %v916 = vpop.f32.mrb[0].mxu0
    %v917 = vadd.f32 %v828, %v916
    %v918 = vpop.f32.mrb[0].mxu0
    %v919 = vadd.f32 %v830, %v918
    %920 = vdwg.mxu0
    %v921 = vand.u32 %v19, 4294901760
    %922 = vmatprep.subr.mxu0 %v921
    %v923 = vand.u32 %v18, 4294901760
    %924 = vmatpush1.msra.mxu0 %v923
    %v925 = vand.u32 %v27, 4294901760
    %926 = vmatprep.subr.mxu0 %v925
    %v927 = vand.u32 %v26, 4294901760
    %928 = vmatpush1.msra.mxu0 %v927
    %v929 = vand.u32 %v35, 4294901760
    %930 = vmatprep.subr.mxu0 %v929
    %v931 = vand.u32 %v34, 4294901760
    %932 = vmatpush1.msra.mxu0 %v931
    %v933 = vand.u32 %v43, 4294901760
    %934 = vmatprep.subr.mxu0 %v933
    %v935 = vand.u32 %v42, 4294901760
    %936 = vmatpush1.msra.mxu0 %v935
    %937 = vmatprep.subr.mxu0 0.0
    %938 = vmatpush1.msra.mxu0 0.0
    %939 = vmatprep.subr.mxu0 0.0
    %940 = vmatpush1.msra.mxu0 0.0
    %941 = vmatprep.subr.mxu0 0.0
    %942 = vmatpush1.msra.mxu0 0.0
    %943 = vmatprep.subr.mxu0 0.0
    %944 = vmatpush1.msra.mxu0 0.0
    %945 = vmatprep.subr.mxu0 0.0
    %946 = vmatpush1.msra.mxu0 0.0
    %947 = vmatprep.subr.mxu0 0.0
    %948 = vmatpush1.msra.mxu0 0.0
    %949 = vmatprep.subr.mxu0 0.0
    %950 = vmatpush1.msra.mxu0 0.0
    %951 = vmatprep.subr.mxu0 0.0
    %952 = vmatpush1.msra.mxu0 0.0
    %953 = vmatprep.subr.mxu0 0.0
    %954 = vmatpush1.msra.mxu0 0.0
    %955 = vmatprep.subr.mxu0 0.0
    %956 = vmatpush1.msra.mxu0 0.0
    %957 = vmatprep.subr.mxu0 0.0
    %958 = vmatpush1.msra.mxu0 0.0
    %959 = vmatprep.subr.mxu0 0.0
    %960 = vmatpush1.msra.mxu0 0.0
    %961 = vmatprep.subr.mxu0 0.0
    %962 = vmatpush1.msra.mxu0 0.0
    %963 = vmatprep.subr.mxu0 0.0
    %964 = vmatpush1.msra.mxu0 0.0
    %965 = vmatprep.subr.mxu0 0.0
    %966 = vmatpush1.msra.mxu0 0.0
    %967 = vmatprep.subr.mxu0 0.0
    %968 = vmatpush1.msra.mxu0 0.0
    %969 = vmatprep.subr.mxu0 0.0
    %970 = vmatpush1.msra.mxu0 0.0
    %971 = vmatprep.subr.mxu0 0.0
    %972 = vmatpush1.msra.mxu0 0.0
    %973 = vmatprep.subr.mxu0 0.0
    %974 = vmatpush1.msra.mxu0 0.0
    %975 = vmatprep.subr.mxu0 0.0
    %976 = vmatpush1.msra.mxu0 0.0
    %977 = vmatprep.subr.mxu0 0.0
    %978 = vmatpush1.msra.mxu0 0.0
    %979 = vmatprep.subr.mxu0 0.0
    %980 = vmatpush1.msra.mxu0 0.0
    %981 = vmatprep.subr.mxu0 0.0
    %982 = vmatpush1.msra.mxu0 0.0
    %983 = vmatprep.subr.mxu0 0.0
    %984 = vmatpush1.msra.mxu0 0.0
    %985 = vmatprep.subr.mxu0 0.0
    %986 = vmatpush1.msra.mxu0 0.0
    %987 = vmatprep.subr.mxu0 0.0
    %988 = vmatpush1.msra.mxu0 0.0
    %989 = vmatprep.subr.mxu0 0.0
    %990 = vmatpush1.msra.mxu0 0.0
    %991 = vmatprep.subr.mxu0 0.0
    %992 = vmatpush1.msra.mxu0 0.0
    %993 = vmatprep.mubr.f32.mxu0 0.0
    %v994 = vand.u32 %v91, 4294901760
    %v995 = vsub.f32 %v91, %v994
    %v996 = vand.u32 %v995, 4294901760
    %997 = vmatmul.mubr.f32.gmra.mrb[0].mxu0 %v996
    %v998 = vpop.f32.mrb[0].mxu0
    %v999 = vadd.f32 %v917, %v998
    %v1000 = vpop.f32.mrb[0].mxu0
    %v1001 = vadd.f32 %v919, %v1000
    %1002 = vdwg.mxu0
    %v1003 = vand.u32 %v19, 4294901760
    %v1004 = vsub.f32 %v19, %v1003
    %v1005 = vand.u32 %v1004, 4294901760
    %1006 = vmatprep.subr.mxu0 %v1005
    %v1007 = vand.u32 %v18, 4294901760
    %v1008 = vsub.f32 %v18, %v1007
    %v1009 = vand.u32 %v1008, 4294901760
    %1010 = vmatpush1.msra.mxu0 %v1009
    %v1011 = vand.u32 %v27, 4294901760
    %v1012 = vsub.f32 %v27, %v1011
    %v1013 = vand.u32 %v1012, 4294901760
    %1014 = vmatprep.subr.mxu0 %v1013
    %v1015 = vand.u32 %v26, 4294901760
    %v1016 = vsub.f32 %v26, %v1015
    %v1017 = vand.u32 %v1016, 4294901760
    %1018 = vmatpush1.msra.mxu0 %v1017
    %v1019 = vand.u32 %v35, 4294901760
    %v1020 = vsub.f32 %v35, %v1019
    %v1021 = vand.u32 %v1020, 4294901760
    %1022 = vmatprep.subr.mxu0 %v1021
    %v1023 = vand.u32 %v34, 4294901760
    %v1024 = vsub.f32 %v34, %v1023
    %v1025 = vand.u32 %v1024, 4294901760
    %1026 = vmatpush1.msra.mxu0 %v1025
    %v1027 = vand.u32 %v43, 4294901760
    %v1028 = vsub.f32 %v43, %v1027
    %v1029 = vand.u32 %v1028, 4294901760
    %1030 = vmatprep.subr.mxu0 %v1029
    %v1031 = vand.u32 %v42, 4294901760
    %v1032 = vsub.f32 %v42, %v1031
    %v1033 = vand.u32 %v1032, 4294901760
    %1034 = vmatpush1.msra.mxu0 %v1033
    %1035 = vmatprep.subr.mxu0 0.0
    %1036 = vmatpush1.msra.mxu0 0.0
    %1037 = vmatprep.subr.mxu0 0.0
    %1038 = vmatpush1.msra.mxu0 0.0
    %1039 = vmatprep.subr.mxu0 0.0
    %1040 = vmatpush1.msra.mxu0 0.0
    %1041 = vmatprep.subr.mxu0 0.0
    %1042 = vmatpush1.msra.mxu0 0.0
    %1043 = vmatprep.subr.mxu0 0.0
    %1044 = vmatpush1.msra.mxu0 0.0
    %1045 = vmatprep.subr.mxu0 0.0
    %1046 = vmatpush1.msra.mxu0 0.0
    %1047 = vmatprep.subr.mxu0 0.0
    %1048 = vmatpush1.msra.mxu0 0.0
    %1049 = vmatprep.subr.mxu0 0.0
    %1050 = vmatpush1.msra.mxu0 0.0
    %1051 = vmatprep.subr.mxu0 0.0
    %1052 = vmatpush1.msra.mxu0 0.0
    %1053 = vmatprep.subr.mxu0 0.0
    %1054 = vmatpush1.msra.mxu0 0.0
    %1055 = vmatprep.subr.mxu0 0.0
    %1056 = vmatpush1.msra.mxu0 0.0
    %1057 = vmatprep.subr.mxu0 0.0
    %1058 = vmatpush1.msra.mxu0 0.0
    %1059 = vmatprep.subr.mxu0 0.0
    %1060 = vmatpush1.msra.mxu0 0.0
    %1061 = vmatprep.subr.mxu0 0.0
    %1062 = vmatpush1.msra.mxu0 0.0
    %1063 = vmatprep.subr.mxu0 0.0
    %1064 = vmatpush1.msra.mxu0 0.0
    %1065 = vmatprep.subr.mxu0 0.0
    %1066 = vmatpush1.msra.mxu0 0.0
    %1067 = vmatprep.subr.mxu0 0.0
    %1068 = vmatpush1.msra.mxu0 0.0
    %1069 = vmatprep.subr.mxu0 0.0
    %1070 = vmatpush1.msra.mxu0 0.0
    %1071 = vmatprep.subr.mxu0 0.0
    %1072 = vmatpush1.msra.mxu0 0.0
    %1073 = vmatprep.subr.mxu0 0.0
    %1074 = vmatpush1.msra.mxu0 0.0
    %1075 = vmatprep.subr.mxu0 0.0
    %1076 = vmatpush1.msra.mxu0 0.0
    %1077 = vmatprep.subr.mxu0 0.0
    %1078 = vmatpush1.msra.mxu0 0.0
    %1079 = vmatprep.subr.mxu0 0.0
    %1080 = vmatpush1.msra.mxu0 0.0
    %1081 = vmatprep.subr.mxu0 0.0
    %1082 = vmatpush1.msra.mxu0 0.0
    %1083 = vmatprep.subr.mxu0 0.0
    %1084 = vmatpush1.msra.mxu0 0.0
    %1085 = vmatprep.subr.mxu0 0.0
    %1086 = vmatpush1.msra.mxu0 0.0
    %1087 = vmatprep.subr.mxu0 0.0
    %1088 = vmatpush1.msra.mxu0 0.0
    %1089 = vmatprep.subr.mxu0 0.0
    %1090 = vmatpush1.msra.mxu0 0.0
    %1091 = vmatprep.mubr.f32.mxu0 0.0
    %v1092 = vand.u32 %v91, 4294901760
    %1093 = vmatmul.mubr.f32.gmra.mrb[0].mxu0 %v1092
    %v1094 = vpop.f32.mrb[0].mxu0
    %v1095 = vadd.f32 %v999, %v1094
    %v1096 = vpop.f32.mrb[0].mxu0
    %v1097 = vadd.f32 %v1001, %v1096
    %1098 = vdwg.mxu0
    %v1099 = vand.u32 %v19, 4294901760
    %1100 = vmatprep.subr.mxu0 %v1099
    %v1101 = vand.u32 %v18, 4294901760
    %1102 = vmatpush1.msra.mxu0 %v1101
    %v1103 = vand.u32 %v27, 4294901760
    %1104 = vmatprep.subr.mxu0 %v1103
    %v1105 = vand.u32 %v26, 4294901760
    %1106 = vmatpush1.msra.mxu0 %v1105
    %v1107 = vand.u32 %v35, 4294901760
    %1108 = vmatprep.subr.mxu0 %v1107
    %v1109 = vand.u32 %v34, 4294901760
    %1110 = vmatpush1.msra.mxu0 %v1109
    %v1111 = vand.u32 %v43, 4294901760
    %1112 = vmatprep.subr.mxu0 %v1111
    %v1113 = vand.u32 %v42, 4294901760
    %1114 = vmatpush1.msra.mxu0 %v1113
    %1115 = vmatprep.subr.mxu0 0.0
    %1116 = vmatpush1.msra.mxu0 0.0
    %1117 = vmatprep.subr.mxu0 0.0
    %1118 = vmatpush1.msra.mxu0 0.0
    %1119 = vmatprep.subr.mxu0 0.0
    %1120 = vmatpush1.msra.mxu0 0.0
    %1121 = vmatprep.subr.mxu0 0.0
    %1122 = vmatpush1.msra.mxu0 0.0
    %1123 = vmatprep.subr.mxu0 0.0
    %1124 = vmatpush1.msra.mxu0 0.0
    %1125 = vmatprep.subr.mxu0 0.0
    %1126 = vmatpush1.msra.mxu0 0.0
    %1127 = vmatprep.subr.mxu0 0.0
    %1128 = vmatpush1.msra.mxu0 0.0
    %1129 = vmatprep.subr.mxu0 0.0
    %1130 = vmatpush1.msra.mxu0 0.0
    %1131 = vmatprep.subr.mxu0 0.0
    %1132 = vmatpush1.msra.mxu0 0.0
    %1133 = vmatprep.subr.mxu0 0.0
    %1134 = vmatpush1.msra.mxu0 0.0
    %1135 = vmatprep.subr.mxu0 0.0
    %1136 = vmatpush1.msra.mxu0 0.0
    %1137 = vmatprep.subr.mxu0 0.0
    %1138 = vmatpush1.msra.mxu0 0.0
    %1139 = vmatprep.subr.mxu0 0.0
    %1140 = vmatpush1.msra.mxu0 0.0
    %1141 = vmatprep.subr.mxu0 0.0
    %1142 = vmatpush1.msra.mxu0 0.0
    %1143 = vmatprep.subr.mxu0 0.0
    %1144 = vmatpush1.msra.mxu0 0.0
    %1145 = vmatprep.subr.mxu0 0.0
    %1146 = vmatpush1.msra.mxu0 0.0
    %1147 = vmatprep.subr.mxu0 0.0
    %1148 = vmatpush1.msra.mxu0 0.0
    %1149 = vmatprep.subr.mxu0 0.0
    %1150 = vmatpush1.msra.mxu0 0.0
    %1151 = vmatprep.subr.mxu0 0.0
    %1152 = vmatpush1.msra.mxu0 0.0
    %1153 = vmatprep.subr.mxu0 0.0
    %1154 = vmatpush1.msra.mxu0 0.0
    %1155 = vmatprep.subr.mxu0 0.0
    %1156 = vmatpush1.msra.mxu0 0.0
    %1157 = vmatprep.subr.mxu0 0.0
    %1158 = vmatpush1.msra.mxu0 0.0
    %1159 = vmatprep.subr.mxu0 0.0
    %1160 = vmatpush1.msra.mxu0 0.0
    %1161 = vmatprep.subr.mxu0 0.0
    %1162 = vmatpush1.msra.mxu0 0.0
    %1163 = vmatprep.subr.mxu0 0.0
    %1164 = vmatpush1.msra.mxu0 0.0
    %1165 = vmatprep.subr.mxu0 0.0
    %1166 = vmatpush1.msra.mxu0 0.0
    %1167 = vmatprep.subr.mxu0 0.0
    %1168 = vmatpush1.msra.mxu0 0.0
    %1169 = vmatprep.subr.mxu0 0.0
    %1170 = vmatpush1.msra.mxu0 0.0
    %1171 = vmatprep.mubr.f32.mxu0 0.0
    %v1172 = vand.u32 %v91, 4294901760
    %1173 = vmatmul.mubr.f32.gmra.mrb[0].mxu0 %v1172
    %v1174 = vpop.f32.mrb[0].mxu0
    %v1175 = vadd.f32 %v1095, %v1174
    %v1176 = vpop.f32.mrb[0].mxu0
    %v1177 = vadd.f32 %v1097, %v1176
    %1178 = vdwg.mxu0
    %v1179 = vand.u32 %v21, 4294901760
    %1180 = vmatprep.subr.mxu0 %v1179
    %v1181 = vand.u32 %v20, 4294901760
    %1182 = vmatpush1.msra.mxu0 %v1181
    %v1183 = vand.u32 %v29, 4294901760
    %1184 = vmatprep.subr.mxu0 %v1183
    %v1185 = vand.u32 %v28, 4294901760
    %1186 = vmatpush1.msra.mxu0 %v1185
    %v1187 = vand.u32 %v37, 4294901760
    %1188 = vmatprep.subr.mxu0 %v1187
    %v1189 = vand.u32 %v36, 4294901760
    %1190 = vmatpush1.msra.mxu0 %v1189
    %v1191 = vand.u32 %v45, 4294901760
    %1192 = vmatprep.subr.mxu0 %v1191
    %v1193 = vand.u32 %v44, 4294901760
    %1194 = vmatpush1.msra.mxu0 %v1193
    %1195 = vmatprep.subr.mxu0 0.0
    %1196 = vmatpush1.msra.mxu0 0.0
    %1197 = vmatprep.subr.mxu0 0.0
    %1198 = vmatpush1.msra.mxu0 0.0
    %1199 = vmatprep.subr.mxu0 0.0
    %1200 = vmatpush1.msra.mxu0 0.0
    %1201 = vmatprep.subr.mxu0 0.0
    %1202 = vmatpush1.msra.mxu0 0.0
    %1203 = vmatprep.subr.mxu0 0.0
    %1204 = vmatpush1.msra.mxu0 0.0
    %1205 = vmatprep.subr.mxu0 0.0
    %1206 = vmatpush1.msra.mxu0 0.0
    %1207 = vmatprep.subr.mxu0 0.0
    %1208 = vmatpush1.msra.mxu0 0.0
    %1209 = vmatprep.subr.mxu0 0.0
    %1210 = vmatpush1.msra.mxu0 0.0
    %1211 = vmatprep.subr.mxu0 0.0
    %1212 = vmatpush1.msra.mxu0 0.0
    %1213 = vmatprep.subr.mxu0 0.0
    %1214 = vmatpush1.msra.mxu0 0.0
    %1215 = vmatprep.subr.mxu0 0.0
    %1216 = vmatpush1.msra.mxu0 0.0
    %1217 = vmatprep.subr.mxu0 0.0
    %1218 = vmatpush1.msra.mxu0 0.0
    %1219 = vmatprep.subr.mxu0 0.0
    %1220 = vmatpush1.msra.mxu0 0.0
    %1221 = vmatprep.subr.mxu0 0.0
    %1222 = vmatpush1.msra.mxu0 0.0
    %1223 = vmatprep.subr.mxu0 0.0
    %1224 = vmatpush1.msra.mxu0 0.0
    %1225 = vmatprep.subr.mxu0 0.0
    %1226 = vmatpush1.msra.mxu0 0.0
    %1227 = vmatprep.subr.mxu0 0.0
    %1228 = vmatpush1.msra.mxu0 0.0
    %1229 = vmatprep.subr.mxu0 0.0
    %1230 = vmatpush1.msra.mxu0 0.0
    %1231 = vmatprep.subr.mxu0 0.0
    %1232 = vmatpush1.msra.mxu0 0.0
    %1233 = vmatprep.subr.mxu0 0.0
    %1234 = vmatpush1.msra.mxu0 0.0
    %1235 = vmatprep.subr.mxu0 0.0
    %1236 = vmatpush1.msra.mxu0 0.0
    %1237 = vmatprep.subr.mxu0 0.0
    %1238 = vmatpush1.msra.mxu0 0.0
    %1239 = vmatprep.subr.mxu0 0.0
    %1240 = vmatpush1.msra.mxu0 0.0
    %1241 = vmatprep.subr.mxu0 0.0
    %1242 = vmatpush1.msra.mxu0 0.0
    %1243 = vmatprep.subr.mxu0 0.0
    %1244 = vmatpush1.msra.mxu0 0.0
    %1245 = vmatprep.subr.mxu0 0.0
    %1246 = vmatpush1.msra.mxu0 0.0
    %1247 = vmatprep.subr.mxu0 0.0
    %1248 = vmatpush1.msra.mxu0 0.0
    %1249 = vmatprep.subr.mxu0 0.0
    %1250 = vmatpush1.msra.mxu0 0.0
    %1251 = vmatprep.mubr.f32.mxu0 0.0
    %v1252 = vand.u32 %v91, 4294901760
    %v1253 = vsub.f32 %v91, %v1252
    %v1254 = vand.u32 %v1253, 4294901760
    %v1255 = vsub.f32 %v1253, %v1254
    %v1256 = vand.u32 %v1255, 4294901760
    %1257 = vmatmul.mubr.f32.gmra.mrb[0].mxu0 %v1256
    %v1258 = vpop.f32.mrb[0].mxu0
    %v1259 = vadd.f32 %v68, %v1258
    %v1260 = vpop.f32.mrb[0].mxu0
    %v1261 = vadd.f32 %v72, %v1260
    %1262 = vdwg.mxu0
    %v1263 = vand.u32 %v21, 4294901760
    %v1264 = vsub.f32 %v21, %v1263
    %v1265 = vand.u32 %v1264, 4294901760
    %v1266 = vsub.f32 %v1264, %v1265
    %v1267 = vand.u32 %v1266, 4294901760
    %1268 = vmatprep.subr.mxu0 %v1267
    %v1269 = vand.u32 %v20, 4294901760
    %v1270 = vsub.f32 %v20, %v1269
    %v1271 = vand.u32 %v1270, 4294901760
    %v1272 = vsub.f32 %v1270, %v1271
    %v1273 = vand.u32 %v1272, 4294901760
    %1274 = vmatpush1.msra.mxu0 %v1273
    %v1275 = vand.u32 %v29, 4294901760
    %v1276 = vsub.f32 %v29, %v1275
    %v1277 = vand.u32 %v1276, 4294901760
    %v1278 = vsub.f32 %v1276, %v1277
    %v1279 = vand.u32 %v1278, 4294901760
    %1280 = vmatprep.subr.mxu0 %v1279
    %v1281 = vand.u32 %v28, 4294901760
    %v1282 = vsub.f32 %v28, %v1281
    %v1283 = vand.u32 %v1282, 4294901760
    %v1284 = vsub.f32 %v1282, %v1283
    %v1285 = vand.u32 %v1284, 4294901760
    %1286 = vmatpush1.msra.mxu0 %v1285
    %v1287 = vand.u32 %v37, 4294901760
    %v1288 = vsub.f32 %v37, %v1287
    %v1289 = vand.u32 %v1288, 4294901760
    %v1290 = vsub.f32 %v1288, %v1289
    %v1291 = vand.u32 %v1290, 4294901760
    %1292 = vmatprep.subr.mxu0 %v1291
    %v1293 = vand.u32 %v36, 4294901760
    %v1294 = vsub.f32 %v36, %v1293
    %v1295 = vand.u32 %v1294, 4294901760
    %v1296 = vsub.f32 %v1294, %v1295
    %v1297 = vand.u32 %v1296, 4294901760
    %1298 = vmatpush1.msra.mxu0 %v1297
    %v1299 = vand.u32 %v45, 4294901760
    %v1300 = vsub.f32 %v45, %v1299
    %v1301 = vand.u32 %v1300, 4294901760
    %v1302 = vsub.f32 %v1300, %v1301
    %v1303 = vand.u32 %v1302, 4294901760
    %1304 = vmatprep.subr.mxu0 %v1303
    %v1305 = vand.u32 %v44, 4294901760
    %v1306 = vsub.f32 %v44, %v1305
    %v1307 = vand.u32 %v1306, 4294901760
    %v1308 = vsub.f32 %v1306, %v1307
    %v1309 = vand.u32 %v1308, 4294901760
    %1310 = vmatpush1.msra.mxu0 %v1309
    %1311 = vmatprep.subr.mxu0 0.0
    %1312 = vmatpush1.msra.mxu0 0.0
    %1313 = vmatprep.subr.mxu0 0.0
    %1314 = vmatpush1.msra.mxu0 0.0
    %1315 = vmatprep.subr.mxu0 0.0
    %1316 = vmatpush1.msra.mxu0 0.0
    %1317 = vmatprep.subr.mxu0 0.0
    %1318 = vmatpush1.msra.mxu0 0.0
    %1319 = vmatprep.subr.mxu0 0.0
    %1320 = vmatpush1.msra.mxu0 0.0
    %1321 = vmatprep.subr.mxu0 0.0
    %1322 = vmatpush1.msra.mxu0 0.0
    %1323 = vmatprep.subr.mxu0 0.0
    %1324 = vmatpush1.msra.mxu0 0.0
    %1325 = vmatprep.subr.mxu0 0.0
    %1326 = vmatpush1.msra.mxu0 0.0
    %1327 = vmatprep.subr.mxu0 0.0
    %1328 = vmatpush1.msra.mxu0 0.0
    %1329 = vmatprep.subr.mxu0 0.0
    %1330 = vmatpush1.msra.mxu0 0.0
    %1331 = vmatprep.subr.mxu0 0.0
    %1332 = vmatpush1.msra.mxu0 0.0
    %1333 = vmatprep.subr.mxu0 0.0
    %1334 = vmatpush1.msra.mxu0 0.0
    %1335 = vmatprep.subr.mxu0 0.0
    %1336 = vmatpush1.msra.mxu0 0.0
    %1337 = vmatprep.subr.mxu0 0.0
    %1338 = vmatpush1.msra.mxu0 0.0
    %1339 = vmatprep.subr.mxu0 0.0
    %1340 = vmatpush1.msra.mxu0 0.0
    %1341 = vmatprep.subr.mxu0 0.0
    %1342 = vmatpush1.msra.mxu0 0.0
    %1343 = vmatprep.subr.mxu0 0.0
    %1344 = vmatpush1.msra.mxu0 0.0
    %1345 = vmatprep.subr.mxu0 0.0
    %1346 = vmatpush1.msra.mxu0 0.0
    %1347 = vmatprep.subr.mxu0 0.0
    %1348 = vmatpush1.msra.mxu0 0.0
    %1349 = vmatprep.subr.mxu0 0.0
    %1350 = vmatpush1.msra.mxu0 0.0
    %1351 = vmatprep.subr.mxu0 0.0
    %1352 = vmatpush1.msra.mxu0 0.0
    %1353 = vmatprep.subr.mxu0 0.0
    %1354 = vmatpush1.msra.mxu0 0.0
    %1355 = vmatprep.subr.mxu0 0.0
    %1356 = vmatpush1.msra.mxu0 0.0
    %1357 = vmatprep.subr.mxu0 0.0
    %1358 = vmatpush1.msra.mxu0 0.0
    %1359 = vmatprep.subr.mxu0 0.0
    %1360 = vmatpush1.msra.mxu0 0.0
    %1361 = vmatprep.subr.mxu0 0.0
    %1362 = vmatpush1.msra.mxu0 0.0
    %1363 = vmatprep.subr.mxu0 0.0
    %1364 = vmatpush1.msra.mxu0 0.0
    %1365 = vmatprep.subr.mxu0 0.0
    %1366 = vmatpush1.msra.mxu0 0.0
    %1367 = vmatprep.mubr.f32.mxu0 0.0
    %v1368 = vand.u32 %v91, 4294901760
    %1369 = vmatmul.mubr.f32.gmra.mrb[0].mxu0 %v1368
    %v1370 = vpop.f32.mrb[0].mxu0
    %v1371 = vadd.f32 %v1259, %v1370
    %v1372 = vpop.f32.mrb[0].mxu0
    %v1373 = vadd.f32 %v1261, %v1372
    %1374 = vdwg.mxu0
    %v1375 = vand.u32 %v21, 4294901760
    %v1376 = vsub.f32 %v21, %v1375
    %1377 = vmatprep.subr.mxu0 %v1376
    %v1378 = vand.u32 %v20, 4294901760
    %v1379 = vsub.f32 %v20, %v1378
    %1380 = vmatpush1.msra.mxu0 %v1379
    %v1381 = vand.u32 %v29, 4294901760
    %v1382 = vsub.f32 %v29, %v1381
    %1383 = vmatprep.subr.mxu0 %v1382
    %v1384 = vand.u32 %v28, 4294901760
    %v1385 = vsub.f32 %v28, %v1384
    %1386 = vmatpush1.msra.mxu0 %v1385
    %v1387 = vand.u32 %v37, 4294901760
    %v1388 = vsub.f32 %v37, %v1387
    %1389 = vmatprep.subr.mxu0 %v1388
    %v1390 = vand.u32 %v36, 4294901760
    %v1391 = vsub.f32 %v36, %v1390
    %1392 = vmatpush1.msra.mxu0 %v1391
    %v1393 = vand.u32 %v45, 4294901760
    %v1394 = vsub.f32 %v45, %v1393
    %1395 = vmatprep.subr.mxu0 %v1394
    %v1396 = vand.u32 %v44, 4294901760
    %v1397 = vsub.f32 %v44, %v1396
    %1398 = vmatpush1.msra.mxu0 %v1397
    %1399 = vmatprep.subr.mxu0 0.0
    %1400 = vmatpush1.msra.mxu0 0.0
    %1401 = vmatprep.subr.mxu0 0.0
    %1402 = vmatpush1.msra.mxu0 0.0
    %1403 = vmatprep.subr.mxu0 0.0
    %1404 = vmatpush1.msra.mxu0 0.0
    %1405 = vmatprep.subr.mxu0 0.0
    %1406 = vmatpush1.msra.mxu0 0.0
    %1407 = vmatprep.subr.mxu0 0.0
    %1408 = vmatpush1.msra.mxu0 0.0
    %1409 = vmatprep.subr.mxu0 0.0
    %1410 = vmatpush1.msra.mxu0 0.0
    %1411 = vmatprep.subr.mxu0 0.0
    %1412 = vmatpush1.msra.mxu0 0.0
    %1413 = vmatprep.subr.mxu0 0.0
    %1414 = vmatpush1.msra.mxu0 0.0
    %1415 = vmatprep.subr.mxu0 0.0
    %1416 = vmatpush1.msra.mxu0 0.0
    %1417 = vmatprep.subr.mxu0 0.0
    %1418 = vmatpush1.msra.mxu0 0.0
    %1419 = vmatprep.subr.mxu0 0.0
    %1420 = vmatpush1.msra.mxu0 0.0
    %1421 = vmatprep.subr.mxu0 0.0
    %1422 = vmatpush1.msra.mxu0 0.0
    %1423 = vmatprep.subr.mxu0 0.0
    %1424 = vmatpush1.msra.mxu0 0.0
    %1425 = vmatprep.subr.mxu0 0.0
    %1426 = vmatpush1.msra.mxu0 0.0
    %1427 = vmatprep.subr.mxu0 0.0
    %1428 = vmatpush1.msra.mxu0 0.0
    %1429 = vmatprep.subr.mxu0 0.0
    %1430 = vmatpush1.msra.mxu0 0.0
    %1431 = vmatprep.subr.mxu0 0.0
    %1432 = vmatpush1.msra.mxu0 0.0
    %1433 = vmatprep.subr.mxu0 0.0
    %1434 = vmatpush1.msra.mxu0 0.0
    %1435 = vmatprep.subr.mxu0 0.0
    %1436 = vmatpush1.msra.mxu0 0.0
    %1437 = vmatprep.subr.mxu0 0.0
    %1438 = vmatpush1.msra.mxu0 0.0
    %1439 = vmatprep.subr.mxu0 0.0
    %1440 = vmatpush1.msra.mxu0 0.0
    %1441 = vmatprep.subr.mxu0 0.0
    %1442 = vmatpush1.msra.mxu0 0.0
    %1443 = vmatprep.subr.mxu0 0.0
    %1444 = vmatpush1.msra.mxu0 0.0
    %1445 = vmatprep.subr.mxu0 0.0
    %1446 = vmatpush1.msra.mxu0 0.0
    %1447 = vmatprep.subr.mxu0 0.0
    %1448 = vmatpush1.msra.mxu0 0.0
    %1449 = vmatprep.subr.mxu0 0.0
    %1450 = vmatpush1.msra.mxu0 0.0
    %1451 = vmatprep.subr.mxu0 0.0
    %1452 = vmatpush1.msra.mxu0 0.0
    %1453 = vmatprep.subr.mxu0 0.0
    %1454 = vmatpush1.msra.mxu0 0.0
    %1455 = vmatprep.mubr.f32.mxu0 0.0
    %v1456 = vand.u32 %v91, 4294901760
    %v1457 = vsub.f32 %v91, %v1456
    %1458 = vmatmul.mubr.f32.gmra.mrb[0].mxu0 %v1457
    %v1459 = vpop.f32.mrb[0].mxu0
    %v1460 = vadd.f32 %v1371, %v1459
    %v1461 = vpop.f32.mrb[0].mxu0
    %v1462 = vadd.f32 %v1373, %v1461
    %1463 = vdwg.mxu0
    %v1464 = vand.u32 %v21, 4294901760
    %1465 = vmatprep.subr.mxu0 %v1464
    %v1466 = vand.u32 %v20, 4294901760
    %1467 = vmatpush1.msra.mxu0 %v1466
    %v1468 = vand.u32 %v29, 4294901760
    %1469 = vmatprep.subr.mxu0 %v1468
    %v1470 = vand.u32 %v28, 4294901760
    %1471 = vmatpush1.msra.mxu0 %v1470
    %v1472 = vand.u32 %v37, 4294901760
    %1473 = vmatprep.subr.mxu0 %v1472
    %v1474 = vand.u32 %v36, 4294901760
    %1475 = vmatpush1.msra.mxu0 %v1474
    %v1476 = vand.u32 %v45, 4294901760
    %1477 = vmatprep.subr.mxu0 %v1476
    %v1478 = vand.u32 %v44, 4294901760
    %1479 = vmatpush1.msra.mxu0 %v1478
    %1480 = vmatprep.subr.mxu0 0.0
    %1481 = vmatpush1.msra.mxu0 0.0
    %1482 = vmatprep.subr.mxu0 0.0
    %1483 = vmatpush1.msra.mxu0 0.0
    %1484 = vmatprep.subr.mxu0 0.0
    %1485 = vmatpush1.msra.mxu0 0.0
    %1486 = vmatprep.subr.mxu0 0.0
    %1487 = vmatpush1.msra.mxu0 0.0
    %1488 = vmatprep.subr.mxu0 0.0
    %1489 = vmatpush1.msra.mxu0 0.0
    %1490 = vmatprep.subr.mxu0 0.0
    %1491 = vmatpush1.msra.mxu0 0.0
    %1492 = vmatprep.subr.mxu0 0.0
    %1493 = vmatpush1.msra.mxu0 0.0
    %1494 = vmatprep.subr.mxu0 0.0
    %1495 = vmatpush1.msra.mxu0 0.0
    %1496 = vmatprep.subr.mxu0 0.0
    %1497 = vmatpush1.msra.mxu0 0.0
    %1498 = vmatprep.subr.mxu0 0.0
    %1499 = vmatpush1.msra.mxu0 0.0
    %1500 = vmatprep.subr.mxu0 0.0
    %1501 = vmatpush1.msra.mxu0 0.0
    %1502 = vmatprep.subr.mxu0 0.0
    %1503 = vmatpush1.msra.mxu0 0.0
    %1504 = vmatprep.subr.mxu0 0.0
    %1505 = vmatpush1.msra.mxu0 0.0
    %1506 = vmatprep.subr.mxu0 0.0
    %1507 = vmatpush1.msra.mxu0 0.0
    %1508 = vmatprep.subr.mxu0 0.0
    %1509 = vmatpush1.msra.mxu0 0.0
    %1510 = vmatprep.subr.mxu0 0.0
    %1511 = vmatpush1.msra.mxu0 0.0
    %1512 = vmatprep.subr.mxu0 0.0
    %1513 = vmatpush1.msra.mxu0 0.0
    %1514 = vmatprep.subr.mxu0 0.0
    %1515 = vmatpush1.msra.mxu0 0.0
    %1516 = vmatprep.subr.mxu0 0.0
    %1517 = vmatpush1.msra.mxu0 0.0
    %1518 = vmatprep.subr.mxu0 0.0
    %1519 = vmatpush1.msra.mxu0 0.0
    %1520 = vmatprep.subr.mxu0 0.0
    %1521 = vmatpush1.msra.mxu0 0.0
    %1522 = vmatprep.subr.mxu0 0.0
    %1523 = vmatpush1.msra.mxu0 0.0
    %1524 = vmatprep.subr.mxu0 0.0
    %1525 = vmatpush1.msra.mxu0 0.0
    %1526 = vmatprep.subr.mxu0 0.0
    %1527 = vmatpush1.msra.mxu0 0.0
    %1528 = vmatprep.subr.mxu0 0.0
    %1529 = vmatpush1.msra.mxu0 0.0
    %1530 = vmatprep.subr.mxu0 0.0
    %1531 = vmatpush1.msra.mxu0 0.0
    %1532 = vmatprep.subr.mxu0 0.0
    %1533 = vmatpush1.msra.mxu0 0.0
    %1534 = vmatprep.subr.mxu0 0.0
    %1535 = vmatpush1.msra.mxu0 0.0
    %1536 = vmatprep.mubr.f32.mxu0 0.0
    %v1537 = vand.u32 %v91, 4294901760
    %v1538 = vsub.f32 %v91, %v1537
    %v1539 = vand.u32 %v1538, 4294901760
    %1540 = vmatmul.mubr.f32.gmra.mrb[0].mxu0 %v1539
    %v1541 = vpop.f32.mrb[0].mxu0
    %v1542 = vadd.f32 %v1460, %v1541
    %v1543 = vpop.f32.mrb[0].mxu0
    %v1544 = vadd.f32 %v1462, %v1543
    %1545 = vdwg.mxu0
    %v1546 = vand.u32 %v21, 4294901760
    %v1547 = vsub.f32 %v21, %v1546
    %v1548 = vand.u32 %v1547, 4294901760
    %1549 = vmatprep.subr.mxu0 %v1548
    %v1550 = vand.u32 %v20, 4294901760
    %v1551 = vsub.f32 %v20, %v1550
    %v1552 = vand.u32 %v1551, 4294901760
    %1553 = vmatpush1.msra.mxu0 %v1552
    %v1554 = vand.u32 %v29, 4294901760
    %v1555 = vsub.f32 %v29, %v1554
    %v1556 = vand.u32 %v1555, 4294901760
    %1557 = vmatprep.subr.mxu0 %v1556
    %v1558 = vand.u32 %v28, 4294901760
    %v1559 = vsub.f32 %v28, %v1558
    %v1560 = vand.u32 %v1559, 4294901760
    %1561 = vmatpush1.msra.mxu0 %v1560
    %v1562 = vand.u32 %v37, 4294901760
    %v1563 = vsub.f32 %v37, %v1562
    %v1564 = vand.u32 %v1563, 4294901760
    %1565 = vmatprep.subr.mxu0 %v1564
    %v1566 = vand.u32 %v36, 4294901760
    %v1567 = vsub.f32 %v36, %v1566
    %v1568 = vand.u32 %v1567, 4294901760
    %1569 = vmatpush1.msra.mxu0 %v1568
    %v1570 = vand.u32 %v45, 4294901760
    %v1571 = vsub.f32 %v45, %v1570
    %v1572 = vand.u32 %v1571, 4294901760
    %1573 = vmatprep.subr.mxu0 %v1572
    %v1574 = vand.u32 %v44, 4294901760
    %v1575 = vsub.f32 %v44, %v1574
    %v1576 = vand.u32 %v1575, 4294901760
    %1577 = vmatpush1.msra.mxu0 %v1576
    %1578 = vmatprep.subr.mxu0 0.0
    %1579 = vmatpush1.msra.mxu0 0.0
    %1580 = vmatprep.subr.mxu0 0.0
    %1581 = vmatpush1.msra.mxu0 0.0
    %1582 = vmatprep.subr.mxu0 0.0
    %1583 = vmatpush1.msra.mxu0 0.0
    %1584 = vmatprep.subr.mxu0 0.0
    %1585 = vmatpush1.msra.mxu0 0.0
    %1586 = vmatprep.subr.mxu0 0.0
    %1587 = vmatpush1.msra.mxu0 0.0
    %1588 = vmatprep.subr.mxu0 0.0
    %1589 = vmatpush1.msra.mxu0 0.0
    %1590 = vmatprep.subr.mxu0 0.0
    %1591 = vmatpush1.msra.mxu0 0.0
    %1592 = vmatprep.subr.mxu0 0.0
    %1593 = vmatpush1.msra.mxu0 0.0
    %1594 = vmatprep.subr.mxu0 0.0
    %1595 = vmatpush1.msra.mxu0 0.0
    %1596 = vmatprep.subr.mxu0 0.0
    %1597 = vmatpush1.msra.mxu0 0.0
    %1598 = vmatprep.subr.mxu0 0.0
    %1599 = vmatpush1.msra.mxu0 0.0
    %1600 = vmatprep.subr.mxu0 0.0
    %1601 = vmatpush1.msra.mxu0 0.0
    %1602 = vmatprep.subr.mxu0 0.0
    %1603 = vmatpush1.msra.mxu0 0.0
    %1604 = vmatprep.subr.mxu0 0.0
    %1605 = vmatpush1.msra.mxu0 0.0
    %1606 = vmatprep.subr.mxu0 0.0
    %1607 = vmatpush1.msra.mxu0 0.0
    %1608 = vmatprep.subr.mxu0 0.0
    %1609 = vmatpush1.msra.mxu0 0.0
    %1610 = vmatprep.subr.mxu0 0.0
    %1611 = vmatpush1.msra.mxu0 0.0
    %1612 = vmatprep.subr.mxu0 0.0
    %1613 = vmatpush1.msra.mxu0 0.0
    %1614 = vmatprep.subr.mxu0 0.0
    %1615 = vmatpush1.msra.mxu0 0.0
    %1616 = vmatprep.subr.mxu0 0.0
    %1617 = vmatpush1.msra.mxu0 0.0
    %1618 = vmatprep.subr.mxu0 0.0
    %1619 = vmatpush1.msra.mxu0 0.0
    %1620 = vmatprep.subr.mxu0 0.0
    %1621 = vmatpush1.msra.mxu0 0.0
    %1622 = vmatprep.subr.mxu0 0.0
    %1623 = vmatpush1.msra.mxu0 0.0
    %1624 = vmatprep.subr.mxu0 0.0
    %1625 = vmatpush1.msra.mxu0 0.0
    %1626 = vmatprep.subr.mxu0 0.0
    %1627 = vmatpush1.msra.mxu0 0.0
    %1628 = vmatprep.subr.mxu0 0.0
    %1629 = vmatpush1.msra.mxu0 0.0
    %1630 = vmatprep.subr.mxu0 0.0
    %1631 = vmatpush1.msra.mxu0 0.0
    %1632 = vmatprep.subr.mxu0 0.0
    %1633 = vmatpush1.msra.mxu0 0.0
    %1634 = vmatprep.mubr.f32.mxu0 0.0
    %v1635 = vand.u32 %v91, 4294901760
    %1636 = vmatmul.mubr.f32.gmra.mrb[0].mxu0 %v1635
    %v1637 = vpop.f32.mrb[0].mxu0
    %v1638 = vadd.f32 %v1542, %v1637
    %v1639 = vpop.f32.mrb[0].mxu0
    %v1640 = vadd.f32 %v1544, %v1639
    %1641 = vdwg.mxu0
    %v1642 = vand.u32 %v21, 4294901760
    %1643 = vmatprep.subr.mxu0 %v1642
    %v1644 = vand.u32 %v20, 4294901760
    %1645 = vmatpush1.msra.mxu0 %v1644
    %v1646 = vand.u32 %v29, 4294901760
    %1647 = vmatprep.subr.mxu0 %v1646
    %v1648 = vand.u32 %v28, 4294901760
    %1649 = vmatpush1.msra.mxu0 %v1648
    %v1650 = vand.u32 %v37, 4294901760
    %1651 = vmatprep.subr.mxu0 %v1650
    %v1652 = vand.u32 %v36, 4294901760
    %1653 = vmatpush1.msra.mxu0 %v1652
    %v1654 = vand.u32 %v45, 4294901760
    %1655 = vmatprep.subr.mxu0 %v1654
    %v1656 = vand.u32 %v44, 4294901760
    %1657 = vmatpush1.msra.mxu0 %v1656
    %1658 = vmatprep.subr.mxu0 0.0
    %1659 = vmatpush1.msra.mxu0 0.0
    %1660 = vmatprep.subr.mxu0 0.0
    %1661 = vmatpush1.msra.mxu0 0.0
    %1662 = vmatprep.subr.mxu0 0.0
    %1663 = vmatpush1.msra.mxu0 0.0
    %1664 = vmatprep.subr.mxu0 0.0
    %1665 = vmatpush1.msra.mxu0 0.0
    %1666 = vmatprep.subr.mxu0 0.0
    %1667 = vmatpush1.msra.mxu0 0.0
    %1668 = vmatprep.subr.mxu0 0.0
    %1669 = vmatpush1.msra.mxu0 0.0
    %1670 = vmatprep.subr.mxu0 0.0
    %1671 = vmatpush1.msra.mxu0 0.0
    %1672 = vmatprep.subr.mxu0 0.0
    %1673 = vmatpush1.msra.mxu0 0.0
    %1674 = vmatprep.subr.mxu0 0.0
    %1675 = vmatpush1.msra.mxu0 0.0
    %1676 = vmatprep.subr.mxu0 0.0
    %1677 = vmatpush1.msra.mxu0 0.0
    %1678 = vmatprep.subr.mxu0 0.0
    %1679 = vmatpush1.msra.mxu0 0.0
    %1680 = vmatprep.subr.mxu0 0.0
    %1681 = vmatpush1.msra.mxu0 0.0
    %1682 = vmatprep.subr.mxu0 0.0
    %1683 = vmatpush1.msra.mxu0 0.0
    %1684 = vmatprep.subr.mxu0 0.0
    %1685 = vmatpush1.msra.mxu0 0.0
    %1686 = vmatprep.subr.mxu0 0.0
    %1687 = vmatpush1.msra.mxu0 0.0
    %1688 = vmatprep.subr.mxu0 0.0
    %1689 = vmatpush1.msra.mxu0 0.0
    %1690 = vmatprep.subr.mxu0 0.0
    %1691 = vmatpush1.msra.mxu0 0.0
    %1692 = vmatprep.subr.mxu0 0.0
    %1693 = vmatpush1.msra.mxu0 0.0
    %1694 = vmatprep.subr.mxu0 0.0
    %1695 = vmatpush1.msra.mxu0 0.0
    %1696 = vmatprep.subr.mxu0 0.0
    %1697 = vmatpush1.msra.mxu0 0.0
    %1698 = vmatprep.subr.mxu0 0.0
    %1699 = vmatpush1.msra.mxu0 0.0
    %1700 = vmatprep.subr.mxu0 0.0
    %1701 = vmatpush1.msra.mxu0 0.0
    %1702 = vmatprep.subr.mxu0 0.0
    %1703 = vmatpush1.msra.mxu0 0.0
    %1704 = vmatprep.subr.mxu0 0.0
    %1705 = vmatpush1.msra.mxu0 0.0
    %1706 = vmatprep.subr.mxu0 0.0
    %1707 = vmatpush1.msra.mxu0 0.0
    %1708 = vmatprep.subr.mxu0 0.0
    %1709 = vmatpush1.msra.mxu0 0.0
    %1710 = vmatprep.subr.mxu0 0.0
    %1711 = vmatpush1.msra.mxu0 0.0
    %1712 = vmatprep.subr.mxu0 0.0
    %1713 = vmatpush1.msra.mxu0 0.0
    %1714 = vmatprep.mubr.f32.mxu0 0.0
    %v1715 = vand.u32 %v91, 4294901760
    %1716 = vmatmul.mubr.f32.gmra.mrb[0].mxu0 %v1715
    %v1717 = vpop.f32.mrb[0].mxu0
    %v1718 = vadd.f32 %v1638, %v1717
    %v1719 = vpop.f32.mrb[0].mxu0
    %v1720 = vadd.f32 %v1640, %v1719
    %1721 = vdwg.mxu0
    %v1722 = vand.u32 %v23, 4294901760
    %1723 = vmatprep.subr.mxu0 %v1722
    %v1724 = vand.u32 %v22, 4294901760
    %1725 = vmatpush1.msra.mxu0 %v1724
    %v1726 = vand.u32 %v31, 4294901760
    %1727 = vmatprep.subr.mxu0 %v1726
    %v1728 = vand.u32 %v30, 4294901760
    %1729 = vmatpush1.msra.mxu0 %v1728
    %v1730 = vand.u32 %v39, 4294901760
    %1731 = vmatprep.subr.mxu0 %v1730
    %v1732 = vand.u32 %v38, 4294901760
    %1733 = vmatpush1.msra.mxu0 %v1732
    %v1734 = vand.u32 %v47, 4294901760
    %1735 = vmatprep.subr.mxu0 %v1734
    %v1736 = vand.u32 %v46, 4294901760
    %1737 = vmatpush1.msra.mxu0 %v1736
    %1738 = vmatprep.subr.mxu0 0.0
    %1739 = vmatpush1.msra.mxu0 0.0
    %1740 = vmatprep.subr.mxu0 0.0
    %1741 = vmatpush1.msra.mxu0 0.0
    %1742 = vmatprep.subr.mxu0 0.0
    %1743 = vmatpush1.msra.mxu0 0.0
    %1744 = vmatprep.subr.mxu0 0.0
    %1745 = vmatpush1.msra.mxu0 0.0
    %1746 = vmatprep.subr.mxu0 0.0
    %1747 = vmatpush1.msra.mxu0 0.0
    %1748 = vmatprep.subr.mxu0 0.0
    %1749 = vmatpush1.msra.mxu0 0.0
    %1750 = vmatprep.subr.mxu0 0.0
    %1751 = vmatpush1.msra.mxu0 0.0
    %1752 = vmatprep.subr.mxu0 0.0
    %1753 = vmatpush1.msra.mxu0 0.0
    %1754 = vmatprep.subr.mxu0 0.0
    %1755 = vmatpush1.msra.mxu0 0.0
    %1756 = vmatprep.subr.mxu0 0.0
    %1757 = vmatpush1.msra.mxu0 0.0
    %1758 = vmatprep.subr.mxu0 0.0
    %1759 = vmatpush1.msra.mxu0 0.0
    %1760 = vmatprep.subr.mxu0 0.0
    %1761 = vmatpush1.msra.mxu0 0.0
    %1762 = vmatprep.subr.mxu0 0.0
    %1763 = vmatpush1.msra.mxu0 0.0
    %1764 = vmatprep.subr.mxu0 0.0
    %1765 = vmatpush1.msra.mxu0 0.0
    %1766 = vmatprep.subr.mxu0 0.0
    %1767 = vmatpush1.msra.mxu0 0.0
    %1768 = vmatprep.subr.mxu0 0.0
    %1769 = vmatpush1.msra.mxu0 0.0
    %1770 = vmatprep.subr.mxu0 0.0
    %1771 = vmatpush1.msra.mxu0 0.0
    %1772 = vmatprep.subr.mxu0 0.0
    %1773 = vmatpush1.msra.mxu0 0.0
    %1774 = vmatprep.subr.mxu0 0.0
    %1775 = vmatpush1.msra.mxu0 0.0
    %1776 = vmatprep.subr.mxu0 0.0
    %1777 = vmatpush1.msra.mxu0 0.0
    %1778 = vmatprep.subr.mxu0 0.0
    %1779 = vmatpush1.msra.mxu0 0.0
    %1780 = vmatprep.subr.mxu0 0.0
    %1781 = vmatpush1.msra.mxu0 0.0
    %1782 = vmatprep.subr.mxu0 0.0
    %1783 = vmatpush1.msra.mxu0 0.0
    %1784 = vmatprep.subr.mxu0 0.0
    %1785 = vmatpush1.msra.mxu0 0.0
    %1786 = vmatprep.subr.mxu0 0.0
    %1787 = vmatpush1.msra.mxu0 0.0
    %1788 = vmatprep.subr.mxu0 0.0
    %1789 = vmatpush1.msra.mxu0 0.0
    %1790 = vmatprep.subr.mxu0 0.0
    %1791 = vmatpush1.msra.mxu0 0.0
    %1792 = vmatprep.subr.mxu0 0.0
    %1793 = vmatpush1.msra.mxu0 0.0
    %1794 = vmatprep.mubr.f32.mxu0 0.0
    %v1795 = vand.u32 %v91, 4294901760
    %v1796 = vsub.f32 %v91, %v1795
    %v1797 = vand.u32 %v1796, 4294901760
    %v1798 = vsub.f32 %v1796, %v1797
    %v1799 = vand.u32 %v1798, 4294901760
    %1800 = vmatmul.mubr.f32.gmra.mrb[0].mxu0 %v1799
    %v1801 = vpop.f32.mrb[0].mxu0
    %v1802 = vadd.f32 %v76, %v1801
    %v1803 = vpop.f32.mrb[0].mxu0
    %v1804 = vadd.f32 %v80, %v1803
    %1805 = vdwg.mxu0
    %v1806 = vand.u32 %v23, 4294901760
    %v1807 = vsub.f32 %v23, %v1806
    %v1808 = vand.u32 %v1807, 4294901760
    %v1809 = vsub.f32 %v1807, %v1808
    %v1810 = vand.u32 %v1809, 4294901760
    %1811 = vmatprep.subr.mxu0 %v1810
    %v1812 = vand.u32 %v22, 4294901760
    %v1813 = vsub.f32 %v22, %v1812
    %v1814 = vand.u32 %v1813, 4294901760
    %v1815 = vsub.f32 %v1813, %v1814
    %v1816 = vand.u32 %v1815, 4294901760
    %1817 = vmatpush1.msra.mxu0 %v1816
    %v1818 = vand.u32 %v31, 4294901760
    %v1819 = vsub.f32 %v31, %v1818
    %v1820 = vand.u32 %v1819, 4294901760
    %v1821 = vsub.f32 %v1819, %v1820
    %v1822 = vand.u32 %v1821, 4294901760
    %1823 = vmatprep.subr.mxu0 %v1822
    %v1824 = vand.u32 %v30, 4294901760
    %v1825 = vsub.f32 %v30, %v1824
    %v1826 = vand.u32 %v1825, 4294901760
    %v1827 = vsub.f32 %v1825, %v1826
    %v1828 = vand.u32 %v1827, 4294901760
    %1829 = vmatpush1.msra.mxu0 %v1828
    %v1830 = vand.u32 %v39, 4294901760
    %v1831 = vsub.f32 %v39, %v1830
    %v1832 = vand.u32 %v1831, 4294901760
    %v1833 = vsub.f32 %v1831, %v1832
    %v1834 = vand.u32 %v1833, 4294901760
    %1835 = vmatprep.subr.mxu0 %v1834
    %v1836 = vand.u32 %v38, 4294901760
    %v1837 = vsub.f32 %v38, %v1836
    %v1838 = vand.u32 %v1837, 4294901760
    %v1839 = vsub.f32 %v1837, %v1838
    %v1840 = vand.u32 %v1839, 4294901760
    %1841 = vmatpush1.msra.mxu0 %v1840
    %v1842 = vand.u32 %v47, 4294901760
    %v1843 = vsub.f32 %v47, %v1842
    %v1844 = vand.u32 %v1843, 4294901760
    %v1845 = vsub.f32 %v1843, %v1844
    %v1846 = vand.u32 %v1845, 4294901760
    %1847 = vmatprep.subr.mxu0 %v1846
    %v1848 = vand.u32 %v46, 4294901760
    %v1849 = vsub.f32 %v46, %v1848
    %v1850 = vand.u32 %v1849, 4294901760
    %v1851 = vsub.f32 %v1849, %v1850
    %v1852 = vand.u32 %v1851, 4294901760
    %1853 = vmatpush1.msra.mxu0 %v1852
    %1854 = vmatprep.subr.mxu0 0.0
    %1855 = vmatpush1.msra.mxu0 0.0
    %1856 = vmatprep.subr.mxu0 0.0
    %1857 = vmatpush1.msra.mxu0 0.0
    %1858 = vmatprep.subr.mxu0 0.0
    %1859 = vmatpush1.msra.mxu0 0.0
    %1860 = vmatprep.subr.mxu0 0.0
    %1861 = vmatpush1.msra.mxu0 0.0
    %1862 = vmatprep.subr.mxu0 0.0
    %1863 = vmatpush1.msra.mxu0 0.0
    %1864 = vmatprep.subr.mxu0 0.0
    %1865 = vmatpush1.msra.mxu0 0.0
    %1866 = vmatprep.subr.mxu0 0.0
    %1867 = vmatpush1.msra.mxu0 0.0
    %1868 = vmatprep.subr.mxu0 0.0
    %1869 = vmatpush1.msra.mxu0 0.0
    %1870 = vmatprep.subr.mxu0 0.0
    %1871 = vmatpush1.msra.mxu0 0.0
    %1872 = vmatprep.subr.mxu0 0.0
    %1873 = vmatpush1.msra.mxu0 0.0
    %1874 = vmatprep.subr.mxu0 0.0
    %1875 = vmatpush1.msra.mxu0 0.0
    %1876 = vmatprep.subr.mxu0 0.0
    %1877 = vmatpush1.msra.mxu0 0.0
    %1878 = vmatprep.subr.mxu0 0.0
    %1879 = vmatpush1.msra.mxu0 0.0
    %1880 = vmatprep.subr.mxu0 0.0
    %1881 = vmatpush1.msra.mxu0 0.0
    %1882 = vmatprep.subr.mxu0 0.0
    %1883 = vmatpush1.msra.mxu0 0.0
    %1884 = vmatprep.subr.mxu0 0.0
    %1885 = vmatpush1.msra.mxu0 0.0
    %1886 = vmatprep.subr.mxu0 0.0
    %1887 = vmatpush1.msra.mxu0 0.0
    %1888 = vmatprep.subr.mxu0 0.0
    %1889 = vmatpush1.msra.mxu0 0.0
    %1890 = vmatprep.subr.mxu0 0.0
    %1891 = vmatpush1.msra.mxu0 0.0
    %1892 = vmatprep.subr.mxu0 0.0
    %1893 = vmatpush1.msra.mxu0 0.0
    %1894 = vmatprep.subr.mxu0 0.0
    %1895 = vmatpush1.msra.mxu0 0.0
    %1896 = vmatprep.subr.mxu0 0.0
    %1897 = vmatpush1.msra.mxu0 0.0
    %1898 = vmatprep.subr.mxu0 0.0
    %1899 = vmatpush1.msra.mxu0 0.0
    %1900 = vmatprep.subr.mxu0 0.0
    %1901 = vmatpush1.msra.mxu0 0.0
    %1902 = vmatprep.subr.mxu0 0.0
    %1903 = vmatpush1.msra.mxu0 0.0
    %1904 = vmatprep.subr.mxu0 0.0
    %1905 = vmatpush1.msra.mxu0 0.0
    %1906 = vmatprep.subr.mxu0 0.0
    %1907 = vmatpush1.msra.mxu0 0.0
    %1908 = vmatprep.subr.mxu0 0.0
    %1909 = vmatpush1.msra.mxu0 0.0
    %1910 = vmatprep.mubr.f32.mxu0 0.0
    %v1911 = vand.u32 %v91, 4294901760
    %1912 = vmatmul.mubr.f32.gmra.mrb[0].mxu0 %v1911
    %v1913 = vpop.f32.mrb[0].mxu0
    %v1914 = vadd.f32 %v1802, %v1913
    %v1915 = vpop.f32.mrb[0].mxu0
    %v1916 = vadd.f32 %v1804, %v1915
    %1917 = vdwg.mxu0
    %v1918 = vand.u32 %v23, 4294901760
    %v1919 = vsub.f32 %v23, %v1918
    %1920 = vmatprep.subr.mxu0 %v1919
    %v1921 = vand.u32 %v22, 4294901760
    %v1922 = vsub.f32 %v22, %v1921
    %1923 = vmatpush1.msra.mxu0 %v1922
    %v1924 = vand.u32 %v31, 4294901760
    %v1925 = vsub.f32 %v31, %v1924
    %1926 = vmatprep.subr.mxu0 %v1925
    %v1927 = vand.u32 %v30, 4294901760
    %v1928 = vsub.f32 %v30, %v1927
    %1929 = vmatpush1.msra.mxu0 %v1928
    %v1930 = vand.u32 %v39, 4294901760
    %v1931 = vsub.f32 %v39, %v1930
    %1932 = vmatprep.subr.mxu0 %v1931
    %v1933 = vand.u32 %v38, 4294901760
    %v1934 = vsub.f32 %v38, %v1933
    %1935 = vmatpush1.msra.mxu0 %v1934
    %v1936 = vand.u32 %v47, 4294901760
    %v1937 = vsub.f32 %v47, %v1936
    %1938 = vmatprep.subr.mxu0 %v1937
    %v1939 = vand.u32 %v46, 4294901760
    %v1940 = vsub.f32 %v46, %v1939
    %1941 = vmatpush1.msra.mxu0 %v1940
    %1942 = vmatprep.subr.mxu0 0.0
    %1943 = vmatpush1.msra.mxu0 0.0
    %1944 = vmatprep.subr.mxu0 0.0
    %1945 = vmatpush1.msra.mxu0 0.0
    %1946 = vmatprep.subr.mxu0 0.0
    %1947 = vmatpush1.msra.mxu0 0.0
    %1948 = vmatprep.subr.mxu0 0.0
    %1949 = vmatpush1.msra.mxu0 0.0
    %1950 = vmatprep.subr.mxu0 0.0
    %1951 = vmatpush1.msra.mxu0 0.0
    %1952 = vmatprep.subr.mxu0 0.0
    %1953 = vmatpush1.msra.mxu0 0.0
    %1954 = vmatprep.subr.mxu0 0.0
    %1955 = vmatpush1.msra.mxu0 0.0
    %1956 = vmatprep.subr.mxu0 0.0
    %1957 = vmatpush1.msra.mxu0 0.0
    %1958 = vmatprep.subr.mxu0 0.0
    %1959 = vmatpush1.msra.mxu0 0.0
    %1960 = vmatprep.subr.mxu0 0.0
    %1961 = vmatpush1.msra.mxu0 0.0
    %1962 = vmatprep.subr.mxu0 0.0
    %1963 = vmatpush1.msra.mxu0 0.0
    %1964 = vmatprep.subr.mxu0 0.0
    %1965 = vmatpush1.msra.mxu0 0.0
    %1966 = vmatprep.subr.mxu0 0.0
    %1967 = vmatpush1.msra.mxu0 0.0
    %1968 = vmatprep.subr.mxu0 0.0
    %1969 = vmatpush1.msra.mxu0 0.0
    %1970 = vmatprep.subr.mxu0 0.0
    %1971 = vmatpush1.msra.mxu0 0.0
    %1972 = vmatprep.subr.mxu0 0.0
    %1973 = vmatpush1.msra.mxu0 0.0
    %1974 = vmatprep.subr.mxu0 0.0
    %1975 = vmatpush1.msra.mxu0 0.0
    %1976 = vmatprep.subr.mxu0 0.0
    %1977 = vmatpush1.msra.mxu0 0.0
    %1978 = vmatprep.subr.mxu0 0.0
    %1979 = vmatpush1.msra.mxu0 0.0
    %1980 = vmatprep.subr.mxu0 0.0
    %1981 = vmatpush1.msra.mxu0 0.0
    %1982 = vmatprep.subr.mxu0 0.0
    %1983 = vmatpush1.msra.mxu0 0.0
    %1984 = vmatprep.subr.mxu0 0.0
    %1985 = vmatpush1.msra.mxu0 0.0
    %1986 = vmatprep.subr.mxu0 0.0
    %1987 = vmatpush1.msra.mxu0 0.0
    %1988 = vmatprep.subr.mxu0 0.0
    %1989 = vmatpush1.msra.mxu0 0.0
    %1990 = vmatprep.subr.mxu0 0.0
    %1991 = vmatpush1.msra.mxu0 0.0
    %1992 = vmatprep.subr.mxu0 0.0
    %1993 = vmatpush1.msra.mxu0 0.0
    %1994 = vmatprep.subr.mxu0 0.0
    %1995 = vmatpush1.msra.mxu0 0.0
    %1996 = vmatprep.subr.mxu0 0.0
    %1997 = vmatpush1.msra.mxu0 0.0
    %1998 = vmatprep.mubr.f32.mxu0 0.0
    %v1999 = vand.u32 %v91, 4294901760
    %v2000 = vsub.f32 %v91, %v1999
    %2001 = vmatmul.mubr.f32.gmra.mrb[0].mxu0 %v2000
    %v2002 = vpop.f32.mrb[0].mxu0
    %v2003 = vadd.f32 %v1914, %v2002
    %v2004 = vpop.f32.mrb[0].mxu0
    %v2005 = vadd.f32 %v1916, %v2004
    %2006 = vdwg.mxu0
    %v2007 = vand.u32 %v23, 4294901760
    %2008 = vmatprep.subr.mxu0 %v2007
    %v2009 = vand.u32 %v22, 4294901760
    %2010 = vmatpush1.msra.mxu0 %v2009
    %v2011 = vand.u32 %v31, 4294901760
    %2012 = vmatprep.subr.mxu0 %v2011
    %v2013 = vand.u32 %v30, 4294901760
    %2014 = vmatpush1.msra.mxu0 %v2013
    %v2015 = vand.u32 %v39, 4294901760
    %2016 = vmatprep.subr.mxu0 %v2015
    %v2017 = vand.u32 %v38, 4294901760
    %2018 = vmatpush1.msra.mxu0 %v2017
    %v2019 = vand.u32 %v47, 4294901760
    %2020 = vmatprep.subr.mxu0 %v2019
    %v2021 = vand.u32 %v46, 4294901760
    %2022 = vmatpush1.msra.mxu0 %v2021
    %2023 = vmatprep.subr.mxu0 0.0
    %2024 = vmatpush1.msra.mxu0 0.0
    %2025 = vmatprep.subr.mxu0 0.0
    %2026 = vmatpush1.msra.mxu0 0.0
    %2027 = vmatprep.subr.mxu0 0.0
    %2028 = vmatpush1.msra.mxu0 0.0
    %2029 = vmatprep.subr.mxu0 0.0
    %2030 = vmatpush1.msra.mxu0 0.0
    %2031 = vmatprep.subr.mxu0 0.0
    %2032 = vmatpush1.msra.mxu0 0.0
    %2033 = vmatprep.subr.mxu0 0.0
    %2034 = vmatpush1.msra.mxu0 0.0
    %2035 = vmatprep.subr.mxu0 0.0
    %2036 = vmatpush1.msra.mxu0 0.0
    %2037 = vmatprep.subr.mxu0 0.0
    %2038 = vmatpush1.msra.mxu0 0.0
    %2039 = vmatprep.subr.mxu0 0.0
    %2040 = vmatpush1.msra.mxu0 0.0
    %2041 = vmatprep.subr.mxu0 0.0
    %2042 = vmatpush1.msra.mxu0 0.0
    %2043 = vmatprep.subr.mxu0 0.0
    %2044 = vmatpush1.msra.mxu0 0.0
    %2045 = vmatprep.subr.mxu0 0.0
    %2046 = vmatpush1.msra.mxu0 0.0
    %2047 = vmatprep.subr.mxu0 0.0
    %2048 = vmatpush1.msra.mxu0 0.0
    %2049 = vmatprep.subr.mxu0 0.0
    %2050 = vmatpush1.msra.mxu0 0.0
    %2051 = vmatprep.subr.mxu0 0.0
    %2052 = vmatpush1.msra.mxu0 0.0
    %2053 = vmatprep.subr.mxu0 0.0
    %2054 = vmatpush1.msra.mxu0 0.0
    %2055 = vmatprep.subr.mxu0 0.0
    %2056 = vmatpush1.msra.mxu0 0.0
    %2057 = vmatprep.subr.mxu0 0.0
    %2058 = vmatpush1.msra.mxu0 0.0
    %2059 = vmatprep.subr.mxu0 0.0
    %2060 = vmatpush1.msra.mxu0 0.0
    %2061 = vmatprep.subr.mxu0 0.0
    %2062 = vmatpush1.msra.mxu0 0.0
    %2063 = vmatprep.subr.mxu0 0.0
    %2064 = vmatpush1.msra.mxu0 0.0
    %2065 = vmatprep.subr.mxu0 0.0
    %2066 = vmatpush1.msra.mxu0 0.0
    %2067 = vmatprep.subr.mxu0 0.0
    %2068 = vmatpush1.msra.mxu0 0.0
    %2069 = vmatprep.subr.mxu0 0.0
    %2070 = vmatpush1.msra.mxu0 0.0
    %2071 = vmatprep.subr.mxu0 0.0
    %2072 = vmatpush1.msra.mxu0 0.0
    %2073 = vmatprep.subr.mxu0 0.0
    %2074 = vmatpush1.msra.mxu0 0.0
    %2075 = vmatprep.subr.mxu0 0.0
    %2076 = vmatpush1.msra.mxu0 0.0
    %2077 = vmatprep.subr.mxu0 0.0
    %2078 = vmatpush1.msra.mxu0 0.0
    %2079 = vmatprep.mubr.f32.mxu0 0.0
    %v2080 = vand.u32 %v91, 4294901760
    %v2081 = vsub.f32 %v91, %v2080
    %v2082 = vand.u32 %v2081, 4294901760
    %2083 = vmatmul.mubr.f32.gmra.mrb[0].mxu0 %v2082
    %v2084 = vpop.f32.mrb[0].mxu0
    %v2085 = vadd.f32 %v2003, %v2084
    %v2086 = vpop.f32.mrb[0].mxu0
    %v2087 = vadd.f32 %v2005, %v2086
    %2088 = vdwg.mxu0
    %v2089 = vand.u32 %v23, 4294901760
    %v2090 = vsub.f32 %v23, %v2089
    %v2091 = vand.u32 %v2090, 4294901760
    %2092 = vmatprep.subr.mxu0 %v2091
    %v2093 = vand.u32 %v22, 4294901760
    %v2094 = vsub.f32 %v22, %v2093
    %v2095 = vand.u32 %v2094, 4294901760
    %2096 = vmatpush1.msra.mxu0 %v2095
    %v2097 = vand.u32 %v31, 4294901760
    %v2098 = vsub.f32 %v31, %v2097
    %v2099 = vand.u32 %v2098, 4294901760
    %2100 = vmatprep.subr.mxu0 %v2099
    %v2101 = vand.u32 %v30, 4294901760
    %v2102 = vsub.f32 %v30, %v2101
    %v2103 = vand.u32 %v2102, 4294901760
    %2104 = vmatpush1.msra.mxu0 %v2103
    %v2105 = vand.u32 %v39, 4294901760
    %v2106 = vsub.f32 %v39, %v2105
    %v2107 = vand.u32 %v2106, 4294901760
    %2108 = vmatprep.subr.mxu0 %v2107
    %v2109 = vand.u32 %v38, 4294901760
    %v2110 = vsub.f32 %v38, %v2109
    %v2111 = vand.u32 %v2110, 4294901760
    %2112 = vmatpush1.msra.mxu0 %v2111
    %v2113 = vand.u32 %v47, 4294901760
    %v2114 = vsub.f32 %v47, %v2113
    %v2115 = vand.u32 %v2114, 4294901760
    %2116 = vmatprep.subr.mxu0 %v2115
    %v2117 = vand.u32 %v46, 4294901760
    %v2118 = vsub.f32 %v46, %v2117
    %v2119 = vand.u32 %v2118, 4294901760
    %2120 = vmatpush1.msra.mxu0 %v2119
    %2121 = vmatprep.subr.mxu0 0.0
    %2122 = vmatpush1.msra.mxu0 0.0
    %2123 = vmatprep.subr.mxu0 0.0
    %2124 = vmatpush1.msra.mxu0 0.0
    %2125 = vmatprep.subr.mxu0 0.0
    %2126 = vmatpush1.msra.mxu0 0.0
    %2127 = vmatprep.subr.mxu0 0.0
    %2128 = vmatpush1.msra.mxu0 0.0
    %2129 = vmatprep.subr.mxu0 0.0
    %2130 = vmatpush1.msra.mxu0 0.0
    %2131 = vmatprep.subr.mxu0 0.0
    %2132 = vmatpush1.msra.mxu0 0.0
    %2133 = vmatprep.subr.mxu0 0.0
    %2134 = vmatpush1.msra.mxu0 0.0
    %2135 = vmatprep.subr.mxu0 0.0
    %2136 = vmatpush1.msra.mxu0 0.0
    %2137 = vmatprep.subr.mxu0 0.0
    %2138 = vmatpush1.msra.mxu0 0.0
    %2139 = vmatprep.subr.mxu0 0.0
    %2140 = vmatpush1.msra.mxu0 0.0
    %2141 = vmatprep.subr.mxu0 0.0
    %2142 = vmatpush1.msra.mxu0 0.0
    %2143 = vmatprep.subr.mxu0 0.0
    %2144 = vmatpush1.msra.mxu0 0.0
    %2145 = vmatprep.subr.mxu0 0.0
    %2146 = vmatpush1.msra.mxu0 0.0
    %2147 = vmatprep.subr.mxu0 0.0
    %2148 = vmatpush1.msra.mxu0 0.0
    %2149 = vmatprep.subr.mxu0 0.0
    %2150 = vmatpush1.msra.mxu0 0.0
    %2151 = vmatprep.subr.mxu0 0.0
    %2152 = vmatpush1.msra.mxu0 0.0
    %2153 = vmatprep.subr.mxu0 0.0
    %2154 = vmatpush1.msra.mxu0 0.0
    %2155 = vmatprep.subr.mxu0 0.0
    %2156 = vmatpush1.msra.mxu0 0.0
    %2157 = vmatprep.subr.mxu0 0.0
    %2158 = vmatpush1.msra.mxu0 0.0
    %2159 = vmatprep.subr.mxu0 0.0
    %2160 = vmatpush1.msra.mxu0 0.0
    %2161 = vmatprep.subr.mxu0 0.0
    %2162 = vmatpush1.msra.mxu0 0.0
    %2163 = vmatprep.subr.mxu0 0.0
    %2164 = vmatpush1.msra.mxu0 0.0
    %2165 = vmatprep.subr.mxu0 0.0
    %2166 = vmatpush1.msra.mxu0 0.0
    %2167 = vmatprep.subr.mxu0 0.0
    %2168 = vmatpush1.msra.mxu0 0.0
    %2169 = vmatprep.subr.mxu0 0.0
    %2170 = vmatpush1.msra.mxu0 0.0
    %2171 = vmatprep.subr.mxu0 0.0
    %2172 = vmatpush1.msra.mxu0 0.0
    %2173 = vmatprep.subr.mxu0 0.0
    %2174 = vmatpush1.msra.mxu0 0.0
    %2175 = vmatprep.subr.mxu0 0.0
    %2176 = vmatpush1.msra.mxu0 0.0
    %2177 = vmatprep.mubr.f32.mxu0 0.0
    %v2178 = vand.u32 %v91, 4294901760
    %2179 = vmatmul.mubr.f32.gmra.mrb[0].mxu0 %v2178
    %v2180 = vpop.f32.mrb[0].mxu0
    %v2181 = vadd.f32 %v2085, %v2180
    %v2182 = vpop.f32.mrb[0].mxu0
    %v2183 = vadd.f32 %v2087, %v2182
    %2184 = vdwg.mxu0
    %v2185 = vand.u32 %v23, 4294901760
    %2186 = vmatprep.subr.mxu0 %v2185
    %v2187 = vand.u32 %v22, 4294901760
    %2188 = vmatpush1.msra.mxu0 %v2187
    %v2189 = vand.u32 %v31, 4294901760
    %2190 = vmatprep.subr.mxu0 %v2189
    %v2191 = vand.u32 %v30, 4294901760
    %2192 = vmatpush1.msra.mxu0 %v2191
    %v2193 = vand.u32 %v39, 4294901760
    %2194 = vmatprep.subr.mxu0 %v2193
    %v2195 = vand.u32 %v38, 4294901760
    %2196 = vmatpush1.msra.mxu0 %v2195
    %v2197 = vand.u32 %v47, 4294901760
    %2198 = vmatprep.subr.mxu0 %v2197
    %v2199 = vand.u32 %v46, 4294901760
    %2200 = vmatpush1.msra.mxu0 %v2199
    %2201 = vmatprep.subr.mxu0 0.0
    %2202 = vmatpush1.msra.mxu0 0.0
    %2203 = vmatprep.subr.mxu0 0.0
    %2204 = vmatpush1.msra.mxu0 0.0
    %2205 = vmatprep.subr.mxu0 0.0
    %2206 = vmatpush1.msra.mxu0 0.0
    %2207 = vmatprep.subr.mxu0 0.0
    %2208 = vmatpush1.msra.mxu0 0.0
    %2209 = vmatprep.subr.mxu0 0.0
    %2210 = vmatpush1.msra.mxu0 0.0
    %2211 = vmatprep.subr.mxu0 0.0
    %2212 = vmatpush1.msra.mxu0 0.0
    %2213 = vmatprep.subr.mxu0 0.0
    %2214 = vmatpush1.msra.mxu0 0.0
    %2215 = vmatprep.subr.mxu0 0.0
    %2216 = vmatpush1.msra.mxu0 0.0
    %2217 = vmatprep.subr.mxu0 0.0
    %2218 = vmatpush1.msra.mxu0 0.0
    %2219 = vmatprep.subr.mxu0 0.0
    %2220 = vmatpush1.msra.mxu0 0.0
    %2221 = vmatprep.subr.mxu0 0.0
    %2222 = vmatpush1.msra.mxu0 0.0
    %2223 = vmatprep.subr.mxu0 0.0
    %2224 = vmatpush1.msra.mxu0 0.0
    %2225 = vmatprep.subr.mxu0 0.0
    %2226 = vmatpush1.msra.mxu0 0.0
    %2227 = vmatprep.subr.mxu0 0.0
    %2228 = vmatpush1.msra.mxu0 0.0
    %2229 = vmatprep.subr.mxu0 0.0
    %2230 = vmatpush1.msra.mxu0 0.0
    %2231 = vmatprep.subr.mxu0 0.0
    %2232 = vmatpush1.msra.mxu0 0.0
    %2233 = vmatprep.subr.mxu0 0.0
    %2234 = vmatpush1.msra.mxu0 0.0
    %2235 = vmatprep.subr.mxu0 0.0
    %2236 = vmatpush1.msra.mxu0 0.0
    %2237 = vmatprep.subr.mxu0 0.0
    %2238 = vmatpush1.msra.mxu0 0.0
    %2239 = vmatprep.subr.mxu0 0.0
    %2240 = vmatpush1.msra.mxu0 0.0
    %2241 = vmatprep.subr.mxu0 0.0
    %2242 = vmatpush1.msra.mxu0 0.0
    %2243 = vmatprep.subr.mxu0 0.0
    %2244 = vmatpush1.msra.mxu0 0.0
    %2245 = vmatprep.subr.mxu0 0.0
    %2246 = vmatpush1.msra.mxu0 0.0
    %2247 = vmatprep.subr.mxu0 0.0
    %2248 = vmatpush1.msra.mxu0 0.0
    %2249 = vmatprep.subr.mxu0 0.0
    %2250 = vmatpush1.msra.mxu0 0.0
    %2251 = vmatprep.subr.mxu0 0.0
    %2252 = vmatpush1.msra.mxu0 0.0
    %2253 = vmatprep.subr.mxu0 0.0
    %2254 = vmatpush1.msra.mxu0 0.0
    %2255 = vmatprep.subr.mxu0 0.0
    %2256 = vmatpush1.msra.mxu0 0.0
    %2257 = vmatprep.mubr.f32.mxu0 0.0
    %v2258 = vand.u32 %v91, 4294901760
    %2259 = vmatmul.mubr.f32.gmra.mrb[0].mxu0 %v2258
    %v2260 = vpop.f32.mrb[0].mxu0
    %v2261 = vadd.f32 %v2181, %v2260
    %v2262 = vpop.f32.mrb[0].mxu0
    %v2263 = vadd.f32 %v2183, %v2262
    %2264 = vdwg.mxu0
    %v2265 = vlaneseq
    %v2266 = vand.u32 %v2265, 127
    %v2267 = vadd.s32 %v2266, 128
    %v2268 = vadd.s32 %v2266, 256
    %v2269 = vadd.s32 %v2266, 384
    %v2270 = vadd.s32 %v2266, 512
    %v2271 = vadd.s32 %v2266, 640
    %v2272 = vadd.s32 %v2266, 768
    %v2273 = vadd.s32 %v2266, 896
    %vm2274 = vcmp.lt.s32.totalorder %v2266, 0
    %v2275 = vsub.s32 0, %v2266
    %v2276 = vsel %vm2274, %v2275, %v2266
    %v2277 = vshrl.u32 %v2276, 5
    %v2278 = vand.u32 %v2276, 31
    %v2279 = vsub.s32 0, %v2278
    %v2280 = vsel %vm2274, %v2279, %v2278
    %vm2281 = vcmp.lt.s32.totalorder %v2267, 0
    %v2282 = vsub.s32 0, %v2267
    %v2283 = vsel %vm2281, %v2282, %v2267
    %v2284 = vshrl.u32 %v2283, 5
    %v2285 = vand.u32 %v2283, 31
    %v2286 = vsub.s32 0, %v2285
    %v2287 = vsel %vm2281, %v2286, %v2285
    %vm2288 = vcmp.lt.s32.totalorder %v2268, 0
    %v2289 = vsub.s32 0, %v2268
    %v2290 = vsel %vm2288, %v2289, %v2268
    %v2291 = vshrl.u32 %v2290, 5
    %v2292 = vand.u32 %v2290, 31
    %v2293 = vsub.s32 0, %v2292
    %v2294 = vsel %vm2288, %v2293, %v2292
    %vm2295 = vcmp.lt.s32.totalorder %v2269, 0
    %v2296 = vsub.s32 0, %v2269
    %v2297 = vsel %vm2295, %v2296, %v2269
    %v2298 = vshrl.u32 %v2297, 5
    %v2299 = vand.u32 %v2297, 31
    %v2300 = vsub.s32 0, %v2299
    %v2301 = vsel %vm2295, %v2300, %v2299
    %vm2302 = vcmp.lt.s32.totalorder %v2270, 0
    %v2303 = vsub.s32 0, %v2270
    %v2304 = vsel %vm2302, %v2303, %v2270
    %v2305 = vshrl.u32 %v2304, 5
    %v2306 = vand.u32 %v2304, 31
    %v2307 = vsub.s32 0, %v2306
    %v2308 = vsel %vm2302, %v2307, %v2306
    %vm2309 = vcmp.lt.s32.totalorder %v2271, 0
    %v2310 = vsub.s32 0, %v2271
    %v2311 = vsel %vm2309, %v2310, %v2271
    %v2312 = vshrl.u32 %v2311, 5
    %v2313 = vand.u32 %v2311, 31
    %v2314 = vsub.s32 0, %v2313
    %v2315 = vsel %vm2309, %v2314, %v2313
    %vm2316 = vcmp.lt.s32.totalorder %v2272, 0
    %v2317 = vsub.s32 0, %v2272
    %v2318 = vsel %vm2316, %v2317, %v2272
    %v2319 = vshrl.u32 %v2318, 5
    %v2320 = vand.u32 %v2318, 31
    %v2321 = vsub.s32 0, %v2320
    %v2322 = vsel %vm2316, %v2321, %v2320
    %vm2323 = vcmp.lt.s32.totalorder %v2273, 0
    %v2324 = vsub.s32 0, %v2273
    %v2325 = vsel %vm2323, %v2324, %v2273
    %v2326 = vshrl.u32 %v2325, 5
    %v2327 = vand.u32 %v2325, 31
    %v2328 = vsub.s32 0, %v2327
    %v2329 = vsel %vm2323, %v2328, %v2327
    %vm2330 = vcmp.ne.s32.totalorder %v2280, 0
    %vm2331 = vcmp.ne.s32.totalorder %v2287, 0
    %vm2332 = vcmp.ne.s32.totalorder %v2294, 0
    %vm2333 = vcmp.ne.s32.totalorder %v2301, 0
    %vm2334 = vcmp.ne.s32.totalorder %v2308, 0
    %vm2335 = vcmp.ne.s32.totalorder %v2315, 0
    %vm2336 = vcmp.ne.s32.totalorder %v2322, 0
    %vm2337 = vcmp.ne.s32.totalorder %v2329, 0
    %vm2338 = vcmp.lt.s32.totalorder %v2280, 0
    %vm2339 = vcmp.lt.s32.totalorder %v2287, 0
    %vm2340 = vcmp.lt.s32.totalorder %v2294, 0
    %vm2341 = vcmp.lt.s32.totalorder %v2301, 0
    %vm2342 = vcmp.lt.s32.totalorder %v2308, 0
    %vm2343 = vcmp.lt.s32.totalorder %v2315, 0
    %vm2344 = vcmp.lt.s32.totalorder %v2322, 0
    %vm2345 = vcmp.lt.s32.totalorder %v2329, 0
    %vm2346 = vmand %vm2338, %vm2330
    %vm2347 = vmand %vm2339, %vm2331
    %vm2348 = vmand %vm2340, %vm2332
    %vm2349 = vmand %vm2341, %vm2333
    %vm2350 = vmand %vm2342, %vm2334
    %vm2351 = vmand %vm2343, %vm2335
    %vm2352 = vmand %vm2344, %vm2336
    %vm2353 = vmand %vm2345, %vm2337
    %v2354 = vadd.s32 %v2280, 32
    %v2355 = vadd.s32 %v2287, 32
    %v2356 = vadd.s32 %v2294, 32
    %v2357 = vadd.s32 %v2301, 32
    %v2358 = vadd.s32 %v2308, 32
    %v2359 = vadd.s32 %v2315, 32
    %v2360 = vadd.s32 %v2322, 32
    %v2361 = vadd.s32 %v2329, 32
    %v2362 = vsel %vm2346, %v2354, %v2280
    %v2363 = vsel %vm2347, %v2355, %v2287
    %v2364 = vsel %vm2348, %v2356, %v2294
    %v2365 = vsel %vm2349, %v2357, %v2301
    %v2366 = vsel %vm2350, %v2358, %v2308
    %v2367 = vsel %vm2351, %v2359, %v2315
    %v2368 = vsel %vm2352, %v2360, %v2322
    %v2369 = vsel %vm2353, %v2361, %v2329
    %vm2370 = vcmp.eq.s32.totalorder %v2362, 0
    %vm2371 = vcmp.eq.s32.totalorder %v2363, 0
    %vm2372 = vcmp.eq.s32.totalorder %v2364, 0
    %vm2373 = vcmp.eq.s32.totalorder %v2365, 0
    %vm2374 = vcmp.eq.s32.totalorder %v2366, 0
    %vm2375 = vcmp.eq.s32.totalorder %v2367, 0
    %vm2376 = vcmp.eq.s32.totalorder %v2368, 0
    %vm2377 = vcmp.eq.s32.totalorder %v2369, 0
    %v2378 = vand.u32 2147483647, %v632
    %vm2379 = vcmp.le.f32.partialorder %v2378, 0.7853982
    %vm2380 = vcmp.lt.s32.totalorder %v632, 0
    %v2381 = vand.u32 %v632, 2139095040
    %v2382 = vshrl.u32 %v2381, 23
    %v2383 = vsub.s32 %v2382, 127
    %v2384 = vand.u32 2147483647, %v632
    %v2385 = vand.u32 %v2384, 8388607
    %v2386 = vor.u32 %v2385, 8388608
    %v2387 = vsub.s32 0, %v2386
    %v2388 = vadd.s32 %v2383, 1
    %vm2389 = vcmp.gt.s32.totalorder %v2388, 0
    %v2390 = vsel %vm2389, %v2388, 0
    %v2391 = vshrl.u32 %v2390, 5
    %v2392 = vand.u32 %v2390, 31
    %v2393 = vsub.s32 32, %v2392
    %v2394 = vshrl.u32 683565275, %v2393
    %v2395 = vshll.u32 683565275, %v2392
    %v2396 = vshrl.u32 2475754826, %v2393
    %v2397 = vor.u32 %v2395, %v2396
    %v2398 = vshll.u32 2475754826, %v2392
    %v2399 = vshrl.u32 2131351028, %v2393
    %v2400 = vor.u32 %v2398, %v2399
    %v2401 = vshll.u32 2131351028, %v2392
    %v2402 = vshrl.u32 2102212464, %v2393
    %v2403 = vor.u32 %v2401, %v2402
    %v2404 = vshll.u32 2102212464, %v2392
    %v2405 = vshrl.u32 920167782, %v2393
    %v2406 = vor.u32 %v2404, %v2405
    %v2407 = vshll.u32 920167782, %v2392
    %v2408 = vshrl.u32 1326507024, %v2393
    %v2409 = vor.u32 %v2407, %v2408
    %vm2410 = vcmp.lt.s32.totalorder %v2391, 1
    %vm2411 = vcmp.lt.s32.totalorder %v2391, 2
    %vm2412 = vcmp.lt.s32.totalorder %v2391, 3
    %vm2413 = vcmp.lt.s32.totalorder %v2391, 4
    %v2414 = vsel %vm2410, %v2394, %v2397
    %v2415 = vsel %vm2413, %v2403, 2102212464
    %v2416 = vsel %vm2412, %v2400, %v2415
    %v2417 = vsel %vm2411, %v2414, %v2416
    %v2418 = vsel %vm2410, %v2397, %v2400
    %v2419 = vsel %vm2413, %v2406, 920167782
    %v2420 = vsel %vm2412, %v2403, %v2419
    %v2421 = vsel %vm2411, %v2418, %v2420
    %v2422 = vsel %vm2410, %v2400, %v2403
    %v2423 = vsel %vm2413, %v2409, 1326507024
    %v2424 = vsel %vm2412, %v2406, %v2423
    %v2425 = vsel %vm2411, %v2422, %v2424
    %v2426 = vshll.u32 %v2386, 8
    %v2427 = vmul.u32.u64.compose %v2426, %v2425
    %v2428 = vextract.low.u32 %v2427
    %v2429 = vextract.high.u32 %v2427
    %v2430 = vmul.u32.u64.compose %v2426, %v2421
    %v2431 = vextract.low.u32 %v2430
    %v2432 = vextract.high.u32 %v2430
    %v2433 = vmul.u32 %v2426, %v2417
    %v2434 = vadd.s32 %v2429, %v2431
    %vm2435 = vc.u32 %v2429, %v2431
    %v2436 = vadd.s32 %v2432, 1
    %v2437 = vsel %vm2435, %v2436, %v2432
    %v2438 = vadd.s32 %v2433, %v2437
    %v2439 = vadd.s32 %v2438, 536870912
    %v2440 = vshrl.u32 %v2439, 30
    %v2441 = vshll.u32 %v2440, 30
    %v2442 = vsub.s32 %v2438, %v2441
    %vm2443 = vcmp.lt.s32.totalorder %v2442, 0
    %v2444 = vsub.s32 0, %v2442
    %v2445 = vsel %vm2443, %v2444, %v2442
    %v2446 = vclz %v2445
    %v2447 = vsub.s32 %v2446, 2
    %vm2448 = vcmp.gt.s32.totalorder 0, %v2447
    %v2449 = vsel %vm2448, 0, %v2447
    %v2450 = vsub.s32 32, %v2449
    %v2451 = vshll.u32 %v2442, %v2449
    %v2452 = vshrl.u32 %v2434, %v2450
    %v2453 = vor.u32 %v2451, %v2452
    %v2454 = vsub.s32 4294967266, %v2449
    %v2455 = vadd.s32 %v2454, 127
    %v2456 = vshll.u32 %v2455, 23
    %v2457 = vor.u32 4788187, %v2456
    %v2458 = vand.u32 2147483647, %v2457
    %v2460 = vcvt.s32.f32 %v2453
    %v2461 = vmul.f32 %v2460, %v2458
    %v2462 = vxor.u32 %v2461, 2147483648
    %v2463 = vsel %vm2380, %v2462, %v2461
    %v2464 = vsub.s32 4, %v2440
    %v2465 = vsel %vm2380, %v2464, %v2440
    %v2466 = vsel %vm2379, %v632, %v2463
    %v2467 = vsel %vm2379, 0, %v2465
    %v2468 = vcosq.f32.pop %v2466
    %v2469 = vsinq.f32.pop %v2466
    %vm2470 = vweird.f32 %v632
    %v2471 = vadd.s32 %v2467, 3
    %v2472 = vand.u32 %v2471, 3
    %vm2473 = vcmp.lt.s32.totalorder %v2472, 2
    %vm2474 = vcmp.eq.s32.totalorder %v2472, 0
    %v2475 = vxor.u32 %v2469, 2147483648
    %v2476 = vsel %vm2474, %v2468, %v2475
    %vm2477 = vcmp.eq.s32.totalorder %v2472, 2
    %v2478 = vxor.u32 %v2468, 2147483648
    %v2479 = vsel %vm2477, %v2478, %v2469
    %v2480 = vsel %vm2473, %v2476, %v2479
    %v2481 = vsel %vm2470, nan, %v2480
    %v2482 = vand.u32 2147483647, %v634
    %vm2483 = vcmp.le.f32.partialorder %v2482, 0.7853982
    %vm2484 = vcmp.lt.s32.totalorder %v634, 0
    %v2485 = vand.u32 %v634, 2139095040
    %v2486 = vshrl.u32 %v2485, 23
    %v2487 = vsub.s32 %v2486, 127
    %v2488 = vand.u32 2147483647, %v634
    %v2489 = vand.u32 %v2488, 8388607
    %v2490 = vor.u32 %v2489, 8388608
    %v2491 = vsub.s32 0, %v2490
    %v2492 = vadd.s32 %v2487, 1
    %vm2493 = vcmp.gt.s32.totalorder %v2492, 0
    %v2494 = vsel %vm2493, %v2492, 0
    %v2495 = vshrl.u32 %v2494, 5
    %v2496 = vand.u32 %v2494, 31
    %v2497 = vsub.s32 32, %v2496
    %v2498 = vshrl.u32 683565275, %v2497
    %v2499 = vshll.u32 683565275, %v2496
    %v2500 = vshrl.u32 2475754826, %v2497
    %v2501 = vor.u32 %v2499, %v2500
    %v2502 = vshll.u32 2475754826, %v2496
    %v2503 = vshrl.u32 2131351028, %v2497
    %v2504 = vor.u32 %v2502, %v2503
    %v2505 = vshll.u32 2131351028, %v2496
    %v2506 = vshrl.u32 2102212464, %v2497
    %v2507 = vor.u32 %v2505, %v2506
    %v2508 = vshll.u32 2102212464, %v2496
    %v2509 = vshrl.u32 920167782, %v2497
    %v2510 = vor.u32 %v2508, %v2509
    %v2511 = vshll.u32 920167782, %v2496
    %v2512 = vshrl.u32 1326507024, %v2497
    %v2513 = vor.u32 %v2511, %v2512
    %vm2514 = vcmp.lt.s32.totalorder %v2495, 1
    %vm2515 = vcmp.lt.s32.totalorder %v2495, 2
    %vm2516 = vcmp.lt.s32.totalorder %v2495, 3
    %vm2517 = vcmp.lt.s32.totalorder %v2495, 4
    %v2518 = vsel %vm2514, %v2498, %v2501
    %v2519 = vsel %vm2517, %v2507, 2102212464
    %v2520 = vsel %vm2516, %v2504, %v2519
    %v2521 = vsel %vm2515, %v2518, %v2520
    %v2522 = vsel %vm2514, %v2501, %v2504
    %v2523 = vsel %vm2517, %v2510, 920167782
    %v2524 = vsel %vm2516, %v2507, %v2523
    %v2525 = vsel %vm2515, %v2522, %v2524
    %v2526 = vsel %vm2514, %v2504, %v2507
    %v2527 = vsel %vm2517, %v2513, 1326507024
    %v2528 = vsel %vm2516, %v2510, %v2527
    %v2529 = vsel %vm2515, %v2526, %v2528
    %v2530 = vshll.u32 %v2490, 8
    %v2531 = vmul.u32.u64.compose %v2530, %v2529
    %v2532 = vextract.low.u32 %v2531
    %v2533 = vextract.high.u32 %v2531
    %v2534 = vmul.u32.u64.compose %v2530, %v2525
    %v2535 = vextract.low.u32 %v2534
    %v2536 = vextract.high.u32 %v2534
    %v2537 = vmul.u32 %v2530, %v2521
    %v2538 = vadd.s32 %v2533, %v2535
    %vm2539 = vc.u32 %v2533, %v2535
    %v2540 = vadd.s32 %v2536, 1
    %v2541 = vsel %vm2539, %v2540, %v2536
    %v2542 = vadd.s32 %v2537, %v2541
    %v2543 = vadd.s32 %v2542, 536870912
    %v2544 = vshrl.u32 %v2543, 30
    %v2545 = vshll.u32 %v2544, 30
    %v2546 = vsub.s32 %v2542, %v2545
    %vm2547 = vcmp.lt.s32.totalorder %v2546, 0
    %v2548 = vsub.s32 0, %v2546
    %v2549 = vsel %vm2547, %v2548, %v2546
    %v2550 = vclz %v2549
    %v2551 = vsub.s32 %v2550, 2
    %vm2552 = vcmp.gt.s32.totalorder 0, %v2551
    %v2553 = vsel %vm2552, 0, %v2551
    %v2554 = vsub.s32 32, %v2553
    %v2555 = vshll.u32 %v2546, %v2553
    %v2556 = vshrl.u32 %v2538, %v2554
    %v2557 = vor.u32 %v2555, %v2556
    %v2558 = vsub.s32 4294967266, %v2553
    %v2559 = vadd.s32 %v2558, 127
    %v2560 = vshll.u32 %v2559, 23
    %v2561 = vor.u32 4788187, %v2560
    %v2562 = vand.u32 2147483647, %v2561
    %v2564 = vcvt.s32.f32 %v2557
    %v2565 = vmul.f32 %v2564, %v2562
    %v2566 = vxor.u32 %v2565, 2147483648
    %v2567 = vsel %vm2484, %v2566, %v2565
    %v2568 = vsub.s32 4, %v2544
    %v2569 = vsel %vm2484, %v2568, %v2544
    %v2570 = vsel %vm2483, %v634, %v2567
    %v2571 = vsel %vm2483, 0, %v2569
    %v2572 = vcosq.f32.pop %v2570
    %v2573 = vsinq.f32.pop %v2570
    %vm2574 = vweird.f32 %v634
    %v2575 = vadd.s32 %v2571, 3
    %v2576 = vand.u32 %v2575, 3
    %vm2577 = vcmp.lt.s32.totalorder %v2576, 2
    %vm2578 = vcmp.eq.s32.totalorder %v2576, 0
    %v2579 = vxor.u32 %v2573, 2147483648
    %v2580 = vsel %vm2578, %v2572, %v2579
    %vm2581 = vcmp.eq.s32.totalorder %v2576, 2
    %v2582 = vxor.u32 %v2572, 2147483648
    %v2583 = vsel %vm2581, %v2582, %v2573
    %v2584 = vsel %vm2577, %v2580, %v2583
    %v2585 = vsel %vm2574, nan, %v2584
    %v2586 = vand.u32 2147483647, %v1175
    %vm2587 = vcmp.le.f32.partialorder %v2586, 0.7853982
    %vm2588 = vcmp.lt.s32.totalorder %v1175, 0
    %v2589 = vand.u32 %v1175, 2139095040
    %v2590 = vshrl.u32 %v2589, 23
    %v2591 = vsub.s32 %v2590, 127
    %v2592 = vand.u32 2147483647, %v1175
    %v2593 = vand.u32 %v2592, 8388607
    %v2594 = vor.u32 %v2593, 8388608
    %v2595 = vsub.s32 0, %v2594
    %v2596 = vadd.s32 %v2591, 1
    %vm2597 = vcmp.gt.s32.totalorder %v2596, 0
    %v2598 = vsel %vm2597, %v2596, 0
    %v2599 = vshrl.u32 %v2598, 5
    %v2600 = vand.u32 %v2598, 31
    %v2601 = vsub.s32 32, %v2600
    %v2602 = vshrl.u32 683565275, %v2601
    %v2603 = vshll.u32 683565275, %v2600
    %v2604 = vshrl.u32 2475754826, %v2601
    %v2605 = vor.u32 %v2603, %v2604
    %v2606 = vshll.u32 2475754826, %v2600
    %v2607 = vshrl.u32 2131351028, %v2601
    %v2608 = vor.u32 %v2606, %v2607
    %v2609 = vshll.u32 2131351028, %v2600
    %v2610 = vshrl.u32 2102212464, %v2601
    %v2611 = vor.u32 %v2609, %v2610
    %v2612 = vshll.u32 2102212464, %v2600
    %v2613 = vshrl.u32 920167782, %v2601
    %v2614 = vor.u32 %v2612, %v2613
    %v2615 = vshll.u32 920167782, %v2600
    %v2616 = vshrl.u32 1326507024, %v2601
    %v2617 = vor.u32 %v2615, %v2616
    %vm2618 = vcmp.lt.s32.totalorder %v2599, 1
    %vm2619 = vcmp.lt.s32.totalorder %v2599, 2
    %vm2620 = vcmp.lt.s32.totalorder %v2599, 3
    %vm2621 = vcmp.lt.s32.totalorder %v2599, 4
    %v2622 = vsel %vm2618, %v2602, %v2605
    %v2623 = vsel %vm2621, %v2611, 2102212464
    %v2624 = vsel %vm2620, %v2608, %v2623
    %v2625 = vsel %vm2619, %v2622, %v2624
    %v2626 = vsel %vm2618, %v2605, %v2608
    %v2627 = vsel %vm2621, %v2614, 920167782
    %v2628 = vsel %vm2620, %v2611, %v2627
    %v2629 = vsel %vm2619, %v2626, %v2628
    %v2630 = vsel %vm2618, %v2608, %v2611
    %v2631 = vsel %vm2621, %v2617, 1326507024
    %v2632 = vsel %vm2620, %v2614, %v2631
    %v2633 = vsel %vm2619, %v2630, %v2632
    %v2634 = vshll.u32 %v2594, 8
    %v2635 = vmul.u32.u64.compose %v2634, %v2633
    %v2636 = vextract.low.u32 %v2635
    %v2637 = vextract.high.u32 %v2635
    %v2638 = vmul.u32.u64.compose %v2634, %v2629
    %v2639 = vextract.low.u32 %v2638
    %v2640 = vextract.high.u32 %v2638
    %v2641 = vmul.u32 %v2634, %v2625
    %v2642 = vadd.s32 %v2637, %v2639
    %vm2643 = vc.u32 %v2637, %v2639
    %v2644 = vadd.s32 %v2640, 1
    %v2645 = vsel %vm2643, %v2644, %v2640
    %v2646 = vadd.s32 %v2641, %v2645
    %v2647 = vadd.s32 %v2646, 536870912
    %v2648 = vshrl.u32 %v2647, 30
    %v2649 = vshll.u32 %v2648, 30
    %v2650 = vsub.s32 %v2646, %v2649
    %vm2651 = vcmp.lt.s32.totalorder %v2650, 0
    %v2652 = vsub.s32 0, %v2650
    %v2653 = vsel %vm2651, %v2652, %v2650
    %v2654 = vclz %v2653
    %v2655 = vsub.s32 %v2654, 2
    %vm2656 = vcmp.gt.s32.totalorder 0, %v2655
    %v2657 = vsel %vm2656, 0, %v2655
    %v2658 = vsub.s32 32, %v2657
    %v2659 = vshll.u32 %v2650, %v2657
    %v2660 = vshrl.u32 %v2642, %v2658
    %v2661 = vor.u32 %v2659, %v2660
    %v2662 = vsub.s32 4294967266, %v2657
    %v2663 = vadd.s32 %v2662, 127
    %v2664 = vshll.u32 %v2663, 23
    %v2665 = vor.u32 4788187, %v2664
    %v2666 = vand.u32 2147483647, %v2665
    %v2668 = vcvt.s32.f32 %v2661
    %v2669 = vmul.f32 %v2668, %v2666
    %v2670 = vxor.u32 %v2669, 2147483648
    %v2671 = vsel %vm2588, %v2670, %v2669
    %v2672 = vsub.s32 4, %v2648
    %v2673 = vsel %vm2588, %v2672, %v2648
    %v2674 = vsel %vm2587, %v1175, %v2671
    %v2675 = vsel %vm2587, 0, %v2673
    %v2676 = vcosq.f32.pop %v2674
    %v2677 = vsinq.f32.pop %v2674
    %vm2678 = vweird.f32 %v1175
    %v2679 = vadd.s32 %v2675, 3
    %v2680 = vand.u32 %v2679, 3
    %vm2681 = vcmp.lt.s32.totalorder %v2680, 2
    %vm2682 = vcmp.eq.s32.totalorder %v2680, 0
    %v2683 = vxor.u32 %v2677, 2147483648
    %v2684 = vsel %vm2682, %v2676, %v2683
    %vm2685 = vcmp.eq.s32.totalorder %v2680, 2
    %v2686 = vxor.u32 %v2676, 2147483648
    %v2687 = vsel %vm2685, %v2686, %v2677
    %v2688 = vsel %vm2681, %v2684, %v2687
    %v2689 = vsel %vm2678, nan, %v2688
    %v2690 = vand.u32 2147483647, %v1177
    %vm2691 = vcmp.le.f32.partialorder %v2690, 0.7853982
    %vm2692 = vcmp.lt.s32.totalorder %v1177, 0
    %v2693 = vand.u32 %v1177, 2139095040
    %v2694 = vshrl.u32 %v2693, 23
    %v2695 = vsub.s32 %v2694, 127
    %v2696 = vand.u32 2147483647, %v1177
    %v2697 = vand.u32 %v2696, 8388607
    %v2698 = vor.u32 %v2697, 8388608
    %v2699 = vsub.s32 0, %v2698
    %v2700 = vadd.s32 %v2695, 1
    %vm2701 = vcmp.gt.s32.totalorder %v2700, 0
    %v2702 = vsel %vm2701, %v2700, 0
    %v2703 = vshrl.u32 %v2702, 5
    %v2704 = vand.u32 %v2702, 31
    %v2705 = vsub.s32 32, %v2704
    %v2706 = vshrl.u32 683565275, %v2705
    %v2707 = vshll.u32 683565275, %v2704
    %v2708 = vshrl.u32 2475754826, %v2705
    %v2709 = vor.u32 %v2707, %v2708
    %v2710 = vshll.u32 2475754826, %v2704
    %v2711 = vshrl.u32 2131351028, %v2705
    %v2712 = vor.u32 %v2710, %v2711
    %v2713 = vshll.u32 2131351028, %v2704
    %v2714 = vshrl.u32 2102212464, %v2705
    %v2715 = vor.u32 %v2713, %v2714
    %v2716 = vshll.u32 2102212464, %v2704
    %v2717 = vshrl.u32 920167782, %v2705
    %v2718 = vor.u32 %v2716, %v2717
    %v2719 = vshll.u32 920167782, %v2704
    %v2720 = vshrl.u32 1326507024, %v2705
    %v2721 = vor.u32 %v2719, %v2720
    %vm2722 = vcmp.lt.s32.totalorder %v2703, 1
    %vm2723 = vcmp.lt.s32.totalorder %v2703, 2
    %vm2724 = vcmp.lt.s32.totalorder %v2703, 3
    %vm2725 = vcmp.lt.s32.totalorder %v2703, 4
    %v2726 = vsel %vm2722, %v2706, %v2709
    %v2727 = vsel %vm2725, %v2715, 2102212464
    %v2728 = vsel %vm2724, %v2712, %v2727
    %v2729 = vsel %vm2723, %v2726, %v2728
    %v2730 = vsel %vm2722, %v2709, %v2712
    %v2731 = vsel %vm2725, %v2718, 920167782
    %v2732 = vsel %vm2724, %v2715, %v2731
    %v2733 = vsel %vm2723, %v2730, %v2732
    %v2734 = vsel %vm2722, %v2712, %v2715
    %v2735 = vsel %vm2725, %v2721, 1326507024
    %v2736 = vsel %vm2724, %v2718, %v2735
    %v2737 = vsel %vm2723, %v2734, %v2736
    %v2738 = vshll.u32 %v2698, 8
    %v2739 = vmul.u32.u64.compose %v2738, %v2737
    %v2740 = vextract.low.u32 %v2739
    %v2741 = vextract.high.u32 %v2739
    %v2742 = vmul.u32.u64.compose %v2738, %v2733
    %v2743 = vextract.low.u32 %v2742
    %v2744 = vextract.high.u32 %v2742
    %v2745 = vmul.u32 %v2738, %v2729
    %v2746 = vadd.s32 %v2741, %v2743
    %vm2747 = vc.u32 %v2741, %v2743
    %v2748 = vadd.s32 %v2744, 1
    %v2749 = vsel %vm2747, %v2748, %v2744
    %v2750 = vadd.s32 %v2745, %v2749
    %v2751 = vadd.s32 %v2750, 536870912
    %v2752 = vshrl.u32 %v2751, 30
    %v2753 = vshll.u32 %v2752, 30
    %v2754 = vsub.s32 %v2750, %v2753
    %vm2755 = vcmp.lt.s32.totalorder %v2754, 0
    %v2756 = vsub.s32 0, %v2754
    %v2757 = vsel %vm2755, %v2756, %v2754
    %v2758 = vclz %v2757
    %v2759 = vsub.s32 %v2758, 2
    %vm2760 = vcmp.gt.s32.totalorder 0, %v2759
    %v2761 = vsel %vm2760, 0, %v2759
    %v2762 = vsub.s32 32, %v2761
    %v2763 = vshll.u32 %v2754, %v2761
    %v2764 = vshrl.u32 %v2746, %v2762
    %v2765 = vor.u32 %v2763, %v2764
    %v2766 = vsub.s32 4294967266, %v2761
    %v2767 = vadd.s32 %v2766, 127
    %v2768 = vshll.u32 %v2767, 23
    %v2769 = vor.u32 4788187, %v2768
    %v2770 = vand.u32 2147483647, %v2769
    %v2772 = vcvt.s32.f32 %v2765
    %v2773 = vmul.f32 %v2772, %v2770
    %v2774 = vxor.u32 %v2773, 2147483648
    %v2775 = vsel %vm2692, %v2774, %v2773
    %v2776 = vsub.s32 4, %v2752
    %v2777 = vsel %vm2692, %v2776, %v2752
    %v2778 = vsel %vm2691, %v1177, %v2775
    %v2779 = vsel %vm2691, 0, %v2777
    %v2780 = vcosq.f32.pop %v2778
    %v2781 = vsinq.f32.pop %v2778
    %vm2782 = vweird.f32 %v1177
    %v2783 = vadd.s32 %v2779, 3
    %v2784 = vand.u32 %v2783, 3
    %vm2785 = vcmp.lt.s32.totalorder %v2784, 2
    %vm2786 = vcmp.eq.s32.totalorder %v2784, 0
    %v2787 = vxor.u32 %v2781, 2147483648
    %v2788 = vsel %vm2786, %v2780, %v2787
    %vm2789 = vcmp.eq.s32.totalorder %v2784, 2
    %v2790 = vxor.u32 %v2780, 2147483648
    %v2791 = vsel %vm2789, %v2790, %v2781
    %v2792 = vsel %vm2785, %v2788, %v2791
    %v2793 = vsel %vm2782, nan, %v2792
    %v2794 = vand.u32 2147483647, %v1718
    %vm2795 = vcmp.le.f32.partialorder %v2794, 0.7853982
    %vm2796 = vcmp.lt.s32.totalorder %v1718, 0
    %v2797 = vand.u32 %v1718, 2139095040
    %v2798 = vshrl.u32 %v2797, 23
    %v2799 = vsub.s32 %v2798, 127
    %v2800 = vand.u32 2147483647, %v1718
    %v2801 = vand.u32 %v2800, 8388607
    %v2802 = vor.u32 %v2801, 8388608
    %v2803 = vsub.s32 0, %v2802
    %v2804 = vadd.s32 %v2799, 1
    %vm2805 = vcmp.gt.s32.totalorder %v2804, 0
    %v2806 = vsel %vm2805, %v2804, 0
    %v2807 = vshrl.u32 %v2806, 5
    %v2808 = vand.u32 %v2806, 31
    %v2809 = vsub.s32 32, %v2808
    %v2810 = vshrl.u32 683565275, %v2809
    %v2811 = vshll.u32 683565275, %v2808
    %v2812 = vshrl.u32 2475754826, %v2809
    %v2813 = vor.u32 %v2811, %v2812
    %v2814 = vshll.u32 2475754826, %v2808
    %v2815 = vshrl.u32 2131351028, %v2809
    %v2816 = vor.u32 %v2814, %v2815
    %v2817 = vshll.u32 2131351028, %v2808
    %v2818 = vshrl.u32 2102212464, %v2809
    %v2819 = vor.u32 %v2817, %v2818
    %v2820 = vshll.u32 2102212464, %v2808
    %v2821 = vshrl.u32 920167782, %v2809
    %v2822 = vor.u32 %v2820, %v2821
    %v2823 = vshll.u32 920167782, %v2808
    %v2824 = vshrl.u32 1326507024, %v2809
    %v2825 = vor.u32 %v2823, %v2824
    %vm2826 = vcmp.lt.s32.totalorder %v2807, 1
    %vm2827 = vcmp.lt.s32.totalorder %v2807, 2
    %vm2828 = vcmp.lt.s32.totalorder %v2807, 3
    %vm2829 = vcmp.lt.s32.totalorder %v2807, 4
    %v2830 = vsel %vm2826, %v2810, %v2813
    %v2831 = vsel %vm2829, %v2819, 2102212464
    %v2832 = vsel %vm2828, %v2816, %v2831
    %v2833 = vsel %vm2827, %v2830, %v2832
    %v2834 = vsel %vm2826, %v2813, %v2816
    %v2835 = vsel %vm2829, %v2822, 920167782
    %v2836 = vsel %vm2828, %v2819, %v2835
    %v2837 = vsel %vm2827, %v2834, %v2836
    %v2838 = vsel %vm2826, %v2816, %v2819
    %v2839 = vsel %vm2829, %v2825, 1326507024
    %v2840 = vsel %vm2828, %v2822, %v2839
    %v2841 = vsel %vm2827, %v2838, %v2840
    %v2842 = vshll.u32 %v2802, 8
    %v2843 = vmul.u32.u64.compose %v2842, %v2841
    %v2844 = vextract.low.u32 %v2843
    %v2845 = vextract.high.u32 %v2843
    %v2846 = vmul.u32.u64.compose %v2842, %v2837
    %v2847 = vextract.low.u32 %v2846
    %v2848 = vextract.high.u32 %v2846
    %v2849 = vmul.u32 %v2842, %v2833
    %v2850 = vadd.s32 %v2845, %v2847
    %vm2851 = vc.u32 %v2845, %v2847
    %v2852 = vadd.s32 %v2848, 1
    %v2853 = vsel %vm2851, %v2852, %v2848
    %v2854 = vadd.s32 %v2849, %v2853
    %v2855 = vadd.s32 %v2854, 536870912
    %v2856 = vshrl.u32 %v2855, 30
    %v2857 = vshll.u32 %v2856, 30
    %v2858 = vsub.s32 %v2854, %v2857
    %vm2859 = vcmp.lt.s32.totalorder %v2858, 0
    %v2860 = vsub.s32 0, %v2858
    %v2861 = vsel %vm2859, %v2860, %v2858
    %v2862 = vclz %v2861
    %v2863 = vsub.s32 %v2862, 2
    %vm2864 = vcmp.gt.s32.totalorder 0, %v2863
    %v2865 = vsel %vm2864, 0, %v2863
    %v2866 = vsub.s32 32, %v2865
    %v2867 = vshll.u32 %v2858, %v2865
    %v2868 = vshrl.u32 %v2850, %v2866
    %v2869 = vor.u32 %v2867, %v2868
    %v2870 = vsub.s32 4294967266, %v2865
    %v2871 = vadd.s32 %v2870, 127
    %v2872 = vshll.u32 %v2871, 23
    %v2873 = vor.u32 4788187, %v2872
    %v2874 = vand.u32 2147483647, %v2873
    %v2876 = vcvt.s32.f32 %v2869
    %v2877 = vmul.f32 %v2876, %v2874
    %v2878 = vxor.u32 %v2877, 2147483648
    %v2879 = vsel %vm2796, %v2878, %v2877
    %v2880 = vsub.s32 4, %v2856
    %v2881 = vsel %vm2796, %v2880, %v2856
    %v2882 = vsel %vm2795, %v1718, %v2879
    %v2883 = vsel %vm2795, 0, %v2881
    %v2884 = vcosq.f32.pop %v2882
    %v2885 = vsinq.f32.pop %v2882
    %vm2886 = vweird.f32 %v1718
    %v2887 = vadd.s32 %v2883, 3
    %v2888 = vand.u32 %v2887, 3
    %vm2889 = vcmp.lt.s32.totalorder %v2888, 2
    %vm2890 = vcmp.eq.s32.totalorder %v2888, 0
    %v2891 = vxor.u32 %v2885, 2147483648
    %v2892 = vsel %vm2890, %v2884, %v2891
    %vm2893 = vcmp.eq.s32.totalorder %v2888, 2
    %v2894 = vxor.u32 %v2884, 2147483648
    %v2895 = vsel %vm2893, %v2894, %v2885
    %v2896 = vsel %vm2889, %v2892, %v2895
    %v2897 = vsel %vm2886, nan, %v2896
    %v2898 = vand.u32 2147483647, %v1720
    %vm2899 = vcmp.le.f32.partialorder %v2898, 0.7853982
    %vm2900 = vcmp.lt.s32.totalorder %v1720, 0
    %v2901 = vand.u32 %v1720, 2139095040
    %v2902 = vshrl.u32 %v2901, 23
    %v2903 = vsub.s32 %v2902, 127
    %v2904 = vand.u32 2147483647, %v1720
    %v2905 = vand.u32 %v2904, 8388607
    %v2906 = vor.u32 %v2905, 8388608
    %v2907 = vsub.s32 0, %v2906
    %v2908 = vadd.s32 %v2903, 1
    %vm2909 = vcmp.gt.s32.totalorder %v2908, 0
    %v2910 = vsel %vm2909, %v2908, 0
    %v2911 = vshrl.u32 %v2910, 5
    %v2912 = vand.u32 %v2910, 31
    %v2913 = vsub.s32 32, %v2912
    %v2914 = vshrl.u32 683565275, %v2913
    %v2915 = vshll.u32 683565275, %v2912
    %v2916 = vshrl.u32 2475754826, %v2913
    %v2917 = vor.u32 %v2915, %v2916
    %v2918 = vshll.u32 2475754826, %v2912
    %v2919 = vshrl.u32 2131351028, %v2913
    %v2920 = vor.u32 %v2918, %v2919
    %v2921 = vshll.u32 2131351028, %v2912
    %v2922 = vshrl.u32 2102212464, %v2913
    %v2923 = vor.u32 %v2921, %v2922
    %v2924 = vshll.u32 2102212464, %v2912
    %v2925 = vshrl.u32 920167782, %v2913
    %v2926 = vor.u32 %v2924, %v2925
    %v2927 = vshll.u32 920167782, %v2912
    %v2928 = vshrl.u32 1326507024, %v2913
    %v2929 = vor.u32 %v2927, %v2928
    %vm2930 = vcmp.lt.s32.totalorder %v2911, 1
    %vm2931 = vcmp.lt.s32.totalorder %v2911, 2
    %vm2932 = vcmp.lt.s32.totalorder %v2911, 3
    %vm2933 = vcmp.lt.s32.totalorder %v2911, 4
    %v2934 = vsel %vm2930, %v2914, %v2917
    %v2935 = vsel %vm2933, %v2923, 2102212464
    %v2936 = vsel %vm2932, %v2920, %v2935
    %v2937 = vsel %vm2931, %v2934, %v2936
    %v2938 = vsel %vm2930, %v2917, %v2920
    %v2939 = vsel %vm2933, %v2926, 920167782
    %v2940 = vsel %vm2932, %v2923, %v2939
    %v2941 = vsel %vm2931, %v2938, %v2940
    %v2942 = vsel %vm2930, %v2920, %v2923
    %v2943 = vsel %vm2933, %v2929, 1326507024
    %v2944 = vsel %vm2932, %v2926, %v2943
    %v2945 = vsel %vm2931, %v2942, %v2944
    %v2946 = vshll.u32 %v2906, 8
    %v2947 = vmul.u32.u64.compose %v2946, %v2945
    %v2948 = vextract.low.u32 %v2947
    %v2949 = vextract.high.u32 %v2947
    %v2950 = vmul.u32.u64.compose %v2946, %v2941
    %v2951 = vextract.low.u32 %v2950
    %v2952 = vextract.high.u32 %v2950
    %v2953 = vmul.u32 %v2946, %v2937
    %v2954 = vadd.s32 %v2949, %v2951
    %vm2955 = vc.u32 %v2949, %v2951
    %v2956 = vadd.s32 %v2952, 1
    %v2957 = vsel %vm2955, %v2956, %v2952
    %v2958 = vadd.s32 %v2953, %v2957
    %v2959 = vadd.s32 %v2958, 536870912
    %v2960 = vshrl.u32 %v2959, 30
    %v2961 = vshll.u32 %v2960, 30
    %v2962 = vsub.s32 %v2958, %v2961
    %vm2963 = vcmp.lt.s32.totalorder %v2962, 0
    %v2964 = vsub.s32 0, %v2962
    %v2965 = vsel %vm2963, %v2964, %v2962
    %v2966 = vclz %v2965
    %v2967 = vsub.s32 %v2966, 2
    %vm2968 = vcmp.gt.s32.totalorder 0, %v2967
    %v2969 = vsel %vm2968, 0, %v2967
    %v2970 = vsub.s32 32, %v2969
    %v2971 = vshll.u32 %v2962, %v2969
    %v2972 = vshrl.u32 %v2954, %v2970
    %v2973 = vor.u32 %v2971, %v2972
    %v2974 = vsub.s32 4294967266, %v2969
    %v2975 = vadd.s32 %v2974, 127
    %v2976 = vshll.u32 %v2975, 23
    %v2977 = vor.u32 4788187, %v2976
    %v2978 = vand.u32 2147483647, %v2977
    %v2980 = vcvt.s32.f32 %v2973
    %v2981 = vmul.f32 %v2980, %v2978
    %v2982 = vxor.u32 %v2981, 2147483648
    %v2983 = vsel %vm2900, %v2982, %v2981
    %v2984 = vsub.s32 4, %v2960
    %v2985 = vsel %vm2900, %v2984, %v2960
    %v2986 = vsel %vm2899, %v1720, %v2983
    %v2987 = vsel %vm2899, 0, %v2985
    %v2988 = vcosq.f32.pop %v2986
    %v2989 = vsinq.f32.pop %v2986
    %vm2990 = vweird.f32 %v1720
    %v2991 = vadd.s32 %v2987, 3
    %v2992 = vand.u32 %v2991, 3
    %vm2993 = vcmp.lt.s32.totalorder %v2992, 2
    %vm2994 = vcmp.eq.s32.totalorder %v2992, 0
    %v2995 = vxor.u32 %v2989, 2147483648
    %v2996 = vsel %vm2994, %v2988, %v2995
    %vm2997 = vcmp.eq.s32.totalorder %v2992, 2
    %v2998 = vxor.u32 %v2988, 2147483648
    %v2999 = vsel %vm2997, %v2998, %v2989
    %v3000 = vsel %vm2993, %v2996, %v2999
    %v3001 = vsel %vm2990, nan, %v3000
    %v3002 = vand.u32 2147483647, %v2261
    %vm3003 = vcmp.le.f32.partialorder %v3002, 0.7853982
    %vm3004 = vcmp.lt.s32.totalorder %v2261, 0
    %v3005 = vand.u32 %v2261, 2139095040
    %v3006 = vshrl.u32 %v3005, 23
    %v3007 = vsub.s32 %v3006, 127
    %v3008 = vand.u32 2147483647, %v2261
    %v3009 = vand.u32 %v3008, 8388607
    %v3010 = vor.u32 %v3009, 8388608
    %v3011 = vsub.s32 0, %v3010
    %v3012 = vadd.s32 %v3007, 1
    %vm3013 = vcmp.gt.s32.totalorder %v3012, 0
    %v3014 = vsel %vm3013, %v3012, 0
    %v3015 = vshrl.u32 %v3014, 5
    %v3016 = vand.u32 %v3014, 31
    %v3017 = vsub.s32 32, %v3016
    %v3018 = vshrl.u32 683565275, %v3017
    %v3019 = vshll.u32 683565275, %v3016
    %v3020 = vshrl.u32 2475754826, %v3017
    %v3021 = vor.u32 %v3019, %v3020
    %v3022 = vshll.u32 2475754826, %v3016
    %v3023 = vshrl.u32 2131351028, %v3017
    %v3024 = vor.u32 %v3022, %v3023
    %v3025 = vshll.u32 2131351028, %v3016
    %v3026 = vshrl.u32 2102212464, %v3017
    %v3027 = vor.u32 %v3025, %v3026
    %v3028 = vshll.u32 2102212464, %v3016
    %v3029 = vshrl.u32 920167782, %v3017
    %v3030 = vor.u32 %v3028, %v3029
    %v3031 = vshll.u32 920167782, %v3016
    %v3032 = vshrl.u32 1326507024, %v3017
    %v3033 = vor.u32 %v3031, %v3032
    %vm3034 = vcmp.lt.s32.totalorder %v3015, 1
    %vm3035 = vcmp.lt.s32.totalorder %v3015, 2
    %vm3036 = vcmp.lt.s32.totalorder %v3015, 3
    %vm3037 = vcmp.lt.s32.totalorder %v3015, 4
    %v3038 = vsel %vm3034, %v3018, %v3021
    %v3039 = vsel %vm3037, %v3027, 2102212464
    %v3040 = vsel %vm3036, %v3024, %v3039
    %v3041 = vsel %vm3035, %v3038, %v3040
    %v3042 = vsel %vm3034, %v3021, %v3024
    %v3043 = vsel %vm3037, %v3030, 920167782
    %v3044 = vsel %vm3036, %v3027, %v3043
    %v3045 = vsel %vm3035, %v3042, %v3044
    %v3046 = vsel %vm3034, %v3024, %v3027
    %v3047 = vsel %vm3037, %v3033, 1326507024
    %v3048 = vsel %vm3036, %v3030, %v3047
    %v3049 = vsel %vm3035, %v3046, %v3048
    %v3050 = vshll.u32 %v3010, 8
    %v3051 = vmul.u32.u64.compose %v3050, %v3049
    %v3052 = vextract.low.u32 %v3051
    %v3053 = vextract.high.u32 %v3051
    %v3054 = vmul.u32.u64.compose %v3050, %v3045
    %v3055 = vextract.low.u32 %v3054
    %v3056 = vextract.high.u32 %v3054
    %v3057 = vmul.u32 %v3050, %v3041
    %v3058 = vadd.s32 %v3053, %v3055
    %vm3059 = vc.u32 %v3053, %v3055
    %v3060 = vadd.s32 %v3056, 1
    %v3061 = vsel %vm3059, %v3060, %v3056
    %v3062 = vadd.s32 %v3057, %v3061
    %v3063 = vadd.s32 %v3062, 536870912
    %v3064 = vshrl.u32 %v3063, 30
    %v3065 = vshll.u32 %v3064, 30
    %v3066 = vsub.s32 %v3062, %v3065
    %vm3067 = vcmp.lt.s32.totalorder %v3066, 0
    %v3068 = vsub.s32 0, %v3066
    %v3069 = vsel %vm3067, %v3068, %v3066
    %v3070 = vclz %v3069
    %v3071 = vsub.s32 %v3070, 2
    %vm3072 = vcmp.gt.s32.totalorder 0, %v3071
    %v3073 = vsel %vm3072, 0, %v3071
    %v3074 = vsub.s32 32, %v3073
    %v3075 = vshll.u32 %v3066, %v3073
    %v3076 = vshrl.u32 %v3058, %v3074
    %v3077 = vor.u32 %v3075, %v3076
    %v3078 = vsub.s32 4294967266, %v3073
    %v3079 = vadd.s32 %v3078, 127
    %v3080 = vshll.u32 %v3079, 23
    %v3081 = vor.u32 4788187, %v3080
    %v3082 = vand.u32 2147483647, %v3081
    %v3084 = vcvt.s32.f32 %v3077
    %v3085 = vmul.f32 %v3084, %v3082
    %v3086 = vxor.u32 %v3085, 2147483648
    %v3087 = vsel %vm3004, %v3086, %v3085
    %v3088 = vsub.s32 4, %v3064
    %v3089 = vsel %vm3004, %v3088, %v3064
    %v3090 = vsel %vm3003, %v2261, %v3087
    %v3091 = vsel %vm3003, 0, %v3089
    %v3092 = vcosq.f32.pop %v3090
    %v3093 = vsinq.f32.pop %v3090
    %vm3094 = vweird.f32 %v2261
    %v3095 = vadd.s32 %v3091, 3
    %v3096 = vand.u32 %v3095, 3
    %vm3097 = vcmp.lt.s32.totalorder %v3096, 2
    %vm3098 = vcmp.eq.s32.totalorder %v3096, 0
    %v3099 = vxor.u32 %v3093, 2147483648
    %v3100 = vsel %vm3098, %v3092, %v3099
    %vm3101 = vcmp.eq.s32.totalorder %v3096, 2
    %v3102 = vxor.u32 %v3092, 2147483648
    %v3103 = vsel %vm3101, %v3102, %v3093
    %v3104 = vsel %vm3097, %v3100, %v3103
    %v3105 = vsel %vm3094, nan, %v3104
    %v3106 = vand.u32 2147483647, %v2263
    %vm3107 = vcmp.le.f32.partialorder %v3106, 0.7853982
    %vm3108 = vcmp.lt.s32.totalorder %v2263, 0
    %v3109 = vand.u32 %v2263, 2139095040
    %v3110 = vshrl.u32 %v3109, 23
    %v3111 = vsub.s32 %v3110, 127
    %v3112 = vand.u32 2147483647, %v2263
    %v3113 = vand.u32 %v3112, 8388607
    %v3114 = vor.u32 %v3113, 8388608
    %v3115 = vsub.s32 0, %v3114
    %v3116 = vadd.s32 %v3111, 1
    %vm3117 = vcmp.gt.s32.totalorder %v3116, 0
    %v3118 = vsel %vm3117, %v3116, 0
    %v3119 = vshrl.u32 %v3118, 5
    %v3120 = vand.u32 %v3118, 31
    %v3121 = vsub.s32 32, %v3120
    %v3122 = vshrl.u32 683565275, %v3121
    %v3123 = vshll.u32 683565275, %v3120
    %v3124 = vshrl.u32 2475754826, %v3121
    %v3125 = vor.u32 %v3123, %v3124
    %v3126 = vshll.u32 2475754826, %v3120
    %v3127 = vshrl.u32 2131351028, %v3121
    %v3128 = vor.u32 %v3126, %v3127
    %v3129 = vshll.u32 2131351028, %v3120
    %v3130 = vshrl.u32 2102212464, %v3121
    %v3131 = vor.u32 %v3129, %v3130
    %v3132 = vshll.u32 2102212464, %v3120
    %v3133 = vshrl.u32 920167782, %v3121
    %v3134 = vor.u32 %v3132, %v3133
    %v3135 = vshll.u32 920167782, %v3120
    %v3136 = vshrl.u32 1326507024, %v3121
    %v3137 = vor.u32 %v3135, %v3136
    %vm3138 = vcmp.lt.s32.totalorder %v3119, 1
    %vm3139 = vcmp.lt.s32.totalorder %v3119, 2
    %vm3140 = vcmp.lt.s32.totalorder %v3119, 3
    %vm3141 = vcmp.lt.s32.totalorder %v3119, 4
    %v3142 = vsel %vm3138, %v3122, %v3125
    %v3143 = vsel %vm3141, %v3131, 2102212464
    %v3144 = vsel %vm3140, %v3128, %v3143
    %v3145 = vsel %vm3139, %v3142, %v3144
    %v3146 = vsel %vm3138, %v3125, %v3128
    %v3147 = vsel %vm3141, %v3134, 920167782
    %v3148 = vsel %vm3140, %v3131, %v3147
    %v3149 = vsel %vm3139, %v3146, %v3148
    %v3150 = vsel %vm3138, %v3128, %v3131
    %v3151 = vsel %vm3141, %v3137, 1326507024
    %v3152 = vsel %vm3140, %v3134, %v3151
    %v3153 = vsel %vm3139, %v3150, %v3152
    %v3154 = vshll.u32 %v3114, 8
    %v3155 = vmul.u32.u64.compose %v3154, %v3153
    %v3156 = vextract.low.u32 %v3155
    %v3157 = vextract.high.u32 %v3155
    %v3158 = vmul.u32.u64.compose %v3154, %v3149
    %v3159 = vextract.low.u32 %v3158
    %v3160 = vextract.high.u32 %v3158
    %v3161 = vmul.u32 %v3154, %v3145
    %v3162 = vadd.s32 %v3157, %v3159
    %vm3163 = vc.u32 %v3157, %v3159
    %v3164 = vadd.s32 %v3160, 1
    %v3165 = vsel %vm3163, %v3164, %v3160
    %v3166 = vadd.s32 %v3161, %v3165
    %v3167 = vadd.s32 %v3166, 536870912
    %v3168 = vshrl.u32 %v3167, 30
    %v3169 = vshll.u32 %v3168, 30
    %v3170 = vsub.s32 %v3166, %v3169
    %vm3171 = vcmp.lt.s32.totalorder %v3170, 0
    %v3172 = vsub.s32 0, %v3170
    %v3173 = vsel %vm3171, %v3172, %v3170
    %v3174 = vclz %v3173
    %v3175 = vsub.s32 %v3174, 2
    %vm3176 = vcmp.gt.s32.totalorder 0, %v3175
    %v3177 = vsel %vm3176, 0, %v3175
    %v3178 = vsub.s32 32, %v3177
    %v3179 = vshll.u32 %v3170, %v3177
    %v3180 = vshrl.u32 %v3162, %v3178
    %v3181 = vor.u32 %v3179, %v3180
    %v3182 = vsub.s32 4294967266, %v3177
    %v3183 = vadd.s32 %v3182, 127
    %v3184 = vshll.u32 %v3183, 23
    %v3185 = vor.u32 4788187, %v3184
    %v3186 = vand.u32 2147483647, %v3185
    %v3188 = vcvt.s32.f32 %v3181
    %v3189 = vmul.f32 %v3188, %v3186
    %v3190 = vxor.u32 %v3189, 2147483648
    %v3191 = vsel %vm3108, %v3190, %v3189
    %v3192 = vsub.s32 4, %v3168
    %v3193 = vsel %vm3108, %v3192, %v3168
    %v3194 = vsel %vm3107, %v2263, %v3191
    %v3195 = vsel %vm3107, 0, %v3193
    %v3196 = vcosq.f32.pop %v3194
    %v3197 = vsinq.f32.pop %v3194
    %vm3198 = vweird.f32 %v2263
    %v3199 = vadd.s32 %v3195, 3
    %v3200 = vand.u32 %v3199, 3
    %vm3201 = vcmp.lt.s32.totalorder %v3200, 2
    %vm3202 = vcmp.eq.s32.totalorder %v3200, 0
    %v3203 = vxor.u32 %v3197, 2147483648
    %v3204 = vsel %vm3202, %v3196, %v3203
    %vm3205 = vcmp.eq.s32.totalorder %v3200, 2
    %v3206 = vxor.u32 %v3196, 2147483648
    %v3207 = vsel %vm3205, %v3206, %v3197
    %v3208 = vsel %vm3201, %v3204, %v3207
    %v3209 = vsel %vm3198, nan, %v3208
    %v3210 = vsel %vm2370, 1, 0
    %v3211 = vsel %vm2371, 1, 0
    %v3212 = vsel %vm2372, 1, 0
    %v3213 = vsel %vm2373, 1, 0
    %v3214 = vsel %vm2374, 1, 0
    %v3215 = vsel %vm2375, 1, 0
    %v3216 = vsel %vm2376, 1, 0
    %v3217 = vsel %vm2377, 1, 0
    %vm3218 = vcmp.eq.s32.totalorder %v3210, 1
    %vm3219 = vcmp.eq.s32.totalorder %v3211, 1
    %vm3220 = vcmp.eq.s32.totalorder %v3212, 1
    %vm3221 = vcmp.eq.s32.totalorder %v3213, 1
    %vm3222 = vcmp.eq.s32.totalorder %v3214, 1
    %vm3223 = vcmp.eq.s32.totalorder %v3215, 1
    %vm3224 = vcmp.eq.s32.totalorder %v3216, 1
    %vm3225 = vcmp.eq.s32.totalorder %v3217, 1
    %v3226 = vsel %vm3218, %v632, %v2481
    %v3227 = vsel %vm3219, %v634, %v2585
    %v3228 = vsel %vm3220, %v1175, %v2689
    %v3229 = vsel %vm3221, %v1177, %v2793
    %v3230 = vsel %vm3222, %v1718, %v2897
    %v3231 = vsel %vm3223, %v1720, %v3001
    %v3232 = vsel %vm3224, %v2261, %v3105
    %v3233 = vsel %vm3225, %v2263, %v3209
    %v3242 = vcombine.low %v3226, %v3227
    %v3243 = vcombine.high %v3226, %v3227
    %v3244 = vcombine.low %v3228, %v3229
    %v3245 = vcombine.high %v3228, %v3229
    %v3247 = vunpack.c.l.s4 1983009808
    %v3248 = vunpack.c.0.s8 %v3247
    %v3249 = vlaneseq
    %v3250 = vshrl.u32 %v3249, 7
    %v3251 = vsub.s32 %v3248, %v3250
    %v3252 = vrot.slane %v3242, %v3251
    %v3254 = vunpack.c.l.s4 1983009808
    %v3255 = vunpack.c.0.s8 %v3254
    %v3256 = vlaneseq
    %v3257 = vshrl.u32 %v3256, 7
    %v3258 = vsub.s32 %v3255, %v3257
    %v3259 = vrot.slane %v3243, %v3258
    %v3261 = vunpack.c.l.s4 1983009808
    %v3262 = vunpack.c.0.s8 %v3261
    %v3263 = vlaneseq
    %v3264 = vshrl.u32 %v3263, 7
    %v3265 = vsub.s32 %v3262, %v3264
    %v3266 = vrot.slane %v3244, %v3265
    %v3268 = vunpack.c.l.s4 1983009808
    %v3269 = vunpack.c.0.s8 %v3268
    %v3270 = vlaneseq
    %v3271 = vshrl.u32 %v3270, 7
    %v3272 = vsub.s32 %v3269, %v3271
    %v3273 = vrot.slane %v3245, %v3272
    %v3274 = vcombine.low %v3252, %v3266
    %v3275 = vcombine.high %v3252, %v3266
    %v3276 = vcombine.low %v3259, %v3273
    %v3277 = vcombine.high %v3259, %v3273
    %v3278 = vcombine.low %v3230, %v3231
    %v3279 = vcombine.high %v3230, %v3231
    %v3280 = vcombine.low %v3232, %v3233
    %v3281 = vcombine.high %v3232, %v3233
    %v3283 = vunpack.c.l.s4 1983009808
    %v3284 = vunpack.c.0.s8 %v3283
    %v3285 = vlaneseq
    %v3286 = vshrl.u32 %v3285, 7
    %v3287 = vsub.s32 %v3284, %v3286
    %v3288 = vrot.slane %v3278, %v3287
    %v3290 = vunpack.c.l.s4 1983009808
    %v3291 = vunpack.c.0.s8 %v3290
    %v3292 = vlaneseq
    %v3293 = vshrl.u32 %v3292, 7
    %v3294 = vsub.s32 %v3291, %v3293
    %v3295 = vrot.slane %v3279, %v3294
    %v3297 = vunpack.c.l.s4 1983009808
    %v3298 = vunpack.c.0.s8 %v3297
    %v3299 = vlaneseq
    %v3300 = vshrl.u32 %v3299, 7
    %v3301 = vsub.s32 %v3298, %v3300
    %v3302 = vrot.slane %v3280, %v3301
    %v3304 = vunpack.c.l.s4 1983009808
    %v3305 = vunpack.c.0.s8 %v3304
    %v3306 = vlaneseq
    %v3307 = vshrl.u32 %v3306, 7
    %v3308 = vsub.s32 %v3305, %v3307
    %v3309 = vrot.slane %v3281, %v3308
    %v3310 = vcombine.low %v3288, %v3302
    %v3311 = vcombine.high %v3288, %v3302
    %v3312 = vcombine.low %v3295, %v3309
    %v3313 = vcombine.high %v3295, %v3309
    %3322 = vst [vmem:[#allocation2] sm:$0xff] %v3274
    %3323 = vst [vmem:[#allocation2 + $0x8] sm:$0xff] %v3310
    %3324 = vst [vmem:[#allocation2 + $0x10] sm:$0xff] %v3275
    %3325 = vst [vmem:[#allocation2 + $0x18] sm:$0xff] %v3311
    %3326 = vst [vmem:[#allocation2 + $0x20] sm:$0xff] %v3276
    %3327 = vst [vmem:[#allocation2 + $0x28] sm:$0xff] %v3312
    %3328 = vst [vmem:[#allocation2 + $0x30] sm:$0xff] %v3277
    %3329 = vst [vmem:[#allocation2 + $0x38] sm:$0xff] %v3313
    // Predicated region
    $region14: #{time_encoder_forward.1} parent=1 // pred_check
      _
    $region15: #{time_encoder_forward.1} parent=1 // pred_check_branch
      %3331 = sbr.rel (0) target = $region17
    $region16: #{time_encoder_forward.1} parent=1 // pred_region
      // Predicated region
      $region18: #{time_encoder_forward.1} parent=16 // pred_check
        _
      $region19: #{time_encoder_forward.1} parent=16 // pred_check_branch
        %3333 = sbr.rel (0) target = $region21
      $region20: #{time_encoder_forward.1} parent=16 // pred_region
        // Predicated region
        $region22: #{time_encoder_forward.1} parent=20 // pred_check
          _
        $region23: #{time_encoder_forward.1} parent=20 // pred_check_branch
          %3335 = sbr.rel (0) target = $region25
        $region24: #{time_encoder_forward.1} parent=20 // pred_region
          loop: start=0, step=1, limit=1
          $region26: #{time_encoder_forward.1} parent=24 // loop_pre_header
            _
          $region27: #{time_encoder_forward.1} parent=24 // loop_header
            %s3337 = sphi 0, %s3341
            %p3338 = scmp.ge.s32.totalorder %s3337, 1
            %s3342 = sphi [#allocation2], [#allocation2]
            %s3343 = sphi %s3, %s3
          $region28: #{time_encoder_forward.1} parent=24 // loop_header_branch
            %3340 = sbr.rel (%p3338) target = $region32
          $region29: #{time_encoder_forward.1} parent=24 // loop_body
            %v3344 = vld [vmem:[%s3342] sm:$0xff]
            %3345 = vst [vmem:[%s3343] sm:$0xff] %v3344
            %v3346 = vld [vmem:[%s3342 + $0x8] sm:$0xff]
            %3347 = vst [vmem:[%s3343 + $0x8] sm:$0xff] %v3346
          $region30: #{time_encoder_forward.1} parent=24 // loop_footer
            %s3341 = sadd.s32 1, %s3337
          $region31: #{time_encoder_forward.1} parent=24 // loop_footer_branch
            %3336 = sbr.rel target = $region27
          $region32: #{time_encoder_forward.1} parent=24 // loop_exit
            _
        $region25: #{time_encoder_forward.1} parent=20 // pred_fallthru
          _
        // Predicated region
        $region33: #{time_encoder_forward.1} parent=20 // pred_check
          _
        $region34: #{time_encoder_forward.1} parent=20 // pred_check_branch
          %3349 = sbr.rel target = $region36
        $region35: #{time_encoder_forward.1} parent=20 // pred_region
          _
        $region36: #{time_encoder_forward.1} parent=20 // pred_fallthru
          _
      $region21: #{time_encoder_forward.1} parent=16 // pred_fallthru
        _
      %3350 = vnop
    $region17: #{time_encoder_forward.1} parent=1 // pred_fallthru
      _
    // Predicated region
    $region37: #{time_encoder_forward.1} parent=1 // pred_check
      _
    $region38: #{time_encoder_forward.1} parent=1 // pred_check_branch
      %3352 = sbr.rel (0) target = $region40
    $region39: #{time_encoder_forward.1} parent=1 // pred_region
      _
    $region40: #{time_encoder_forward.1} parent=1 // pred_fallthru
      _

</llo_original>
